<compile_context>
chip_gen: v6e
topology: v6e:2x2x1
jax: 0.10.0
libtpu: 0.0.40
codegen_flags: <defaults>
</compile_context>

<pallas_src>
import jax
import jax.numpy as jnp
import numpy as np
from jax.experimental import pallas as pl
from jax.experimental.pallas import tpu as pltpu


def _iwt_kernel(x_ref, o_ref):
    # x_ref block: (1, 4, TC, H, W)   -- 4 channel groups for TC out-channels.
    # o_ref block: (1, TC, 2H, 2W)    -- final interleaved output slab.
    x1 = x_ref[0, 0].astype(jnp.float32)
    x2 = x_ref[0, 1].astype(jnp.float32)
    x3 = x_ref[0, 2].astype(jnp.float32)
    x4 = x_ref[0, 3].astype(jnp.float32)

    # Butterfly form: 8 adds + 4 muls, short vreg live ranges.
    s14 = (x1 + x4) * 0.5
    d14 = (x1 - x4) * 0.5
    s23 = (x2 + x3) * 0.5
    d23 = (x2 - x3) * 0.5

    o00 = s14 - s23   # -> h[0::2, 0::2]  (x1 - x2 - x3 + x4) / 2
    o01 = d14 + d23   # -> h[0::2, 1::2]  (x1 + x2 - x3 - x4) / 2
    o10 = d14 - d23   # -> h[1::2, 0::2]  (x1 - x2 + x3 - x4) / 2
    o11 = s14 + s23   # -> h[1::2, 1::2]  (x1 + x2 + x3 + x4) / 2

    tc, h, w = o00.shape

    # Column (lane) interleave: out[..., 2j]   = o_even[..., j]
    #                           out[..., 2j+1] = o_odd [..., j]
    even_rows = jnp.stack([o00, o01], axis=-1).reshape(tc, h, 2 * w)
    odd_rows = jnp.stack([o10, o11], axis=-1).reshape(tc, h, 2 * w)

    # Row (sublane) interleave: out[..., 2i + r, :] = rows_r[..., i, :]
    full = jnp.stack([even_rows, odd_rows], axis=-2).reshape(tc, 2 * h, 2 * w)

    o_ref[0] = full.astype(o_ref.dtype)


def _pick_channel_block(oc, h, w, budget_bytes=2 << 20):
    """Largest divisor of oc whose per-step (in + out) tile bytes fit budget.

    Per step bytes ~= (4*TC*H*W + TC*2H*2W) * 4B = 32 * TC * H * W, kept small
    enough that double-buffering + in-kernel temporaries stay well inside the
    default scoped VMEM even on v7x (64 MiB physical / 32 MiB scoped).
    """
    max_tc = max(1, budget_bytes // (32 * h * w))
    tc = 1
    for d in range(1, oc + 1):
        if oc % d == 0 and d <= max_tc:
            tc = d
    return tc


def iwt(x: jax.Array) -> jax.Array:
    """Pallas implementation of iwt_init: (B, 4*OC, H, W) -> (B, OC, 2H, 2W)."""
    B, C, H, W = x.shape
    assert C % 4 == 0, "channel count must be divisible by 4"
    OC = C // 4
    TC = _pick_channel_block(OC, H, W)

    # Free metadata reshape: channel groups are contiguous in NCHW.
    x_r = x.reshape(B, 4, OC, H, W)

    out = pl.pallas_call(
        _iwt_kernel,
        out_shape=jax.ShapeDtypeStruct((B, OC, 2 * H, 2 * W), jnp.float32),
        grid_spec=pltpu.PrefetchScalarGridSpec(
            num_scalar_prefetch=0,
            grid=(B, OC // TC),
            in_specs=[
                pl.BlockSpec(
                    (1, 4, TC, H, W),
                    lambda b, c: (b, 0, c, 0, 0),
                ),
            ],
            out_specs=pl.BlockSpec(
                (1, TC, 2 * H, 2 * W),
                lambda b, c: (b, c, 0, 0),
            ),
        ),
        compiler_params=pltpu.CompilerParams(
            dimension_semantics=("parallel", "parallel"),
        ),
    )(x_r)
    return out


def iwt_reference(x: jax.Array) -> jax.Array:
    """Pure-JAX port of the PyTorch iwt_init for verification."""
    B, C, H, W = x.shape
    OC = C // 4
    x1 = x[:, 0 * OC:1 * OC] / 2
    x2 = x[:, 1 * OC:2 * OC] / 2
    x3 = x[:, 2 * OC:3 * OC] / 2
    x4 = x[:, 3 * OC:4 * OC] / 2
    h = jnp.zeros((B, OC, 2 * H, 2 * W), jnp.float32)
    h = h.at[:, :, 0::2, 0::2].set(x1 - x2 - x3 + x4)
    h = h.at[:, :, 1::2, 0::2].set(x1 - x2 + x3 - x4)
    h = h.at[:, :, 0::2, 1::2].set(x1 + x2 - x3 - x4)
    h = h.at[:, :, 1::2, 1::2].set(x1 + x2 + x3 + x4)
    return h


if __name__ == "__main__":
    key = jax.random.PRNGKey(0)

    # Primary test: B=2, C=4 (OC=1), H=W=16  ->  (2, 1, 32, 32)
    x = jax.random.normal(key, (2, 4, 16, 16), dtype=jnp.float32)
    out = jax.block_until_ready(iwt(x))
    ref = jax.block_until_ready(iwt_reference(x))
    assert out.shape == (2, 1, 32, 32), out.shape
    assert out.dtype == jnp.float32
    np.testing.assert_allclose(np.asarray(out), np.asarray(ref), rtol=1e-6, atol=1e-6)

    # Second test exercising channel blocking: OC=4.
    x2 = jax.random.normal(jax.random.PRNGKey(1), (2, 16, 16, 16), dtype=jnp.float32)
    out2 = jax.block_until_ready(iwt(x2))
    ref2 = jax.block_until_ready(iwt_reference(x2))
    assert out2.shape == (2, 4, 32, 32), out2.shape
    np.testing.assert_allclose(np.asarray(out2), np.asarray(ref2), rtol=1e-6, atol=1e-6)

    print("KERNEL_OK")
</pallas_src>

<mosaic_0001>
module attributes {stable_mosaic.version = 11 : i64} {
  func.func @_iwt_kernel(%arg0: i32, %arg1: i32, %arg2: memref<1x4x1x16x16xf32, #tpu.memory_space<vmem>>, %arg3: memref<1x1x32x32xf32, #tpu.memory_space<vmem>>) attributes {dimension_semantics = [#tpu.dimension_semantics<parallel>, #tpu.dimension_semantics<parallel>], iteration_bounds = array<i64: 2, 1>, scalar_prefetch = 0 : i64, scratch_operands = 0 : i64, tpu.core_type = #tpu.core_type<tc>, window_params = [{transform_indices = @transform_0, window_bounds = array<i64: 1, 4, 1, 16, 16>}, {transform_indices = @transform_1, window_bounds = array<i64: 1, 1, 32, 32>}]} {
    %c0 = arith.constant 0 : index
    %c0_0 = arith.constant 0 : index
    %c0_1 = arith.constant 0 : index
    %c0_2 = arith.constant 0 : index
    %c0_3 = arith.constant 0 : index
    %0 = vector.load %arg2[%c0, %c0_0, %c0_1, %c0_2, %c0_3] : memref<1x4x1x16x16xf32, #tpu.memory_space<vmem>>, vector<1x1x1x16x16xf32>
    %1 = vector.shape_cast %0 : vector<1x1x1x16x16xf32> to vector<1x16x16xf32>
    %c0_4 = arith.constant 0 : index
    %c1 = arith.constant 1 : index
    %c0_5 = arith.constant 0 : index
    %c0_6 = arith.constant 0 : index
    %c0_7 = arith.constant 0 : index
    %2 = vector.load %arg2[%c0_4, %c1, %c0_5, %c0_6, %c0_7] : memref<1x4x1x16x16xf32, #tpu.memory_space<vmem>>, vector<1x1x1x16x16xf32>
    %3 = vector.shape_cast %2 : vector<1x1x1x16x16xf32> to vector<1x16x16xf32>
    %c0_8 = arith.constant 0 : index
    %c2 = arith.constant 2 : index
    %c0_9 = arith.constant 0 : index
    %c0_10 = arith.constant 0 : index
    %c0_11 = arith.constant 0 : index
    %4 = vector.load %arg2[%c0_8, %c2, %c0_9, %c0_10, %c0_11] : memref<1x4x1x16x16xf32, #tpu.memory_space<vmem>>, vector<1x1x1x16x16xf32>
    %5 = vector.shape_cast %4 : vector<1x1x1x16x16xf32> to vector<1x16x16xf32>
    %c0_12 = arith.constant 0 : index
    %c3 = arith.constant 3 : index
    %c0_13 = arith.constant 0 : index
    %c0_14 = arith.constant 0 : index
    %c0_15 = arith.constant 0 : index
    %6 = vector.load %arg2[%c0_12, %c3, %c0_13, %c0_14, %c0_15] : memref<1x4x1x16x16xf32, #tpu.memory_space<vmem>>, vector<1x1x1x16x16xf32>
    %7 = vector.shape_cast %6 : vector<1x1x1x16x16xf32> to vector<1x16x16xf32>
    %8 = arith.addf %1, %7 : vector<1x16x16xf32>
    %cst = arith.constant 5.000000e-01 : f32
    %9 = vector.broadcast %cst : f32 to vector<1x16x16xf32>
    %10 = arith.mulf %8, %9 : vector<1x16x16xf32>
    %11 = arith.subf %1, %7 : vector<1x16x16xf32>
    %cst_16 = arith.constant 5.000000e-01 : f32
    %12 = vector.broadcast %cst_16 : f32 to vector<1x16x16xf32>
    %13 = arith.mulf %11, %12 : vector<1x16x16xf32>
    %14 = arith.addf %3, %5 : vector<1x16x16xf32>
    %cst_17 = arith.constant 5.000000e-01 : f32
    %15 = vector.broadcast %cst_17 : f32 to vector<1x16x16xf32>
    %16 = arith.mulf %14, %15 : vector<1x16x16xf32>
    %17 = arith.subf %3, %5 : vector<1x16x16xf32>
    %cst_18 = arith.constant 5.000000e-01 : f32
    %18 = vector.broadcast %cst_18 : f32 to vector<1x16x16xf32>
    %19 = arith.mulf %17, %18 : vector<1x16x16xf32>
    %20 = arith.subf %10, %16 : vector<1x16x16xf32>
    %21 = arith.addf %13, %19 : vector<1x16x16xf32>
    %22 = arith.subf %13, %19 : vector<1x16x16xf32>
    %23 = arith.addf %10, %16 : vector<1x16x16xf32>
    %24 = vector.shape_cast %20 : vector<1x16x16xf32> to vector<1x16x16x1xf32>
    %25 = vector.shape_cast %21 : vector<1x16x16xf32> to vector<1x16x16x1xf32>
    %26 = tpu.concatenate %24, %25 in 3 : vector<1x16x16x1xf32>, vector<1x16x16x1xf32> -> vector<1x16x16x2xf32>
    %27 = vector.shape_cast %26 : vector<1x16x16x2xf32> to vector<1x16x32xf32>
    %28 = vector.shape_cast %22 : vector<1x16x16xf32> to vector<1x16x16x1xf32>
    %29 = vector.shape_cast %23 : vector<1x16x16xf32> to vector<1x16x16x1xf32>
    %30 = tpu.concatenate %28, %29 in 3 : vector<1x16x16x1xf32>, vector<1x16x16x1xf32> -> vector<1x16x16x2xf32>
    %31 = vector.shape_cast %30 : vector<1x16x16x2xf32> to vector<1x16x32xf32>
    %32 = vector.shape_cast %27 : vector<1x16x32xf32> to vector<1x16x1x32xf32>
    %33 = vector.shape_cast %31 : vector<1x16x32xf32> to vector<1x16x1x32xf32>
    %34 = tpu.concatenate %32, %33 in 2 : vector<1x16x1x32xf32>, vector<1x16x1x32xf32> -> vector<1x16x2x32xf32>
    %35 = vector.shape_cast %34 : vector<1x16x2x32xf32> to vector<1x32x32xf32>
    %c0_19 = arith.constant 0 : index
    %c0_20 = arith.constant 0 : index
    %c0_21 = arith.constant 0 : index
    %c0_22 = arith.constant 0 : index
    %36 = vector.load %arg3[%c0_19, %c0_20, %c0_21, %c0_22] : memref<1x1x32x32xf32, #tpu.memory_space<vmem>>, vector<1x1x32x32xf32>
    %37 = vector.shape_cast %36 : vector<1x1x32x32xf32> to vector<1x32x32xf32>
    %38 = vector.shape_cast %35 : vector<1x32x32xf32> to vector<1x1x32x32xf32>
    tpu.vector_store %arg3[%c0_19, %c0_20, %c0_21, %c0_22], %38 {strides = array<i32>} : memref<1x1x32x32xf32, #tpu.memory_space<vmem>>, vector<1x1x32x32xf32>,
    return
  }
  func.func @transform_0(%arg0: i32, %arg1: i32) -> (i32, i32, i32, i32, i32) {
    %c0_i32 = arith.constant 0 : i32
    %c0_i32_0 = arith.constant 0 : i32
    %c0_i32_1 = arith.constant 0 : i32
    %c0_i32_2 = arith.constant 0 : i32
    return %arg0, %c0_i32, %arg1, %c0_i32_0, %c0_i32_1 : i32, i32, i32, i32, i32
  }
  func.func @transform_1(%arg0: i32, %arg1: i32) -> (i32, i32, i32, i32) {
    %c0_i32 = arith.constant 0 : i32
    %c0_i32_0 = arith.constant 0 : i32
    %c0_i32_1 = arith.constant 0 : i32
    return %arg0, %arg1, %c0_i32, %c0_i32_0 : i32, i32, i32, i32
  }
}

</mosaic_0001>

<llo_original>
// kernel: tpu_custom_call.1
$region0: #{tpu_custom_call.1}
  #allocation0 [shape = 'u32[]', space=smem, size = 0x4, offset = 0x4, fixed_abs, tag = 'smem constant byte address 0x4 - core index']
  #allocation1 [shape = 'u32[144,128]{1,0:T(1,128)}', space=vmem, size = 0x12000, scoped, tag = 'internal scratch']
  %s0 = inlined_call_operand.hbm [shape: f32[2,4,1,16,16], index: 0, kind: input, shape index: {}]
  %s1 = inlined_call_operand.hbm [shape: f32[2,1,32,32], index: 1, kind: output, shape index: {}]
  %s2 = sld [smem:[#allocation0]]
  $region41: #{tpu_custom_call.1} parent=0
    _
  %s4 = ssub.s32 1, %s2
  %s5 = scalar_select 0, %s4, %s2
  $region1: #{tpu_custom_call.1} parent=0
    #allocation2 [shape = 'u8[65536]{0}', space=vmem, size = 0x10000, scoped, tag = 'input window, operand 0']
    #allocation3 [shape = 's32[2]{0}', space=sflag, size = 0x8, scoped, tag = 'scoped memory for tpu_custom_call.1']
    #allocation4 [shape = 's32[2]{0}', space=sflag, size = 0x8, scoped, tag = 'scoped memory for tpu_custom_call.1']
    #allocation5 [shape = 'u8[32768]{0}', space=vmem, size = 0x8000, scoped, tag = 'output window, operand 0']
    %6 = vsyncpa [#allocation3], 0
    %s7 = scalar_lea.sflag [#allocation3], 1
    %8 = vsyncpa %s7, 0
    %9 = vsyncpa [#allocation4], 0
    %s10 = scalar_lea.sflag [#allocation4], 1
    %11 = vsyncpa %s10, 0
    loop: start=0, step=1, limit=4
    $region2: #{tpu_custom_call.1} parent=1 // loop_pre_header
      _
    $region3: #{tpu_custom_call.1} parent=1 // loop_header
      %s13 = sphi 0, %s17
      %p14 = scmp.ge.s32.totalorder %s13, 4
      %s20 = sphi 0, %s32
      %s21 = sphi 0, %s28
      %s22 = sphi 0, %s20
      %s23 = sphi 0, %s21
      %s24 = sphi 0, %s22
      %s25 = sphi 0, %s23
      %s37 = sphi 0, %s39
      %s40 = sphi 0, %s37
      %s41 = sphi 0, %s40
      %s57 = sphi 0, %s41
      %s65 = sphi 0, %s67
      %s68 = sphi 0, %s65
      %s69 = sphi 0, %s68
      %s85 = sphi 0, %s69
    $region4: #{tpu_custom_call.1} parent=1 // loop_header_branch
      %16 = sbr.rel (%p14) target = $region8
    $region5: #{tpu_custom_call.1} parent=1 // loop_body
      %s18 = ssub.s32 %s13, 1
      %s19 = ssub.s32 %s13, 2
      %s26 = sadd.s32 1, %s21
      %p27 = scmp.ge.s32.totalorder %s26, 1
      %s28 = scalar_select %p27, 0, %s26
      %s29 = sadd.s32 1, %s20
      %s30 = scalar_select %p27, %s29, %s20
      %p31 = scmp.ge.s32.totalorder %s30, 2
      %s32 = scalar_select %p31, 0, %s30
      %s33 = ssub.s32 %s20, %s32
      %s34 = ssub.s32 %s21, %s28
      %s35 = sor.u32 %s33, %s34
      %p36 = scmp.eq.s32.totalorder %s35, 0
      %s38 = sadd.s32 %s37, 1
      %s39 = scalar_select %p36, %s37, %s38
      %p42 = pneg %p36
      %p43 = scmp.eq.s32.totalorder %s13, 1
      %p44 = por %p42, %p43
      %p45 = scmp.ne.s32.totalorder %s37, %s40
      %p46 = scmp.eq.s32.totalorder %s13, 0
      %p47 = por %p45, %p46
      %p48 = scmp.ne.s32.totalorder %s37, %s40
      %p49 = scmp.eq.s32.totalorder %s18, 1
      %p50 = por %p48, %p49
      %p51 = scmp.ne.s32.totalorder %s40, %s41
      %p52 = scmp.eq.s32.totalorder %s18, 0
      %p53 = por %p51, %p52
      %p54 = scmp.ne.s32.totalorder %s40, %s41
      %p55 = scmp.eq.s32.totalorder %s19, 1
      %p56 = por %p54, %p55
      %p58 = scmp.ne.s32.totalorder %s41, %s57
      %p59 = scmp.eq.s32.totalorder %s19, 0
      %p60 = por %p58, %p59
      %s61 = ssub.s32 %s20, %s32
      %s62 = ssub.s32 %s21, %s28
      %s63 = sor.u32 %s61, %s62
      %p64 = scmp.eq.s32.totalorder %s63, 0
      %s66 = sadd.s32 %s65, 1
      %s67 = scalar_select %p64, %s65, %s66
      %p70 = pneg %p64
      %p71 = scmp.eq.s32.totalorder %s13, 1
      %p72 = por %p70, %p71
      %p73 = scmp.ne.s32.totalorder %s65, %s68
      %p74 = scmp.eq.s32.totalorder %s13, 0
      %p75 = por %p73, %p74
      %p76 = scmp.ne.s32.totalorder %s65, %s68
      %p77 = scmp.eq.s32.totalorder %s18, 1
      %p78 = por %p76, %p77
      %p79 = scmp.ne.s32.totalorder %s68, %s69
      %p80 = scmp.eq.s32.totalorder %s18, 0
      %p81 = por %p79, %p80
      %p82 = scmp.ne.s32.totalorder %s68, %s69
      %p83 = scmp.eq.s32.totalorder %s19, 1
      %p84 = por %p82, %p83
      %p86 = scmp.ne.s32.totalorder %s69, %s85
      %p87 = scmp.eq.s32.totalorder %s19, 0
      %p88 = por %p86, %p87
      %p89 = scmp.le.s32.totalorder 1, %s13
      %p90 = scmp.lt.s32.totalorder %s13, 3
      %p91 = pnand %p89, %p90
      %p92 = pneg %p91
      // Predicated region
      $region9: #{tpu_custom_call.1} parent=5 // pred_check
        _
      $region10: #{tpu_custom_call.1} parent=5 // pred_check_branch
        %94 = sbr.rel (%p91) target = $region12
      $region11: #{tpu_custom_call.1} parent=5 // pred_region
        %s95 = ssub.s32 %s13, 1
      $region12: #{tpu_custom_call.1} parent=5 // pred_fallthru
        _
      %p96 = scmp.lt.s32.totalorder %s13, 2
      // Predicated region
      $region13: #{tpu_custom_call.1} parent=5 // pred_check
        %p97 = pneg %p96
      $region14: #{tpu_custom_call.1} parent=5 // pred_check_branch
        %99 = sbr.rel (%p97) target = $region16
      $region15: #{tpu_custom_call.1} parent=5 // pred_region
        // Predicated region
        $region17: #{tpu_custom_call.1} parent=15 // pred_check
          %p100 = pneg %p47
        $region18: #{tpu_custom_call.1} parent=15 // pred_check_branch
          %102 = sbr.rel (%p100) target = $region20
        $region19: #{tpu_custom_call.1} parent=15 // pred_region
          %s103 = sand.u32 %s37, 1
          %s104 = scalar_lea.sflag [#allocation3], %s103
          %s105 = sand.u32 %s37, 1
          %s106 = smul.addr %s105, 64
          %s107 = scalar_lea.vmem [#allocation2], %s106
          %s109 = ssub.s32 1024, 1024
          %110 = vsyncadd %s104, %s109
          %s111 = smul.addr %s21, 2
          %s112 = smul.addr %s20, 8
          %s113 = sadd.s32 %s111, %s112
          %s114 = smul.addr %s113, 128
          %s115 = scalar_lea.hbm %s0, %s114
          %s116 = sshll.u32 %s107, 4
          %s117 = int_to_ptr.vmem [resolvable:$true] %s116
          %122 = dma.hbm_to_vmem [thread:$0]  %s115, 1024, %s117, %s104, 128, 128, 8
        $region20: #{tpu_custom_call.1} parent=15 // pred_fallthru
          _
      $region16: #{tpu_custom_call.1} parent=5 // pred_fallthru
        _
      %p123 = scmp.le.s32.totalorder 1, %s13
      %p124 = scmp.lt.s32.totalorder %s13, 3
      %p125 = pnand %p123, %p124
      %p126 = pneg %p125
      // Predicated region
      $region21: #{tpu_custom_call.1} parent=5 // pred_check
        _
      $region22: #{tpu_custom_call.1} parent=5 // pred_check_branch
        %128 = sbr.rel (%p125) target = $region24
      $region23: #{tpu_custom_call.1} parent=5 // pred_region
        %s129 = ssub.s32 %s13, 1
        %s130 = sand.u32 %s40, 1
        %s131 = scalar_lea.sflag [#allocation3], %s130
        %s132 = sand.u32 %s40, 1
        %s133 = smul.addr %s132, 64
        %s134 = scalar_lea.vmem [#allocation2], %s133
        // Predicated region
        $region25: #{tpu_custom_call.1} parent=23 // pred_check
          %p135 = pneg %p53
        $region26: #{tpu_custom_call.1} parent=23 // pred_check_branch
          %137 = sbr.rel (%p135) target = $region28
        $region27: #{tpu_custom_call.1} parent=23 // pred_region
          %138 = dma.done %s131, 1024
        $region28: #{tpu_custom_call.1} parent=23 // pred_fallthru
          _
        %s139 = sand.u32 %s40, 1
        %s140 = scalar_lea.sflag [#allocation3], %s139
        %s141 = sand.u32 %s40, 1
        %s142 = smul.addr %s141, 64
        %s143 = scalar_lea.vmem [#allocation2], %s142
        %p144 = pneg %p53
        %p145 = pneg %p50
        %p146 = pneg %p81
        %p147 = pneg %p78
        %s148 = sand.u32 %s68, 1
        %s149 = scalar_lea.sflag [#allocation4], %s148
        %s150 = sand.u32 %s68, 1
        %s151 = smul.addr %s150, 32
        %s152 = scalar_lea.vmem [#allocation5], %s151
        %v153 = vld [vmem:[%s134] sm:$0xff]
        %v154 = vld [vmem:[%s134 + $0x8] sm:$0xff]
        %s155 = scalar_lea.vmem %s134, 16 [#allocation2]
        %v156 = vld [vmem:[%s155] sm:$0xff]
        %v157 = vld [vmem:[%s155 + $0x8] sm:$0xff]
        %s158 = scalar_lea.vmem %s134, 32 [#allocation2]
        %v159 = vld [vmem:[%s158] sm:$0xff]
        %v160 = vld [vmem:[%s158 + $0x8] sm:$0xff]
        %s161 = scalar_lea.vmem %s134, 48 [#allocation2]
        %v162 = vld [vmem:[%s161] sm:$0xff]
        %v163 = vld [vmem:[%s161 + $0x8] sm:$0xff]
        %v164 = vadd.f32 %v153, %v162
        %v165 = vadd.f32 %v154, %v163
        %v166 = vmul.f32 %v164, 0.5
        %v167 = vmul.f32 %v165, 0.5
        %v168 = vsub.f32 %v153, %v162
        %v169 = vsub.f32 %v154, %v163
        %v170 = vmul.f32 %v168, 0.5
        %v171 = vmul.f32 %v169, 0.5
        %v172 = vadd.f32 %v156, %v159
        %v173 = vadd.f32 %v157, %v160
        %v174 = vmul.f32 %v172, 0.5
        %v175 = vmul.f32 %v173, 0.5
        %v176 = vsub.f32 %v156, %v159
        %v177 = vsub.f32 %v157, %v160
        %v178 = vmul.f32 %v176, 0.5
        %v179 = vmul.f32 %v177, 0.5
        %v180 = vsub.f32 %v166, %v174
        %v181 = vsub.f32 %v167, %v175
        %v182 = vadd.f32 %v170, %v178
        %v183 = vadd.f32 %v171, %v179
        %v184 = vsub.f32 %v170, %v178
        %v185 = vsub.f32 %v171, %v179
        %v186 = vadd.f32 %v166, %v174
        %v187 = vadd.f32 %v167, %v175
        %v188 = vlaneseq
        %v189 = vshrl.u32 %v188, 7
        %v190 = vsub.s32 0, %v189
        %v191 = vrot.slane %v180, %v190
        %193 = vbcast.lane.b32.xlu0 %v191, 256
        %v194 = vpop.permute.xlu0 %193
        %s196 = sor.u32 256, 8
        %197 = vbcast.lane.b32.xlu0 %v191, %s196
        %v198 = vpop.permute.xlu0 %197
        %v199 = vlaneseq
        %v200 = vshrl.u32 %v199, 7
        %v201 = vsub.s32 1, %v200
        %v202 = vrot.slane %v180, %v201
        %204 = vbcast.lane.b32.xlu0 %v202, 256
        %v205 = vpop.permute.xlu0 %204
        %s207 = sor.u32 256, 8
        %208 = vbcast.lane.b32.xlu0 %v202, %s207
        %v209 = vpop.permute.xlu0 %208
        %v210 = vlaneseq
        %v211 = vshrl.u32 %v210, 7
        %v212 = vsub.s32 2, %v211
        %v213 = vrot.slane %v180, %v212
        %215 = vbcast.lane.b32.xlu0 %v213, 256
        %v216 = vpop.permute.xlu0 %215
        %s218 = sor.u32 256, 8
        %219 = vbcast.lane.b32.xlu0 %v213, %s218
        %v220 = vpop.permute.xlu0 %219
        %v221 = vlaneseq
        %v222 = vshrl.u32 %v221, 7
        %v223 = vsub.s32 3, %v222
        %v224 = vrot.slane %v180, %v223
        %226 = vbcast.lane.b32.xlu0 %v224, 256
        %v227 = vpop.permute.xlu0 %226
        %s229 = sor.u32 256, 8
        %230 = vbcast.lane.b32.xlu0 %v224, %s229
        %v231 = vpop.permute.xlu0 %230
        %v232 = vlaneseq
        %v233 = vshrl.u32 %v232, 7
        %v234 = vsub.s32 4, %v233
        %v235 = vrot.slane %v180, %v234
        %237 = vbcast.lane.b32.xlu0 %v235, 256
        %v238 = vpop.permute.xlu0 %237
        %s240 = sor.u32 256, 8
        %241 = vbcast.lane.b32.xlu0 %v235, %s240
        %v242 = vpop.permute.xlu0 %241
        %v243 = vlaneseq
        %v244 = vshrl.u32 %v243, 7
        %v245 = vsub.s32 5, %v244
        %v246 = vrot.slane %v180, %v245
        %248 = vbcast.lane.b32.xlu0 %v246, 256
        %v249 = vpop.permute.xlu0 %248
        %s251 = sor.u32 256, 8
        %252 = vbcast.lane.b32.xlu0 %v246, %s251
        %v253 = vpop.permute.xlu0 %252
        %v254 = vlaneseq
        %v255 = vshrl.u32 %v254, 7
        %v256 = vsub.s32 6, %v255
        %v257 = vrot.slane %v180, %v256
        %259 = vbcast.lane.b32.xlu0 %v257, 256
        %v260 = vpop.permute.xlu0 %259
        %s262 = sor.u32 256, 8
        %263 = vbcast.lane.b32.xlu0 %v257, %s262
        %v264 = vpop.permute.xlu0 %263
        %v265 = vlaneseq
        %v266 = vshrl.u32 %v265, 7
        %v267 = vsub.s32 7, %v266
        %v268 = vrot.slane %v180, %v267
        %270 = vbcast.lane.b32.xlu0 %v268, 256
        %v271 = vpop.permute.xlu0 %270
        %s273 = sor.u32 256, 8
        %274 = vbcast.lane.b32.xlu0 %v268, %s273
        %v275 = vpop.permute.xlu0 %274
        %v276 = vlaneseq
        %v277 = vshrl.u32 %v276, 7
        %v278 = vsub.s32 0, %v277
        %v279 = vrot.slane %v181, %v278
        %281 = vbcast.lane.b32.xlu0 %v279, 256
        %v282 = vpop.permute.xlu0 %281
        %s284 = sor.u32 256, 8
        %285 = vbcast.lane.b32.xlu0 %v279, %s284
        %v286 = vpop.permute.xlu0 %285
        %v287 = vlaneseq
        %v288 = vshrl.u32 %v287, 7
        %v289 = vsub.s32 1, %v288
        %v290 = vrot.slane %v181, %v289
        %292 = vbcast.lane.b32.xlu0 %v290, 256
        %v293 = vpop.permute.xlu0 %292
        %s295 = sor.u32 256, 8
        %296 = vbcast.lane.b32.xlu0 %v290, %s295
        %v297 = vpop.permute.xlu0 %296
        %v298 = vlaneseq
        %v299 = vshrl.u32 %v298, 7
        %v300 = vsub.s32 2, %v299
        %v301 = vrot.slane %v181, %v300
        %303 = vbcast.lane.b32.xlu0 %v301, 256
        %v304 = vpop.permute.xlu0 %303
        %s306 = sor.u32 256, 8
        %307 = vbcast.lane.b32.xlu0 %v301, %s306
        %v308 = vpop.permute.xlu0 %307
        %v309 = vlaneseq
        %v310 = vshrl.u32 %v309, 7
        %v311 = vsub.s32 3, %v310
        %v312 = vrot.slane %v181, %v311
        %314 = vbcast.lane.b32.xlu0 %v312, 256
        %v315 = vpop.permute.xlu0 %314
        %s317 = sor.u32 256, 8
        %318 = vbcast.lane.b32.xlu0 %v312, %s317
        %v319 = vpop.permute.xlu0 %318
        %v320 = vlaneseq
        %v321 = vshrl.u32 %v320, 7
        %v322 = vsub.s32 4, %v321
        %v323 = vrot.slane %v181, %v322
        %325 = vbcast.lane.b32.xlu0 %v323, 256
        %v326 = vpop.permute.xlu0 %325
        %s328 = sor.u32 256, 8
        %329 = vbcast.lane.b32.xlu0 %v323, %s328
        %v330 = vpop.permute.xlu0 %329
        %v331 = vlaneseq
        %v332 = vshrl.u32 %v331, 7
        %v333 = vsub.s32 5, %v332
        %v334 = vrot.slane %v181, %v333
        %336 = vbcast.lane.b32.xlu0 %v334, 256
        %v337 = vpop.permute.xlu0 %336
        %s339 = sor.u32 256, 8
        %340 = vbcast.lane.b32.xlu0 %v334, %s339
        %v341 = vpop.permute.xlu0 %340
        %v342 = vlaneseq
        %v343 = vshrl.u32 %v342, 7
        %v344 = vsub.s32 6, %v343
        %v345 = vrot.slane %v181, %v344
        %347 = vbcast.lane.b32.xlu0 %v345, 256
        %v348 = vpop.permute.xlu0 %347
        %s350 = sor.u32 256, 8
        %351 = vbcast.lane.b32.xlu0 %v345, %s350
        %v352 = vpop.permute.xlu0 %351
        %v353 = vlaneseq
        %v354 = vshrl.u32 %v353, 7
        %v355 = vsub.s32 7, %v354
        %v356 = vrot.slane %v181, %v355
        %358 = vbcast.lane.b32.xlu0 %v356, 256
        %v359 = vpop.permute.xlu0 %358
        %s361 = sor.u32 256, 8
        %362 = vbcast.lane.b32.xlu0 %v356, %s361
        %v363 = vpop.permute.xlu0 %362
        %v364 = vlaneseq
        %v365 = vshrl.u32 %v364, 7
        %v366 = vsub.s32 0, %v365
        %v367 = vrot.slane %v182, %v366
        %369 = vbcast.lane.b32.xlu0 %v367, 256
        %v370 = vpop.permute.xlu0 %369
        %s372 = sor.u32 256, 8
        %373 = vbcast.lane.b32.xlu0 %v367, %s372
        %v374 = vpop.permute.xlu0 %373
        %v375 = vlaneseq
        %v376 = vshrl.u32 %v375, 7
        %v377 = vsub.s32 1, %v376
        %v378 = vrot.slane %v182, %v377
        %380 = vbcast.lane.b32.xlu0 %v378, 256
        %v381 = vpop.permute.xlu0 %380
        %s383 = sor.u32 256, 8
        %384 = vbcast.lane.b32.xlu0 %v378, %s383
        %v385 = vpop.permute.xlu0 %384
        %v386 = vlaneseq
        %v387 = vshrl.u32 %v386, 7
        %v388 = vsub.s32 2, %v387
        %v389 = vrot.slane %v182, %v388
        %391 = vbcast.lane.b32.xlu0 %v389, 256
        %v392 = vpop.permute.xlu0 %391
        %s394 = sor.u32 256, 8
        %395 = vbcast.lane.b32.xlu0 %v389, %s394
        %v396 = vpop.permute.xlu0 %395
        %v397 = vlaneseq
        %v398 = vshrl.u32 %v397, 7
        %v399 = vsub.s32 3, %v398
        %v400 = vrot.slane %v182, %v399
        %402 = vbcast.lane.b32.xlu0 %v400, 256
        %v403 = vpop.permute.xlu0 %402
        %s405 = sor.u32 256, 8
        %406 = vbcast.lane.b32.xlu0 %v400, %s405
        %v407 = vpop.permute.xlu0 %406
        %v408 = vlaneseq
        %v409 = vshrl.u32 %v408, 7
        %v410 = vsub.s32 4, %v409
        %v411 = vrot.slane %v182, %v410
        %413 = vbcast.lane.b32.xlu0 %v411, 256
        %v414 = vpop.permute.xlu0 %413
        %s416 = sor.u32 256, 8
        %417 = vbcast.lane.b32.xlu0 %v411, %s416
        %v418 = vpop.permute.xlu0 %417
        %v419 = vlaneseq
        %v420 = vshrl.u32 %v419, 7
        %v421 = vsub.s32 5, %v420
        %v422 = vrot.slane %v182, %v421
        %424 = vbcast.lane.b32.xlu0 %v422, 256
        %v425 = vpop.permute.xlu0 %424
        %s427 = sor.u32 256, 8
        %428 = vbcast.lane.b32.xlu0 %v422, %s427
        %v429 = vpop.permute.xlu0 %428
        %v430 = vlaneseq
        %v431 = vshrl.u32 %v430, 7
        %v432 = vsub.s32 6, %v431
        %v433 = vrot.slane %v182, %v432
        %435 = vbcast.lane.b32.xlu0 %v433, 256
        %v436 = vpop.permute.xlu0 %435
        %s438 = sor.u32 256, 8
        %439 = vbcast.lane.b32.xlu0 %v433, %s438
        %v440 = vpop.permute.xlu0 %439
        %v441 = vlaneseq
        %v442 = vshrl.u32 %v441, 7
        %v443 = vsub.s32 7, %v442
        %v444 = vrot.slane %v182, %v443
        %446 = vbcast.lane.b32.xlu0 %v444, 256
        %v447 = vpop.permute.xlu0 %446
        %s449 = sor.u32 256, 8
        %450 = vbcast.lane.b32.xlu0 %v444, %s449
        %v451 = vpop.permute.xlu0 %450
        %v452 = vlaneseq
        %v453 = vshrl.u32 %v452, 7
        %v454 = vsub.s32 0, %v453
        %v455 = vrot.slane %v183, %v454
        %457 = vbcast.lane.b32.xlu0 %v455, 256
        %v458 = vpop.permute.xlu0 %457
        %s460 = sor.u32 256, 8
        %461 = vbcast.lane.b32.xlu0 %v455, %s460
        %v462 = vpop.permute.xlu0 %461
        %v463 = vlaneseq
        %v464 = vshrl.u32 %v463, 7
        %v465 = vsub.s32 1, %v464
        %v466 = vrot.slane %v183, %v465
        %468 = vbcast.lane.b32.xlu0 %v466, 256
        %v469 = vpop.permute.xlu0 %468
        %s471 = sor.u32 256, 8
        %472 = vbcast.lane.b32.xlu0 %v466, %s471
        %v473 = vpop.permute.xlu0 %472
        %v474 = vlaneseq
        %v475 = vshrl.u32 %v474, 7
        %v476 = vsub.s32 2, %v475
        %v477 = vrot.slane %v183, %v476
        %479 = vbcast.lane.b32.xlu0 %v477, 256
        %v480 = vpop.permute.xlu0 %479
        %s482 = sor.u32 256, 8
        %483 = vbcast.lane.b32.xlu0 %v477, %s482
        %v484 = vpop.permute.xlu0 %483
        %v485 = vlaneseq
        %v486 = vshrl.u32 %v485, 7
        %v487 = vsub.s32 3, %v486
        %v488 = vrot.slane %v183, %v487
        %490 = vbcast.lane.b32.xlu0 %v488, 256
        %v491 = vpop.permute.xlu0 %490
        %s493 = sor.u32 256, 8
        %494 = vbcast.lane.b32.xlu0 %v488, %s493
        %v495 = vpop.permute.xlu0 %494
        %v496 = vlaneseq
        %v497 = vshrl.u32 %v496, 7
        %v498 = vsub.s32 4, %v497
        %v499 = vrot.slane %v183, %v498
        %501 = vbcast.lane.b32.xlu0 %v499, 256
        %v502 = vpop.permute.xlu0 %501
        %s504 = sor.u32 256, 8
        %505 = vbcast.lane.b32.xlu0 %v499, %s504
        %v506 = vpop.permute.xlu0 %505
        %v507 = vlaneseq
        %v508 = vshrl.u32 %v507, 7
        %v509 = vsub.s32 5, %v508
        %v510 = vrot.slane %v183, %v509
        %512 = vbcast.lane.b32.xlu0 %v510, 256
        %v513 = vpop.permute.xlu0 %512
        %s515 = sor.u32 256, 8
        %516 = vbcast.lane.b32.xlu0 %v510, %s515
        %v517 = vpop.permute.xlu0 %516
        %v518 = vlaneseq
        %v519 = vshrl.u32 %v518, 7
        %v520 = vsub.s32 6, %v519
        %v521 = vrot.slane %v183, %v520
        %523 = vbcast.lane.b32.xlu0 %v521, 256
        %v524 = vpop.permute.xlu0 %523
        %s526 = sor.u32 256, 8
        %527 = vbcast.lane.b32.xlu0 %v521, %s526
        %v528 = vpop.permute.xlu0 %527
        %v529 = vlaneseq
        %v530 = vshrl.u32 %v529, 7
        %v531 = vsub.s32 7, %v530
        %v532 = vrot.slane %v183, %v531
        %534 = vbcast.lane.b32.xlu0 %v532, 256
        %v535 = vpop.permute.xlu0 %534
        %s537 = sor.u32 256, 8
        %538 = vbcast.lane.b32.xlu0 %v532, %s537
        %v539 = vpop.permute.xlu0 %538
        %vm540 = vcmask 7168
        %v541 = vsel %vm540, %v194, %v370
        %v542 = vsel %vm540, %v198, %v374
        %v543 = vsel %vm540, %v205, %v381
        %v544 = vsel %vm540, %v209, %v385
        %v545 = vsel %vm540, %v216, %v392
        %v546 = vsel %vm540, %v220, %v396
        %v547 = vsel %vm540, %v227, %v403
        %v548 = vsel %vm540, %v231, %v407
        %v549 = vsel %vm540, %v238, %v414
        %v550 = vsel %vm540, %v242, %v418
        %v551 = vsel %vm540, %v249, %v425
        %v552 = vsel %vm540, %v253, %v429
        %v553 = vsel %vm540, %v260, %v436
        %v554 = vsel %vm540, %v264, %v440
        %v555 = vsel %vm540, %v271, %v447
        %v556 = vsel %vm540, %v275, %v451
        %v557 = vsel %vm540, %v282, %v458
        %v558 = vsel %vm540, %v286, %v462
        %v559 = vsel %vm540, %v293, %v469
        %v560 = vsel %vm540, %v297, %v473
        %v561 = vsel %vm540, %v304, %v480
        %v562 = vsel %vm540, %v308, %v484
        %v563 = vsel %vm540, %v315, %v491
        %v564 = vsel %vm540, %v319, %v495
        %v565 = vsel %vm540, %v326, %v502
        %v566 = vsel %vm540, %v330, %v506
        %v567 = vsel %vm540, %v337, %v513
        %v568 = vsel %vm540, %v341, %v517
        %v569 = vsel %vm540, %v348, %v524
        %v570 = vsel %vm540, %v352, %v528
        %v571 = vsel %vm540, %v359, %v535
        %v572 = vsel %vm540, %v363, %v539
        %v573 = vlaneseq
        %v574 = vshrl.u32 %v573, 7
        %v575 = vsub.s32 0, %v574
        %v576 = vrot.slane %v184, %v575
        %578 = vbcast.lane.b32.xlu0 %v576, 256
        %v579 = vpop.permute.xlu0 %578
        %s581 = sor.u32 256, 8
        %582 = vbcast.lane.b32.xlu0 %v576, %s581
        %v583 = vpop.permute.xlu0 %582
        %v584 = vlaneseq
        %v585 = vshrl.u32 %v584, 7
        %v586 = vsub.s32 1, %v585
        %v587 = vrot.slane %v184, %v586
        %589 = vbcast.lane.b32.xlu0 %v587, 256
        %v590 = vpop.permute.xlu0 %589
        %s592 = sor.u32 256, 8
        %593 = vbcast.lane.b32.xlu0 %v587, %s592
        %v594 = vpop.permute.xlu0 %593
        %v595 = vlaneseq
        %v596 = vshrl.u32 %v595, 7
        %v597 = vsub.s32 2, %v596
        %v598 = vrot.slane %v184, %v597
        %600 = vbcast.lane.b32.xlu0 %v598, 256
        %v601 = vpop.permute.xlu0 %600
        %s603 = sor.u32 256, 8
        %604 = vbcast.lane.b32.xlu0 %v598, %s603
        %v605 = vpop.permute.xlu0 %604
        %v606 = vlaneseq
        %v607 = vshrl.u32 %v606, 7
        %v608 = vsub.s32 3, %v607
        %v609 = vrot.slane %v184, %v608
        %611 = vbcast.lane.b32.xlu0 %v609, 256
        %v612 = vpop.permute.xlu0 %611
        %s614 = sor.u32 256, 8
        %615 = vbcast.lane.b32.xlu0 %v609, %s614
        %v616 = vpop.permute.xlu0 %615
        %v617 = vlaneseq
        %v618 = vshrl.u32 %v617, 7
        %v619 = vsub.s32 4, %v618
        %v620 = vrot.slane %v184, %v619
        %622 = vbcast.lane.b32.xlu0 %v620, 256
        %v623 = vpop.permute.xlu0 %622
        %s625 = sor.u32 256, 8
        %626 = vbcast.lane.b32.xlu0 %v620, %s625
        %v627 = vpop.permute.xlu0 %626
        %v628 = vlaneseq
        %v629 = vshrl.u32 %v628, 7
        %v630 = vsub.s32 5, %v629
        %v631 = vrot.slane %v184, %v630
        %633 = vbcast.lane.b32.xlu0 %v631, 256
        %v634 = vpop.permute.xlu0 %633
        %s636 = sor.u32 256, 8
        %637 = vbcast.lane.b32.xlu0 %v631, %s636
        %v638 = vpop.permute.xlu0 %637
        %v639 = vlaneseq
        %v640 = vshrl.u32 %v639, 7
        %v641 = vsub.s32 6, %v640
        %v642 = vrot.slane %v184, %v641
        %644 = vbcast.lane.b32.xlu0 %v642, 256
        %v645 = vpop.permute.xlu0 %644
        %s647 = sor.u32 256, 8
        %648 = vbcast.lane.b32.xlu0 %v642, %s647
        %v649 = vpop.permute.xlu0 %648
        %v650 = vlaneseq
        %v651 = vshrl.u32 %v650, 7
        %v652 = vsub.s32 7, %v651
        %v653 = vrot.slane %v184, %v652
        %655 = vbcast.lane.b32.xlu0 %v653, 256
        %v656 = vpop.permute.xlu0 %655
        %s658 = sor.u32 256, 8
        %659 = vbcast.lane.b32.xlu0 %v653, %s658
        %v660 = vpop.permute.xlu0 %659
        %v661 = vlaneseq
        %v662 = vshrl.u32 %v661, 7
        %v663 = vsub.s32 0, %v662
        %v664 = vrot.slane %v185, %v663
        %666 = vbcast.lane.b32.xlu0 %v664, 256
        %v667 = vpop.permute.xlu0 %666
        %s669 = sor.u32 256, 8
        %670 = vbcast.lane.b32.xlu0 %v664, %s669
        %v671 = vpop.permute.xlu0 %670
        %v672 = vlaneseq
        %v673 = vshrl.u32 %v672, 7
        %v674 = vsub.s32 1, %v673
        %v675 = vrot.slane %v185, %v674
        %677 = vbcast.lane.b32.xlu0 %v675, 256
        %v678 = vpop.permute.xlu0 %677
        %s680 = sor.u32 256, 8
        %681 = vbcast.lane.b32.xlu0 %v675, %s680
        %v682 = vpop.permute.xlu0 %681
        %v683 = vlaneseq
        %v684 = vshrl.u32 %v683, 7
        %v685 = vsub.s32 2, %v684
        %v686 = vrot.slane %v185, %v685
        %688 = vbcast.lane.b32.xlu0 %v686, 256
        %v689 = vpop.permute.xlu0 %688
        %s691 = sor.u32 256, 8
        %692 = vbcast.lane.b32.xlu0 %v686, %s691
        %v693 = vpop.permute.xlu0 %692
        %v694 = vlaneseq
        %v695 = vshrl.u32 %v694, 7
        %v696 = vsub.s32 3, %v695
        %v697 = vrot.slane %v185, %v696
        %699 = vbcast.lane.b32.xlu0 %v697, 256
        %v700 = vpop.permute.xlu0 %699
        %s702 = sor.u32 256, 8
        %703 = vbcast.lane.b32.xlu0 %v697, %s702
        %v704 = vpop.permute.xlu0 %703
        %v705 = vlaneseq
        %v706 = vshrl.u32 %v705, 7
        %v707 = vsub.s32 4, %v706
        %v708 = vrot.slane %v185, %v707
        %710 = vbcast.lane.b32.xlu0 %v708, 256
        %v711 = vpop.permute.xlu0 %710
        %s713 = sor.u32 256, 8
        %714 = vbcast.lane.b32.xlu0 %v708, %s713
        %v715 = vpop.permute.xlu0 %714
        %v716 = vlaneseq
        %v717 = vshrl.u32 %v716, 7
        %v718 = vsub.s32 5, %v717
        %v719 = vrot.slane %v185, %v718
        %721 = vbcast.lane.b32.xlu0 %v719, 256
        %v722 = vpop.permute.xlu0 %721
        %s724 = sor.u32 256, 8
        %725 = vbcast.lane.b32.xlu0 %v719, %s724
        %v726 = vpop.permute.xlu0 %725
        %v727 = vlaneseq
        %v728 = vshrl.u32 %v727, 7
        %v729 = vsub.s32 6, %v728
        %v730 = vrot.slane %v185, %v729
        %732 = vbcast.lane.b32.xlu0 %v730, 256
        %v733 = vpop.permute.xlu0 %732
        %s735 = sor.u32 256, 8
        %736 = vbcast.lane.b32.xlu0 %v730, %s735
        %v737 = vpop.permute.xlu0 %736
        %v738 = vlaneseq
        %v739 = vshrl.u32 %v738, 7
        %v740 = vsub.s32 7, %v739
        %v741 = vrot.slane %v185, %v740
        %743 = vbcast.lane.b32.xlu0 %v741, 256
        %v744 = vpop.permute.xlu0 %743
        %s746 = sor.u32 256, 8
        %747 = vbcast.lane.b32.xlu0 %v741, %s746
        %v748 = vpop.permute.xlu0 %747
        %v749 = vlaneseq
        %v750 = vshrl.u32 %v749, 7
        %v751 = vsub.s32 0, %v750
        %v752 = vrot.slane %v186, %v751
        %754 = vbcast.lane.b32.xlu0 %v752, 256
        %v755 = vpop.permute.xlu0 %754
        %s757 = sor.u32 256, 8
        %758 = vbcast.lane.b32.xlu0 %v752, %s757
        %v759 = vpop.permute.xlu0 %758
        %v760 = vlaneseq
        %v761 = vshrl.u32 %v760, 7
        %v762 = vsub.s32 1, %v761
        %v763 = vrot.slane %v186, %v762
        %765 = vbcast.lane.b32.xlu0 %v763, 256
        %v766 = vpop.permute.xlu0 %765
        %s768 = sor.u32 256, 8
        %769 = vbcast.lane.b32.xlu0 %v763, %s768
        %v770 = vpop.permute.xlu0 %769
        %v771 = vlaneseq
        %v772 = vshrl.u32 %v771, 7
        %v773 = vsub.s32 2, %v772
        %v774 = vrot.slane %v186, %v773
        %776 = vbcast.lane.b32.xlu0 %v774, 256
        %v777 = vpop.permute.xlu0 %776
        %s779 = sor.u32 256, 8
        %780 = vbcast.lane.b32.xlu0 %v774, %s779
        %v781 = vpop.permute.xlu0 %780
        %v782 = vlaneseq
        %v783 = vshrl.u32 %v782, 7
        %v784 = vsub.s32 3, %v783
        %v785 = vrot.slane %v186, %v784
        %787 = vbcast.lane.b32.xlu0 %v785, 256
        %v788 = vpop.permute.xlu0 %787
        %s790 = sor.u32 256, 8
        %791 = vbcast.lane.b32.xlu0 %v785, %s790
        %v792 = vpop.permute.xlu0 %791
        %v793 = vlaneseq
        %v794 = vshrl.u32 %v793, 7
        %v795 = vsub.s32 4, %v794
        %v796 = vrot.slane %v186, %v795
        %798 = vbcast.lane.b32.xlu0 %v796, 256
        %v799 = vpop.permute.xlu0 %798
        %s801 = sor.u32 256, 8
        %802 = vbcast.lane.b32.xlu0 %v796, %s801
        %v803 = vpop.permute.xlu0 %802
        %v804 = vlaneseq
        %v805 = vshrl.u32 %v804, 7
        %v806 = vsub.s32 5, %v805
        %v807 = vrot.slane %v186, %v806
        %809 = vbcast.lane.b32.xlu0 %v807, 256
        %v810 = vpop.permute.xlu0 %809
        %s812 = sor.u32 256, 8
        %813 = vbcast.lane.b32.xlu0 %v807, %s812
        %v814 = vpop.permute.xlu0 %813
        %v815 = vlaneseq
        %v816 = vshrl.u32 %v815, 7
        %v817 = vsub.s32 6, %v816
        %v818 = vrot.slane %v186, %v817
        %820 = vbcast.lane.b32.xlu0 %v818, 256
        %v821 = vpop.permute.xlu0 %820
        %s823 = sor.u32 256, 8
        %824 = vbcast.lane.b32.xlu0 %v818, %s823
        %v825 = vpop.permute.xlu0 %824
        %v826 = vlaneseq
        %v827 = vshrl.u32 %v826, 7
        %v828 = vsub.s32 7, %v827
        %v829 = vrot.slane %v186, %v828
        %831 = vbcast.lane.b32.xlu0 %v829, 256
        %v832 = vpop.permute.xlu0 %831
        %s834 = sor.u32 256, 8
        %835 = vbcast.lane.b32.xlu0 %v829, %s834
        %v836 = vpop.permute.xlu0 %835
        %v837 = vlaneseq
        %v838 = vshrl.u32 %v837, 7
        %v839 = vsub.s32 0, %v838
        %v840 = vrot.slane %v187, %v839
        %842 = vbcast.lane.b32.xlu0 %v840, 256
        %v843 = vpop.permute.xlu0 %842
        %s845 = sor.u32 256, 8
        %846 = vbcast.lane.b32.xlu0 %v840, %s845
        %v847 = vpop.permute.xlu0 %846
        %v848 = vlaneseq
        %v849 = vshrl.u32 %v848, 7
        %v850 = vsub.s32 1, %v849
        %v851 = vrot.slane %v187, %v850
        %853 = vbcast.lane.b32.xlu0 %v851, 256
        %v854 = vpop.permute.xlu0 %853
        %s856 = sor.u32 256, 8
        %857 = vbcast.lane.b32.xlu0 %v851, %s856
        %v858 = vpop.permute.xlu0 %857
        %v859 = vlaneseq
        %v860 = vshrl.u32 %v859, 7
        %v861 = vsub.s32 2, %v860
        %v862 = vrot.slane %v187, %v861
        %864 = vbcast.lane.b32.xlu0 %v862, 256
        %v865 = vpop.permute.xlu0 %864
        %s867 = sor.u32 256, 8
        %868 = vbcast.lane.b32.xlu0 %v862, %s867
        %v869 = vpop.permute.xlu0 %868
        %v870 = vlaneseq
        %v871 = vshrl.u32 %v870, 7
        %v872 = vsub.s32 3, %v871
        %v873 = vrot.slane %v187, %v872
        %875 = vbcast.lane.b32.xlu0 %v873, 256
        %v876 = vpop.permute.xlu0 %875
        %s878 = sor.u32 256, 8
        %879 = vbcast.lane.b32.xlu0 %v873, %s878
        %v880 = vpop.permute.xlu0 %879
        %v881 = vlaneseq
        %v882 = vshrl.u32 %v881, 7
        %v883 = vsub.s32 4, %v882
        %v884 = vrot.slane %v187, %v883
        %886 = vbcast.lane.b32.xlu0 %v884, 256
        %v887 = vpop.permute.xlu0 %886
        %s889 = sor.u32 256, 8
        %890 = vbcast.lane.b32.xlu0 %v884, %s889
        %v891 = vpop.permute.xlu0 %890
        %v892 = vlaneseq
        %v893 = vshrl.u32 %v892, 7
        %v894 = vsub.s32 5, %v893
        %v895 = vrot.slane %v187, %v894
        %897 = vbcast.lane.b32.xlu0 %v895, 256
        %v898 = vpop.permute.xlu0 %897
        %s900 = sor.u32 256, 8
        %901 = vbcast.lane.b32.xlu0 %v895, %s900
        %v902 = vpop.permute.xlu0 %901
        %v903 = vlaneseq
        %v904 = vshrl.u32 %v903, 7
        %v905 = vsub.s32 6, %v904
        %v906 = vrot.slane %v187, %v905
        %908 = vbcast.lane.b32.xlu0 %v906, 256
        %v909 = vpop.permute.xlu0 %908
        %s911 = sor.u32 256, 8
        %912 = vbcast.lane.b32.xlu0 %v906, %s911
        %v913 = vpop.permute.xlu0 %912
        %v914 = vlaneseq
        %v915 = vshrl.u32 %v914, 7
        %v916 = vsub.s32 7, %v915
        %v917 = vrot.slane %v187, %v916
        %919 = vbcast.lane.b32.xlu0 %v917, 256
        %v920 = vpop.permute.xlu0 %919
        %s922 = sor.u32 256, 8
        %923 = vbcast.lane.b32.xlu0 %v917, %s922
        %v924 = vpop.permute.xlu0 %923
        %v925 = vsel %vm540, %v579, %v755
        %v926 = vsel %vm540, %v583, %v759
        %v927 = vsel %vm540, %v590, %v766
        %v928 = vsel %vm540, %v594, %v770
        %v929 = vsel %vm540, %v601, %v777
        %v930 = vsel %vm540, %v605, %v781
        %v931 = vsel %vm540, %v612, %v788
        %v932 = vsel %vm540, %v616, %v792
        %v933 = vsel %vm540, %v623, %v799
        %v934 = vsel %vm540, %v627, %v803
        %v935 = vsel %vm540, %v634, %v810
        %v936 = vsel %vm540, %v638, %v814
        %v937 = vsel %vm540, %v645, %v821
        %v938 = vsel %vm540, %v649, %v825
        %v939 = vsel %vm540, %v656, %v832
        %v940 = vsel %vm540, %v660, %v836
        %v941 = vsel %vm540, %v667, %v843
        %v942 = vsel %vm540, %v671, %v847
        %v943 = vsel %vm540, %v678, %v854
        %v944 = vsel %vm540, %v682, %v858
        %v945 = vsel %vm540, %v689, %v865
        %v946 = vsel %vm540, %v693, %v869
        %v947 = vsel %vm540, %v700, %v876
        %v948 = vsel %vm540, %v704, %v880
        %v949 = vsel %vm540, %v711, %v887
        %v950 = vsel %vm540, %v715, %v891
        %v951 = vsel %vm540, %v722, %v898
        %v952 = vsel %vm540, %v726, %v902
        %v953 = vsel %vm540, %v733, %v909
        %v954 = vsel %vm540, %v737, %v913
        %v955 = vsel %vm540, %v744, %v920
        %v956 = vsel %vm540, %v748, %v924
        %v957 = vcombine.high %v541, 0.0
        %v959 = vunpack.c.l.s4 1983009808
        %v960 = vunpack.c.0.s8 %v959
        %v961 = vlaneseq
        %v962 = vshrl.u32 %v961, 7
        %v963 = vsub.s32 %v960, %v962
        %v964 = vrot.slane %v541, %v963
        %v966 = vunpack.c.l.s4 1983009808
        %v967 = vunpack.c.0.s8 %v966
        %v968 = vlaneseq
        %v969 = vshrl.u32 %v968, 7
        %v970 = vsub.s32 %v967, %v969
        %v971 = vrot.slane %v957, %v970
        %v972 = vcombine.high %v964, 0.0
        %v974 = vunpack.c.l.s4 1934713408
        %v975 = vunpack.c.0.s8 %v974
        %v976 = vlaneseq
        %v977 = vshrl.u32 %v976, 7
        %v978 = vsub.s32 %v975, %v977
        %v979 = vrot.slane %v964, %v978
        %v981 = vunpack.c.l.s4 1934713408
        %v982 = vunpack.c.0.s8 %v981
        %v983 = vlaneseq
        %v984 = vshrl.u32 %v983, 7
        %v985 = vsub.s32 %v982, %v984
        %v986 = vrot.slane %v972, %v985
        %v987 = vcombine.high %v971, 0.0
        %v989 = vunpack.c.l.s4 1934713408
        %v990 = vunpack.c.0.s8 %v989
        %v991 = vlaneseq
        %v992 = vshrl.u32 %v991, 7
        %v993 = vsub.s32 %v990, %v992
        %v994 = vrot.slane %v971, %v993
        %v996 = vunpack.c.l.s4 1934713408
        %v997 = vunpack.c.0.s8 %v996
        %v998 = vlaneseq
        %v999 = vshrl.u32 %v998, 7
        %v1000 = vsub.s32 %v997, %v999
        %v1001 = vrot.slane %v987, %v1000
        %v1002 = vcombine.high %v979, 0.0
        %v1003 = vcombine.high %v986, 0.0
        %v1004 = vcombine.high %v994, 0.0
        %v1005 = vcombine.high %v1001, 0.0
        %v1006 = vcombine.high %v542, 0.0
        %v1008 = vunpack.c.l.s4 1983009808
        %v1009 = vunpack.c.0.s8 %v1008
        %v1010 = vlaneseq
        %v1011 = vshrl.u32 %v1010, 7
        %v1012 = vsub.s32 %v1009, %v1011
        %v1013 = vrot.slane %v542, %v1012
        %v1015 = vunpack.c.l.s4 1983009808
        %v1016 = vunpack.c.0.s8 %v1015
        %v1017 = vlaneseq
        %v1018 = vshrl.u32 %v1017, 7
        %v1019 = vsub.s32 %v1016, %v1018
        %v1020 = vrot.slane %v1006, %v1019
        %v1021 = vcombine.high %v1013, 0.0
        %v1023 = vunpack.c.l.s4 1934713408
        %v1024 = vunpack.c.0.s8 %v1023
        %v1025 = vlaneseq
        %v1026 = vshrl.u32 %v1025, 7
        %v1027 = vsub.s32 %v1024, %v1026
        %v1028 = vrot.slane %v1013, %v1027
        %v1030 = vunpack.c.l.s4 1934713408
        %v1031 = vunpack.c.0.s8 %v1030
        %v1032 = vlaneseq
        %v1033 = vshrl.u32 %v1032, 7
        %v1034 = vsub.s32 %v1031, %v1033
        %v1035 = vrot.slane %v1021, %v1034
        %v1036 = vcombine.high %v1020, 0.0
        %v1038 = vunpack.c.l.s4 1934713408
        %v1039 = vunpack.c.0.s8 %v1038
        %v1040 = vlaneseq
        %v1041 = vshrl.u32 %v1040, 7
        %v1042 = vsub.s32 %v1039, %v1041
        %v1043 = vrot.slane %v1020, %v1042
        %v1045 = vunpack.c.l.s4 1934713408
        %v1046 = vunpack.c.0.s8 %v1045
        %v1047 = vlaneseq
        %v1048 = vshrl.u32 %v1047, 7
        %v1049 = vsub.s32 %v1046, %v1048
        %v1050 = vrot.slane %v1036, %v1049
        %v1051 = vcombine.high %v1028, 0.0
        %v1052 = vcombine.high %v1035, 0.0
        %v1053 = vcombine.high %v1043, 0.0
        %v1054 = vcombine.high %v1050, 0.0
        %v1055 = vcombine.high %v543, 0.0
        %v1057 = vunpack.c.l.s4 1983009808
        %v1058 = vunpack.c.0.s8 %v1057
        %v1059 = vlaneseq
        %v1060 = vshrl.u32 %v1059, 7
        %v1061 = vsub.s32 %v1058, %v1060
        %v1062 = vrot.slane %v543, %v1061
        %v1064 = vunpack.c.l.s4 1983009808
        %v1065 = vunpack.c.0.s8 %v1064
        %v1066 = vlaneseq
        %v1067 = vshrl.u32 %v1066, 7
        %v1068 = vsub.s32 %v1065, %v1067
        %v1069 = vrot.slane %v1055, %v1068
        %v1070 = vcombine.high %v1062, 0.0
        %v1072 = vunpack.c.l.s4 1934713408
        %v1073 = vunpack.c.0.s8 %v1072
        %v1074 = vlaneseq
        %v1075 = vshrl.u32 %v1074, 7
        %v1076 = vsub.s32 %v1073, %v1075
        %v1077 = vrot.slane %v1062, %v1076
        %v1079 = vunpack.c.l.s4 1934713408
        %v1080 = vunpack.c.0.s8 %v1079
        %v1081 = vlaneseq
        %v1082 = vshrl.u32 %v1081, 7
        %v1083 = vsub.s32 %v1080, %v1082
        %v1084 = vrot.slane %v1070, %v1083
        %v1085 = vcombine.high %v1069, 0.0
        %v1087 = vunpack.c.l.s4 1934713408
        %v1088 = vunpack.c.0.s8 %v1087
        %v1089 = vlaneseq
        %v1090 = vshrl.u32 %v1089, 7
        %v1091 = vsub.s32 %v1088, %v1090
        %v1092 = vrot.slane %v1069, %v1091
        %v1094 = vunpack.c.l.s4 1934713408
        %v1095 = vunpack.c.0.s8 %v1094
        %v1096 = vlaneseq
        %v1097 = vshrl.u32 %v1096, 7
        %v1098 = vsub.s32 %v1095, %v1097
        %v1099 = vrot.slane %v1085, %v1098
        %v1100 = vcombine.high %v1077, 0.0
        %v1101 = vcombine.high %v1084, 0.0
        %v1102 = vcombine.high %v1092, 0.0
        %v1103 = vcombine.high %v1099, 0.0
        %v1104 = vcombine.high %v544, 0.0
        %v1106 = vunpack.c.l.s4 1983009808
        %v1107 = vunpack.c.0.s8 %v1106
        %v1108 = vlaneseq
        %v1109 = vshrl.u32 %v1108, 7
        %v1110 = vsub.s32 %v1107, %v1109
        %v1111 = vrot.slane %v544, %v1110
        %v1113 = vunpack.c.l.s4 1983009808
        %v1114 = vunpack.c.0.s8 %v1113
        %v1115 = vlaneseq
        %v1116 = vshrl.u32 %v1115, 7
        %v1117 = vsub.s32 %v1114, %v1116
        %v1118 = vrot.slane %v1104, %v1117
        %v1119 = vcombine.high %v1111, 0.0
        %v1121 = vunpack.c.l.s4 1934713408
        %v1122 = vunpack.c.0.s8 %v1121
        %v1123 = vlaneseq
        %v1124 = vshrl.u32 %v1123, 7
        %v1125 = vsub.s32 %v1122, %v1124
        %v1126 = vrot.slane %v1111, %v1125
        %v1128 = vunpack.c.l.s4 1934713408
        %v1129 = vunpack.c.0.s8 %v1128
        %v1130 = vlaneseq
        %v1131 = vshrl.u32 %v1130, 7
        %v1132 = vsub.s32 %v1129, %v1131
        %v1133 = vrot.slane %v1119, %v1132
        %v1134 = vcombine.high %v1118, 0.0
        %v1136 = vunpack.c.l.s4 1934713408
        %v1137 = vunpack.c.0.s8 %v1136
        %v1138 = vlaneseq
        %v1139 = vshrl.u32 %v1138, 7
        %v1140 = vsub.s32 %v1137, %v1139
        %v1141 = vrot.slane %v1118, %v1140
        %v1143 = vunpack.c.l.s4 1934713408
        %v1144 = vunpack.c.0.s8 %v1143
        %v1145 = vlaneseq
        %v1146 = vshrl.u32 %v1145, 7
        %v1147 = vsub.s32 %v1144, %v1146
        %v1148 = vrot.slane %v1134, %v1147
        %v1149 = vcombine.high %v1126, 0.0
        %v1150 = vcombine.high %v1133, 0.0
        %v1151 = vcombine.high %v1141, 0.0
        %v1152 = vcombine.high %v1148, 0.0
        %v1153 = vcombine.high %v545, 0.0
        %v1155 = vunpack.c.l.s4 1983009808
        %v1156 = vunpack.c.0.s8 %v1155
        %v1157 = vlaneseq
        %v1158 = vshrl.u32 %v1157, 7
        %v1159 = vsub.s32 %v1156, %v1158
        %v1160 = vrot.slane %v545, %v1159
        %v1162 = vunpack.c.l.s4 1983009808
        %v1163 = vunpack.c.0.s8 %v1162
        %v1164 = vlaneseq
        %v1165 = vshrl.u32 %v1164, 7
        %v1166 = vsub.s32 %v1163, %v1165
        %v1167 = vrot.slane %v1153, %v1166
        %v1168 = vcombine.high %v1160, 0.0
        %v1170 = vunpack.c.l.s4 1934713408
        %v1171 = vunpack.c.0.s8 %v1170
        %v1172 = vlaneseq
        %v1173 = vshrl.u32 %v1172, 7
        %v1174 = vsub.s32 %v1171, %v1173
        %v1175 = vrot.slane %v1160, %v1174
        %v1177 = vunpack.c.l.s4 1934713408
        %v1178 = vunpack.c.0.s8 %v1177
        %v1179 = vlaneseq
        %v1180 = vshrl.u32 %v1179, 7
        %v1181 = vsub.s32 %v1178, %v1180
        %v1182 = vrot.slane %v1168, %v1181
        %v1183 = vcombine.high %v1167, 0.0
        %v1185 = vunpack.c.l.s4 1934713408
        %v1186 = vunpack.c.0.s8 %v1185
        %v1187 = vlaneseq
        %v1188 = vshrl.u32 %v1187, 7
        %v1189 = vsub.s32 %v1186, %v1188
        %v1190 = vrot.slane %v1167, %v1189
        %v1192 = vunpack.c.l.s4 1934713408
        %v1193 = vunpack.c.0.s8 %v1192
        %v1194 = vlaneseq
        %v1195 = vshrl.u32 %v1194, 7
        %v1196 = vsub.s32 %v1193, %v1195
        %v1197 = vrot.slane %v1183, %v1196
        %v1198 = vcombine.high %v1175, 0.0
        %v1199 = vcombine.high %v1182, 0.0
        %v1200 = vcombine.high %v1190, 0.0
        %v1201 = vcombine.high %v1197, 0.0
        %v1202 = vcombine.high %v546, 0.0
        %v1204 = vunpack.c.l.s4 1983009808
        %v1205 = vunpack.c.0.s8 %v1204
        %v1206 = vlaneseq
        %v1207 = vshrl.u32 %v1206, 7
        %v1208 = vsub.s32 %v1205, %v1207
        %v1209 = vrot.slane %v546, %v1208
        %v1211 = vunpack.c.l.s4 1983009808
        %v1212 = vunpack.c.0.s8 %v1211
        %v1213 = vlaneseq
        %v1214 = vshrl.u32 %v1213, 7
        %v1215 = vsub.s32 %v1212, %v1214
        %v1216 = vrot.slane %v1202, %v1215
        %v1217 = vcombine.high %v1209, 0.0
        %v1219 = vunpack.c.l.s4 1934713408
        %v1220 = vunpack.c.0.s8 %v1219
        %v1221 = vlaneseq
        %v1222 = vshrl.u32 %v1221, 7
        %v1223 = vsub.s32 %v1220, %v1222
        %v1224 = vrot.slane %v1209, %v1223
        %v1226 = vunpack.c.l.s4 1934713408
        %v1227 = vunpack.c.0.s8 %v1226
        %v1228 = vlaneseq
        %v1229 = vshrl.u32 %v1228, 7
        %v1230 = vsub.s32 %v1227, %v1229
        %v1231 = vrot.slane %v1217, %v1230
        %v1232 = vcombine.high %v1216, 0.0
        %v1234 = vunpack.c.l.s4 1934713408
        %v1235 = vunpack.c.0.s8 %v1234
        %v1236 = vlaneseq
        %v1237 = vshrl.u32 %v1236, 7
        %v1238 = vsub.s32 %v1235, %v1237
        %v1239 = vrot.slane %v1216, %v1238
        %v1241 = vunpack.c.l.s4 1934713408
        %v1242 = vunpack.c.0.s8 %v1241
        %v1243 = vlaneseq
        %v1244 = vshrl.u32 %v1243, 7
        %v1245 = vsub.s32 %v1242, %v1244
        %v1246 = vrot.slane %v1232, %v1245
        %v1247 = vcombine.high %v1224, 0.0
        %v1248 = vcombine.high %v1231, 0.0
        %v1249 = vcombine.high %v1239, 0.0
        %v1250 = vcombine.high %v1246, 0.0
        %v1251 = vcombine.high %v547, 0.0
        %v1253 = vunpack.c.l.s4 1983009808
        %v1254 = vunpack.c.0.s8 %v1253
        %v1255 = vlaneseq
        %v1256 = vshrl.u32 %v1255, 7
        %v1257 = vsub.s32 %v1254, %v1256
        %v1258 = vrot.slane %v547, %v1257
        %v1260 = vunpack.c.l.s4 1983009808
        %v1261 = vunpack.c.0.s8 %v1260
        %v1262 = vlaneseq
        %v1263 = vshrl.u32 %v1262, 7
        %v1264 = vsub.s32 %v1261, %v1263
        %v1265 = vrot.slane %v1251, %v1264
        %v1266 = vcombine.high %v1258, 0.0
        %v1268 = vunpack.c.l.s4 1934713408
        %v1269 = vunpack.c.0.s8 %v1268
        %v1270 = vlaneseq
        %v1271 = vshrl.u32 %v1270, 7
        %v1272 = vsub.s32 %v1269, %v1271
        %v1273 = vrot.slane %v1258, %v1272
        %v1275 = vunpack.c.l.s4 1934713408
        %v1276 = vunpack.c.0.s8 %v1275
        %v1277 = vlaneseq
        %v1278 = vshrl.u32 %v1277, 7
        %v1279 = vsub.s32 %v1276, %v1278
        %v1280 = vrot.slane %v1266, %v1279
        %v1281 = vcombine.high %v1265, 0.0
        %v1283 = vunpack.c.l.s4 1934713408
        %v1284 = vunpack.c.0.s8 %v1283
        %v1285 = vlaneseq
        %v1286 = vshrl.u32 %v1285, 7
        %v1287 = vsub.s32 %v1284, %v1286
        %v1288 = vrot.slane %v1265, %v1287
        %v1290 = vunpack.c.l.s4 1934713408
        %v1291 = vunpack.c.0.s8 %v1290
        %v1292 = vlaneseq
        %v1293 = vshrl.u32 %v1292, 7
        %v1294 = vsub.s32 %v1291, %v1293
        %v1295 = vrot.slane %v1281, %v1294
        %v1296 = vcombine.high %v1273, 0.0
        %v1297 = vcombine.high %v1280, 0.0
        %v1298 = vcombine.high %v1288, 0.0
        %v1299 = vcombine.high %v1295, 0.0
        %v1300 = vcombine.high %v548, 0.0
        %v1302 = vunpack.c.l.s4 1983009808
        %v1303 = vunpack.c.0.s8 %v1302
        %v1304 = vlaneseq
        %v1305 = vshrl.u32 %v1304, 7
        %v1306 = vsub.s32 %v1303, %v1305
        %v1307 = vrot.slane %v548, %v1306
        %v1309 = vunpack.c.l.s4 1983009808
        %v1310 = vunpack.c.0.s8 %v1309
        %v1311 = vlaneseq
        %v1312 = vshrl.u32 %v1311, 7
        %v1313 = vsub.s32 %v1310, %v1312
        %v1314 = vrot.slane %v1300, %v1313
        %v1315 = vcombine.high %v1307, 0.0
        %v1317 = vunpack.c.l.s4 1934713408
        %v1318 = vunpack.c.0.s8 %v1317
        %v1319 = vlaneseq
        %v1320 = vshrl.u32 %v1319, 7
        %v1321 = vsub.s32 %v1318, %v1320
        %v1322 = vrot.slane %v1307, %v1321
        %v1324 = vunpack.c.l.s4 1934713408
        %v1325 = vunpack.c.0.s8 %v1324
        %v1326 = vlaneseq
        %v1327 = vshrl.u32 %v1326, 7
        %v1328 = vsub.s32 %v1325, %v1327
        %v1329 = vrot.slane %v1315, %v1328
        %v1330 = vcombine.high %v1314, 0.0
        %v1332 = vunpack.c.l.s4 1934713408
        %v1333 = vunpack.c.0.s8 %v1332
        %v1334 = vlaneseq
        %v1335 = vshrl.u32 %v1334, 7
        %v1336 = vsub.s32 %v1333, %v1335
        %v1337 = vrot.slane %v1314, %v1336
        %v1339 = vunpack.c.l.s4 1934713408
        %v1340 = vunpack.c.0.s8 %v1339
        %v1341 = vlaneseq
        %v1342 = vshrl.u32 %v1341, 7
        %v1343 = vsub.s32 %v1340, %v1342
        %v1344 = vrot.slane %v1330, %v1343
        %v1345 = vcombine.high %v1322, 0.0
        %v1346 = vcombine.high %v1329, 0.0
        %v1347 = vcombine.high %v1337, 0.0
        %v1348 = vcombine.high %v1344, 0.0
        %v1349 = vcombine.high %v549, 0.0
        %v1351 = vunpack.c.l.s4 1983009808
        %v1352 = vunpack.c.0.s8 %v1351
        %v1353 = vlaneseq
        %v1354 = vshrl.u32 %v1353, 7
        %v1355 = vsub.s32 %v1352, %v1354
        %v1356 = vrot.slane %v549, %v1355
        %v1358 = vunpack.c.l.s4 1983009808
        %v1359 = vunpack.c.0.s8 %v1358
        %v1360 = vlaneseq
        %v1361 = vshrl.u32 %v1360, 7
        %v1362 = vsub.s32 %v1359, %v1361
        %v1363 = vrot.slane %v1349, %v1362
        %v1364 = vcombine.high %v1356, 0.0
        %v1366 = vunpack.c.l.s4 1934713408
        %v1367 = vunpack.c.0.s8 %v1366
        %v1368 = vlaneseq
        %v1369 = vshrl.u32 %v1368, 7
        %v1370 = vsub.s32 %v1367, %v1369
        %v1371 = vrot.slane %v1356, %v1370
        %v1373 = vunpack.c.l.s4 1934713408
        %v1374 = vunpack.c.0.s8 %v1373
        %v1375 = vlaneseq
        %v1376 = vshrl.u32 %v1375, 7
        %v1377 = vsub.s32 %v1374, %v1376
        %v1378 = vrot.slane %v1364, %v1377
        %v1379 = vcombine.high %v1363, 0.0
        %v1381 = vunpack.c.l.s4 1934713408
        %v1382 = vunpack.c.0.s8 %v1381
        %v1383 = vlaneseq
        %v1384 = vshrl.u32 %v1383, 7
        %v1385 = vsub.s32 %v1382, %v1384
        %v1386 = vrot.slane %v1363, %v1385
        %v1388 = vunpack.c.l.s4 1934713408
        %v1389 = vunpack.c.0.s8 %v1388
        %v1390 = vlaneseq
        %v1391 = vshrl.u32 %v1390, 7
        %v1392 = vsub.s32 %v1389, %v1391
        %v1393 = vrot.slane %v1379, %v1392
        %v1394 = vcombine.high %v1371, 0.0
        %v1395 = vcombine.high %v1378, 0.0
        %v1396 = vcombine.high %v1386, 0.0
        %v1397 = vcombine.high %v1393, 0.0
        %v1398 = vcombine.high %v550, 0.0
        %v1400 = vunpack.c.l.s4 1983009808
        %v1401 = vunpack.c.0.s8 %v1400
        %v1402 = vlaneseq
        %v1403 = vshrl.u32 %v1402, 7
        %v1404 = vsub.s32 %v1401, %v1403
        %v1405 = vrot.slane %v550, %v1404
        %v1407 = vunpack.c.l.s4 1983009808
        %v1408 = vunpack.c.0.s8 %v1407
        %v1409 = vlaneseq
        %v1410 = vshrl.u32 %v1409, 7
        %v1411 = vsub.s32 %v1408, %v1410
        %v1412 = vrot.slane %v1398, %v1411
        %v1413 = vcombine.high %v1405, 0.0
        %v1415 = vunpack.c.l.s4 1934713408
        %v1416 = vunpack.c.0.s8 %v1415
        %v1417 = vlaneseq
        %v1418 = vshrl.u32 %v1417, 7
        %v1419 = vsub.s32 %v1416, %v1418
        %v1420 = vrot.slane %v1405, %v1419
        %v1422 = vunpack.c.l.s4 1934713408
        %v1423 = vunpack.c.0.s8 %v1422
        %v1424 = vlaneseq
        %v1425 = vshrl.u32 %v1424, 7
        %v1426 = vsub.s32 %v1423, %v1425
        %v1427 = vrot.slane %v1413, %v1426
        %v1428 = vcombine.high %v1412, 0.0
        %v1430 = vunpack.c.l.s4 1934713408
        %v1431 = vunpack.c.0.s8 %v1430
        %v1432 = vlaneseq
        %v1433 = vshrl.u32 %v1432, 7
        %v1434 = vsub.s32 %v1431, %v1433
        %v1435 = vrot.slane %v1412, %v1434
        %v1437 = vunpack.c.l.s4 1934713408
        %v1438 = vunpack.c.0.s8 %v1437
        %v1439 = vlaneseq
        %v1440 = vshrl.u32 %v1439, 7
        %v1441 = vsub.s32 %v1438, %v1440
        %v1442 = vrot.slane %v1428, %v1441
        %v1443 = vcombine.high %v1420, 0.0
        %v1444 = vcombine.high %v1427, 0.0
        %v1445 = vcombine.high %v1435, 0.0
        %v1446 = vcombine.high %v1442, 0.0
        %v1447 = vcombine.high %v551, 0.0
        %v1449 = vunpack.c.l.s4 1983009808
        %v1450 = vunpack.c.0.s8 %v1449
        %v1451 = vlaneseq
        %v1452 = vshrl.u32 %v1451, 7
        %v1453 = vsub.s32 %v1450, %v1452
        %v1454 = vrot.slane %v551, %v1453
        %v1456 = vunpack.c.l.s4 1983009808
        %v1457 = vunpack.c.0.s8 %v1456
        %v1458 = vlaneseq
        %v1459 = vshrl.u32 %v1458, 7
        %v1460 = vsub.s32 %v1457, %v1459
        %v1461 = vrot.slane %v1447, %v1460
        %v1462 = vcombine.high %v1454, 0.0
        %v1464 = vunpack.c.l.s4 1934713408
        %v1465 = vunpack.c.0.s8 %v1464
        %v1466 = vlaneseq
        %v1467 = vshrl.u32 %v1466, 7
        %v1468 = vsub.s32 %v1465, %v1467
        %v1469 = vrot.slane %v1454, %v1468
        %v1471 = vunpack.c.l.s4 1934713408
        %v1472 = vunpack.c.0.s8 %v1471
        %v1473 = vlaneseq
        %v1474 = vshrl.u32 %v1473, 7
        %v1475 = vsub.s32 %v1472, %v1474
        %v1476 = vrot.slane %v1462, %v1475
        %v1477 = vcombine.high %v1461, 0.0
        %v1479 = vunpack.c.l.s4 1934713408
        %v1480 = vunpack.c.0.s8 %v1479
        %v1481 = vlaneseq
        %v1482 = vshrl.u32 %v1481, 7
        %v1483 = vsub.s32 %v1480, %v1482
        %v1484 = vrot.slane %v1461, %v1483
        %v1486 = vunpack.c.l.s4 1934713408
        %v1487 = vunpack.c.0.s8 %v1486
        %v1488 = vlaneseq
        %v1489 = vshrl.u32 %v1488, 7
        %v1490 = vsub.s32 %v1487, %v1489
        %v1491 = vrot.slane %v1477, %v1490
        %v1492 = vcombine.high %v1469, 0.0
        %v1493 = vcombine.high %v1476, 0.0
        %v1494 = vcombine.high %v1484, 0.0
        %v1495 = vcombine.high %v1491, 0.0
        %v1496 = vcombine.high %v552, 0.0
        %v1498 = vunpack.c.l.s4 1983009808
        %v1499 = vunpack.c.0.s8 %v1498
        %v1500 = vlaneseq
        %v1501 = vshrl.u32 %v1500, 7
        %v1502 = vsub.s32 %v1499, %v1501
        %v1503 = vrot.slane %v552, %v1502
        %v1505 = vunpack.c.l.s4 1983009808
        %v1506 = vunpack.c.0.s8 %v1505
        %v1507 = vlaneseq
        %v1508 = vshrl.u32 %v1507, 7
        %v1509 = vsub.s32 %v1506, %v1508
        %v1510 = vrot.slane %v1496, %v1509
        %v1511 = vcombine.high %v1503, 0.0
        %v1513 = vunpack.c.l.s4 1934713408
        %v1514 = vunpack.c.0.s8 %v1513
        %v1515 = vlaneseq
        %v1516 = vshrl.u32 %v1515, 7
        %v1517 = vsub.s32 %v1514, %v1516
        %v1518 = vrot.slane %v1503, %v1517
        %v1520 = vunpack.c.l.s4 1934713408
        %v1521 = vunpack.c.0.s8 %v1520
        %v1522 = vlaneseq
        %v1523 = vshrl.u32 %v1522, 7
        %v1524 = vsub.s32 %v1521, %v1523
        %v1525 = vrot.slane %v1511, %v1524
        %v1526 = vcombine.high %v1510, 0.0
        %v1528 = vunpack.c.l.s4 1934713408
        %v1529 = vunpack.c.0.s8 %v1528
        %v1530 = vlaneseq
        %v1531 = vshrl.u32 %v1530, 7
        %v1532 = vsub.s32 %v1529, %v1531
        %v1533 = vrot.slane %v1510, %v1532
        %v1535 = vunpack.c.l.s4 1934713408
        %v1536 = vunpack.c.0.s8 %v1535
        %v1537 = vlaneseq
        %v1538 = vshrl.u32 %v1537, 7
        %v1539 = vsub.s32 %v1536, %v1538
        %v1540 = vrot.slane %v1526, %v1539
        %v1541 = vcombine.high %v1518, 0.0
        %v1542 = vcombine.high %v1525, 0.0
        %v1543 = vcombine.high %v1533, 0.0
        %v1544 = vcombine.high %v1540, 0.0
        %v1545 = vcombine.high %v553, 0.0
        %v1547 = vunpack.c.l.s4 1983009808
        %v1548 = vunpack.c.0.s8 %v1547
        %v1549 = vlaneseq
        %v1550 = vshrl.u32 %v1549, 7
        %v1551 = vsub.s32 %v1548, %v1550
        %v1552 = vrot.slane %v553, %v1551
        %v1554 = vunpack.c.l.s4 1983009808
        %v1555 = vunpack.c.0.s8 %v1554
        %v1556 = vlaneseq
        %v1557 = vshrl.u32 %v1556, 7
        %v1558 = vsub.s32 %v1555, %v1557
        %v1559 = vrot.slane %v1545, %v1558
        %v1560 = vcombine.high %v1552, 0.0
        %v1562 = vunpack.c.l.s4 1934713408
        %v1563 = vunpack.c.0.s8 %v1562
        %v1564 = vlaneseq
        %v1565 = vshrl.u32 %v1564, 7
        %v1566 = vsub.s32 %v1563, %v1565
        %v1567 = vrot.slane %v1552, %v1566
        %v1569 = vunpack.c.l.s4 1934713408
        %v1570 = vunpack.c.0.s8 %v1569
        %v1571 = vlaneseq
        %v1572 = vshrl.u32 %v1571, 7
        %v1573 = vsub.s32 %v1570, %v1572
        %v1574 = vrot.slane %v1560, %v1573
        %v1575 = vcombine.high %v1559, 0.0
        %v1577 = vunpack.c.l.s4 1934713408
        %v1578 = vunpack.c.0.s8 %v1577
        %v1579 = vlaneseq
        %v1580 = vshrl.u32 %v1579, 7
        %v1581 = vsub.s32 %v1578, %v1580
        %v1582 = vrot.slane %v1559, %v1581
        %v1584 = vunpack.c.l.s4 1934713408
        %v1585 = vunpack.c.0.s8 %v1584
        %v1586 = vlaneseq
        %v1587 = vshrl.u32 %v1586, 7
        %v1588 = vsub.s32 %v1585, %v1587
        %v1589 = vrot.slane %v1575, %v1588
        %v1590 = vcombine.high %v1567, 0.0
        %v1591 = vcombine.high %v1574, 0.0
        %v1592 = vcombine.high %v1582, 0.0
        %v1593 = vcombine.high %v1589, 0.0
        %v1594 = vcombine.high %v554, 0.0
        %v1596 = vunpack.c.l.s4 1983009808
        %v1597 = vunpack.c.0.s8 %v1596
        %v1598 = vlaneseq
        %v1599 = vshrl.u32 %v1598, 7
        %v1600 = vsub.s32 %v1597, %v1599
        %v1601 = vrot.slane %v554, %v1600
        %v1603 = vunpack.c.l.s4 1983009808
        %v1604 = vunpack.c.0.s8 %v1603
        %v1605 = vlaneseq
        %v1606 = vshrl.u32 %v1605, 7
        %v1607 = vsub.s32 %v1604, %v1606
        %v1608 = vrot.slane %v1594, %v1607
        %v1609 = vcombine.high %v1601, 0.0
        %v1611 = vunpack.c.l.s4 1934713408
        %v1612 = vunpack.c.0.s8 %v1611
        %v1613 = vlaneseq
        %v1614 = vshrl.u32 %v1613, 7
        %v1615 = vsub.s32 %v1612, %v1614
        %v1616 = vrot.slane %v1601, %v1615
        %v1618 = vunpack.c.l.s4 1934713408
        %v1619 = vunpack.c.0.s8 %v1618
        %v1620 = vlaneseq
        %v1621 = vshrl.u32 %v1620, 7
        %v1622 = vsub.s32 %v1619, %v1621
        %v1623 = vrot.slane %v1609, %v1622
        %v1624 = vcombine.high %v1608, 0.0
        %v1626 = vunpack.c.l.s4 1934713408
        %v1627 = vunpack.c.0.s8 %v1626
        %v1628 = vlaneseq
        %v1629 = vshrl.u32 %v1628, 7
        %v1630 = vsub.s32 %v1627, %v1629
        %v1631 = vrot.slane %v1608, %v1630
        %v1633 = vunpack.c.l.s4 1934713408
        %v1634 = vunpack.c.0.s8 %v1633
        %v1635 = vlaneseq
        %v1636 = vshrl.u32 %v1635, 7
        %v1637 = vsub.s32 %v1634, %v1636
        %v1638 = vrot.slane %v1624, %v1637
        %v1639 = vcombine.high %v1616, 0.0
        %v1640 = vcombine.high %v1623, 0.0
        %v1641 = vcombine.high %v1631, 0.0
        %v1642 = vcombine.high %v1638, 0.0
        %v1643 = vcombine.high %v555, 0.0
        %v1645 = vunpack.c.l.s4 1983009808
        %v1646 = vunpack.c.0.s8 %v1645
        %v1647 = vlaneseq
        %v1648 = vshrl.u32 %v1647, 7
        %v1649 = vsub.s32 %v1646, %v1648
        %v1650 = vrot.slane %v555, %v1649
        %v1652 = vunpack.c.l.s4 1983009808
        %v1653 = vunpack.c.0.s8 %v1652
        %v1654 = vlaneseq
        %v1655 = vshrl.u32 %v1654, 7
        %v1656 = vsub.s32 %v1653, %v1655
        %v1657 = vrot.slane %v1643, %v1656
        %v1658 = vcombine.high %v1650, 0.0
        %v1660 = vunpack.c.l.s4 1934713408
        %v1661 = vunpack.c.0.s8 %v1660
        %v1662 = vlaneseq
        %v1663 = vshrl.u32 %v1662, 7
        %v1664 = vsub.s32 %v1661, %v1663
        %v1665 = vrot.slane %v1650, %v1664
        %v1667 = vunpack.c.l.s4 1934713408
        %v1668 = vunpack.c.0.s8 %v1667
        %v1669 = vlaneseq
        %v1670 = vshrl.u32 %v1669, 7
        %v1671 = vsub.s32 %v1668, %v1670
        %v1672 = vrot.slane %v1658, %v1671
        %v1673 = vcombine.high %v1657, 0.0
        %v1675 = vunpack.c.l.s4 1934713408
        %v1676 = vunpack.c.0.s8 %v1675
        %v1677 = vlaneseq
        %v1678 = vshrl.u32 %v1677, 7
        %v1679 = vsub.s32 %v1676, %v1678
        %v1680 = vrot.slane %v1657, %v1679
        %v1682 = vunpack.c.l.s4 1934713408
        %v1683 = vunpack.c.0.s8 %v1682
        %v1684 = vlaneseq
        %v1685 = vshrl.u32 %v1684, 7
        %v1686 = vsub.s32 %v1683, %v1685
        %v1687 = vrot.slane %v1673, %v1686
        %v1688 = vcombine.high %v1665, 0.0
        %v1689 = vcombine.high %v1672, 0.0
        %v1690 = vcombine.high %v1680, 0.0
        %v1691 = vcombine.high %v1687, 0.0
        %v1692 = vcombine.high %v556, 0.0
        %v1694 = vunpack.c.l.s4 1983009808
        %v1695 = vunpack.c.0.s8 %v1694
        %v1696 = vlaneseq
        %v1697 = vshrl.u32 %v1696, 7
        %v1698 = vsub.s32 %v1695, %v1697
        %v1699 = vrot.slane %v556, %v1698
        %v1701 = vunpack.c.l.s4 1983009808
        %v1702 = vunpack.c.0.s8 %v1701
        %v1703 = vlaneseq
        %v1704 = vshrl.u32 %v1703, 7
        %v1705 = vsub.s32 %v1702, %v1704
        %v1706 = vrot.slane %v1692, %v1705
        %v1707 = vcombine.high %v1699, 0.0
        %v1709 = vunpack.c.l.s4 1934713408
        %v1710 = vunpack.c.0.s8 %v1709
        %v1711 = vlaneseq
        %v1712 = vshrl.u32 %v1711, 7
        %v1713 = vsub.s32 %v1710, %v1712
        %v1714 = vrot.slane %v1699, %v1713
        %v1716 = vunpack.c.l.s4 1934713408
        %v1717 = vunpack.c.0.s8 %v1716
        %v1718 = vlaneseq
        %v1719 = vshrl.u32 %v1718, 7
        %v1720 = vsub.s32 %v1717, %v1719
        %v1721 = vrot.slane %v1707, %v1720
        %v1722 = vcombine.high %v1706, 0.0
        %v1724 = vunpack.c.l.s4 1934713408
        %v1725 = vunpack.c.0.s8 %v1724
        %v1726 = vlaneseq
        %v1727 = vshrl.u32 %v1726, 7
        %v1728 = vsub.s32 %v1725, %v1727
        %v1729 = vrot.slane %v1706, %v1728
        %v1731 = vunpack.c.l.s4 1934713408
        %v1732 = vunpack.c.0.s8 %v1731
        %v1733 = vlaneseq
        %v1734 = vshrl.u32 %v1733, 7
        %v1735 = vsub.s32 %v1732, %v1734
        %v1736 = vrot.slane %v1722, %v1735
        %v1737 = vcombine.high %v1714, 0.0
        %v1738 = vcombine.high %v1721, 0.0
        %v1739 = vcombine.high %v1729, 0.0
        %v1740 = vcombine.high %v1736, 0.0
        %v1741 = vcombine.high %v557, 0.0
        %v1743 = vunpack.c.l.s4 1983009808
        %v1744 = vunpack.c.0.s8 %v1743
        %v1745 = vlaneseq
        %v1746 = vshrl.u32 %v1745, 7
        %v1747 = vsub.s32 %v1744, %v1746
        %v1748 = vrot.slane %v557, %v1747
        %v1750 = vunpack.c.l.s4 1983009808
        %v1751 = vunpack.c.0.s8 %v1750
        %v1752 = vlaneseq
        %v1753 = vshrl.u32 %v1752, 7
        %v1754 = vsub.s32 %v1751, %v1753
        %v1755 = vrot.slane %v1741, %v1754
        %v1756 = vcombine.high %v1748, 0.0
        %v1758 = vunpack.c.l.s4 1934713408
        %v1759 = vunpack.c.0.s8 %v1758
        %v1760 = vlaneseq
        %v1761 = vshrl.u32 %v1760, 7
        %v1762 = vsub.s32 %v1759, %v1761
        %v1763 = vrot.slane %v1748, %v1762
        %v1765 = vunpack.c.l.s4 1934713408
        %v1766 = vunpack.c.0.s8 %v1765
        %v1767 = vlaneseq
        %v1768 = vshrl.u32 %v1767, 7
        %v1769 = vsub.s32 %v1766, %v1768
        %v1770 = vrot.slane %v1756, %v1769
        %v1771 = vcombine.high %v1755, 0.0
        %v1773 = vunpack.c.l.s4 1934713408
        %v1774 = vunpack.c.0.s8 %v1773
        %v1775 = vlaneseq
        %v1776 = vshrl.u32 %v1775, 7
        %v1777 = vsub.s32 %v1774, %v1776
        %v1778 = vrot.slane %v1755, %v1777
        %v1780 = vunpack.c.l.s4 1934713408
        %v1781 = vunpack.c.0.s8 %v1780
        %v1782 = vlaneseq
        %v1783 = vshrl.u32 %v1782, 7
        %v1784 = vsub.s32 %v1781, %v1783
        %v1785 = vrot.slane %v1771, %v1784
        %v1786 = vcombine.high %v1763, 0.0
        %v1787 = vcombine.high %v1770, 0.0
        %v1788 = vcombine.high %v1778, 0.0
        %v1789 = vcombine.high %v1785, 0.0
        %v1790 = vcombine.high %v558, 0.0
        %v1792 = vunpack.c.l.s4 1983009808
        %v1793 = vunpack.c.0.s8 %v1792
        %v1794 = vlaneseq
        %v1795 = vshrl.u32 %v1794, 7
        %v1796 = vsub.s32 %v1793, %v1795
        %v1797 = vrot.slane %v558, %v1796
        %v1799 = vunpack.c.l.s4 1983009808
        %v1800 = vunpack.c.0.s8 %v1799
        %v1801 = vlaneseq
        %v1802 = vshrl.u32 %v1801, 7
        %v1803 = vsub.s32 %v1800, %v1802
        %v1804 = vrot.slane %v1790, %v1803
        %v1805 = vcombine.high %v1797, 0.0
        %v1807 = vunpack.c.l.s4 1934713408
        %v1808 = vunpack.c.0.s8 %v1807
        %v1809 = vlaneseq
        %v1810 = vshrl.u32 %v1809, 7
        %v1811 = vsub.s32 %v1808, %v1810
        %v1812 = vrot.slane %v1797, %v1811
        %v1814 = vunpack.c.l.s4 1934713408
        %v1815 = vunpack.c.0.s8 %v1814
        %v1816 = vlaneseq
        %v1817 = vshrl.u32 %v1816, 7
        %v1818 = vsub.s32 %v1815, %v1817
        %v1819 = vrot.slane %v1805, %v1818
        %v1820 = vcombine.high %v1804, 0.0
        %v1822 = vunpack.c.l.s4 1934713408
        %v1823 = vunpack.c.0.s8 %v1822
        %v1824 = vlaneseq
        %v1825 = vshrl.u32 %v1824, 7
        %v1826 = vsub.s32 %v1823, %v1825
        %v1827 = vrot.slane %v1804, %v1826
        %v1829 = vunpack.c.l.s4 1934713408
        %v1830 = vunpack.c.0.s8 %v1829
        %v1831 = vlaneseq
        %v1832 = vshrl.u32 %v1831, 7
        %v1833 = vsub.s32 %v1830, %v1832
        %v1834 = vrot.slane %v1820, %v1833
        %v1835 = vcombine.high %v1812, 0.0
        %v1836 = vcombine.high %v1819, 0.0
        %v1837 = vcombine.high %v1827, 0.0
        %v1838 = vcombine.high %v1834, 0.0
        %v1839 = vcombine.high %v559, 0.0
        %v1841 = vunpack.c.l.s4 1983009808
        %v1842 = vunpack.c.0.s8 %v1841
        %v1843 = vlaneseq
        %v1844 = vshrl.u32 %v1843, 7
        %v1845 = vsub.s32 %v1842, %v1844
        %v1846 = vrot.slane %v559, %v1845
        %v1848 = vunpack.c.l.s4 1983009808
        %v1849 = vunpack.c.0.s8 %v1848
        %v1850 = vlaneseq
        %v1851 = vshrl.u32 %v1850, 7
        %v1852 = vsub.s32 %v1849, %v1851
        %v1853 = vrot.slane %v1839, %v1852
        %v1854 = vcombine.high %v1846, 0.0
        %v1856 = vunpack.c.l.s4 1934713408
        %v1857 = vunpack.c.0.s8 %v1856
        %v1858 = vlaneseq
        %v1859 = vshrl.u32 %v1858, 7
        %v1860 = vsub.s32 %v1857, %v1859
        %v1861 = vrot.slane %v1846, %v1860
        %v1863 = vunpack.c.l.s4 1934713408
        %v1864 = vunpack.c.0.s8 %v1863
        %v1865 = vlaneseq
        %v1866 = vshrl.u32 %v1865, 7
        %v1867 = vsub.s32 %v1864, %v1866
        %v1868 = vrot.slane %v1854, %v1867
        %v1869 = vcombine.high %v1853, 0.0
        %v1871 = vunpack.c.l.s4 1934713408
        %v1872 = vunpack.c.0.s8 %v1871
        %v1873 = vlaneseq
        %v1874 = vshrl.u32 %v1873, 7
        %v1875 = vsub.s32 %v1872, %v1874
        %v1876 = vrot.slane %v1853, %v1875
        %v1878 = vunpack.c.l.s4 1934713408
        %v1879 = vunpack.c.0.s8 %v1878
        %v1880 = vlaneseq
        %v1881 = vshrl.u32 %v1880, 7
        %v1882 = vsub.s32 %v1879, %v1881
        %v1883 = vrot.slane %v1869, %v1882
        %v1884 = vcombine.high %v1861, 0.0
        %v1885 = vcombine.high %v1868, 0.0
        %v1886 = vcombine.high %v1876, 0.0
        %v1887 = vcombine.high %v1883, 0.0
        %v1888 = vcombine.high %v560, 0.0
        %v1890 = vunpack.c.l.s4 1983009808
        %v1891 = vunpack.c.0.s8 %v1890
        %v1892 = vlaneseq
        %v1893 = vshrl.u32 %v1892, 7
        %v1894 = vsub.s32 %v1891, %v1893
        %v1895 = vrot.slane %v560, %v1894
        %v1897 = vunpack.c.l.s4 1983009808
        %v1898 = vunpack.c.0.s8 %v1897
        %v1899 = vlaneseq
        %v1900 = vshrl.u32 %v1899, 7
        %v1901 = vsub.s32 %v1898, %v1900
        %v1902 = vrot.slane %v1888, %v1901
        %v1903 = vcombine.high %v1895, 0.0
        %v1905 = vunpack.c.l.s4 1934713408
        %v1906 = vunpack.c.0.s8 %v1905
        %v1907 = vlaneseq
        %v1908 = vshrl.u32 %v1907, 7
        %v1909 = vsub.s32 %v1906, %v1908
        %v1910 = vrot.slane %v1895, %v1909
        %v1912 = vunpack.c.l.s4 1934713408
        %v1913 = vunpack.c.0.s8 %v1912
        %v1914 = vlaneseq
        %v1915 = vshrl.u32 %v1914, 7
        %v1916 = vsub.s32 %v1913, %v1915
        %v1917 = vrot.slane %v1903, %v1916
        %v1918 = vcombine.high %v1902, 0.0
        %v1920 = vunpack.c.l.s4 1934713408
        %v1921 = vunpack.c.0.s8 %v1920
        %v1922 = vlaneseq
        %v1923 = vshrl.u32 %v1922, 7
        %v1924 = vsub.s32 %v1921, %v1923
        %v1925 = vrot.slane %v1902, %v1924
        %v1927 = vunpack.c.l.s4 1934713408
        %v1928 = vunpack.c.0.s8 %v1927
        %v1929 = vlaneseq
        %v1930 = vshrl.u32 %v1929, 7
        %v1931 = vsub.s32 %v1928, %v1930
        %v1932 = vrot.slane %v1918, %v1931
        %v1933 = vcombine.high %v1910, 0.0
        %v1934 = vcombine.high %v1917, 0.0
        %v1935 = vcombine.high %v1925, 0.0
        %v1936 = vcombine.high %v1932, 0.0
        %v1937 = vcombine.high %v561, 0.0
        %v1939 = vunpack.c.l.s4 1983009808
        %v1940 = vunpack.c.0.s8 %v1939
        %v1941 = vlaneseq
        %v1942 = vshrl.u32 %v1941, 7
        %v1943 = vsub.s32 %v1940, %v1942
        %v1944 = vrot.slane %v561, %v1943
        %v1946 = vunpack.c.l.s4 1983009808
        %v1947 = vunpack.c.0.s8 %v1946
        %v1948 = vlaneseq
        %v1949 = vshrl.u32 %v1948, 7
        %v1950 = vsub.s32 %v1947, %v1949
        %v1951 = vrot.slane %v1937, %v1950
        %v1952 = vcombine.high %v1944, 0.0
        %v1954 = vunpack.c.l.s4 1934713408
        %v1955 = vunpack.c.0.s8 %v1954
        %v1956 = vlaneseq
        %v1957 = vshrl.u32 %v1956, 7
        %v1958 = vsub.s32 %v1955, %v1957
        %v1959 = vrot.slane %v1944, %v1958
        %v1961 = vunpack.c.l.s4 1934713408
        %v1962 = vunpack.c.0.s8 %v1961
        %v1963 = vlaneseq
        %v1964 = vshrl.u32 %v1963, 7
        %v1965 = vsub.s32 %v1962, %v1964
        %v1966 = vrot.slane %v1952, %v1965
        %v1967 = vcombine.high %v1951, 0.0
        %v1969 = vunpack.c.l.s4 1934713408
        %v1970 = vunpack.c.0.s8 %v1969
        %v1971 = vlaneseq
        %v1972 = vshrl.u32 %v1971, 7
        %v1973 = vsub.s32 %v1970, %v1972
        %v1974 = vrot.slane %v1951, %v1973
        %v1976 = vunpack.c.l.s4 1934713408
        %v1977 = vunpack.c.0.s8 %v1976
        %v1978 = vlaneseq
        %v1979 = vshrl.u32 %v1978, 7
        %v1980 = vsub.s32 %v1977, %v1979
        %v1981 = vrot.slane %v1967, %v1980
        %v1982 = vcombine.high %v1959, 0.0
        %v1983 = vcombine.high %v1966, 0.0
        %v1984 = vcombine.high %v1974, 0.0
        %v1985 = vcombine.high %v1981, 0.0
        %v1986 = vcombine.high %v562, 0.0
        %v1988 = vunpack.c.l.s4 1983009808
        %v1989 = vunpack.c.0.s8 %v1988
        %v1990 = vlaneseq
        %v1991 = vshrl.u32 %v1990, 7
        %v1992 = vsub.s32 %v1989, %v1991
        %v1993 = vrot.slane %v562, %v1992
        %v1995 = vunpack.c.l.s4 1983009808
        %v1996 = vunpack.c.0.s8 %v1995
        %v1997 = vlaneseq
        %v1998 = vshrl.u32 %v1997, 7
        %v1999 = vsub.s32 %v1996, %v1998
        %v2000 = vrot.slane %v1986, %v1999
        %v2001 = vcombine.high %v1993, 0.0
        %v2003 = vunpack.c.l.s4 1934713408
        %v2004 = vunpack.c.0.s8 %v2003
        %v2005 = vlaneseq
        %v2006 = vshrl.u32 %v2005, 7
        %v2007 = vsub.s32 %v2004, %v2006
        %v2008 = vrot.slane %v1993, %v2007
        %v2010 = vunpack.c.l.s4 1934713408
        %v2011 = vunpack.c.0.s8 %v2010
        %v2012 = vlaneseq
        %v2013 = vshrl.u32 %v2012, 7
        %v2014 = vsub.s32 %v2011, %v2013
        %v2015 = vrot.slane %v2001, %v2014
        %v2016 = vcombine.high %v2000, 0.0
        %v2018 = vunpack.c.l.s4 1934713408
        %v2019 = vunpack.c.0.s8 %v2018
        %v2020 = vlaneseq
        %v2021 = vshrl.u32 %v2020, 7
        %v2022 = vsub.s32 %v2019, %v2021
        %v2023 = vrot.slane %v2000, %v2022
        %v2025 = vunpack.c.l.s4 1934713408
        %v2026 = vunpack.c.0.s8 %v2025
        %v2027 = vlaneseq
        %v2028 = vshrl.u32 %v2027, 7
        %v2029 = vsub.s32 %v2026, %v2028
        %v2030 = vrot.slane %v2016, %v2029
        %v2031 = vcombine.high %v2008, 0.0
        %v2032 = vcombine.high %v2015, 0.0
        %v2033 = vcombine.high %v2023, 0.0
        %v2034 = vcombine.high %v2030, 0.0
        %v2035 = vcombine.high %v563, 0.0
        %v2037 = vunpack.c.l.s4 1983009808
        %v2038 = vunpack.c.0.s8 %v2037
        %v2039 = vlaneseq
        %v2040 = vshrl.u32 %v2039, 7
        %v2041 = vsub.s32 %v2038, %v2040
        %v2042 = vrot.slane %v563, %v2041
        %v2044 = vunpack.c.l.s4 1983009808
        %v2045 = vunpack.c.0.s8 %v2044
        %v2046 = vlaneseq
        %v2047 = vshrl.u32 %v2046, 7
        %v2048 = vsub.s32 %v2045, %v2047
        %v2049 = vrot.slane %v2035, %v2048
        %v2050 = vcombine.high %v2042, 0.0
        %v2052 = vunpack.c.l.s4 1934713408
        %v2053 = vunpack.c.0.s8 %v2052
        %v2054 = vlaneseq
        %v2055 = vshrl.u32 %v2054, 7
        %v2056 = vsub.s32 %v2053, %v2055
        %v2057 = vrot.slane %v2042, %v2056
        %v2059 = vunpack.c.l.s4 1934713408
        %v2060 = vunpack.c.0.s8 %v2059
        %v2061 = vlaneseq
        %v2062 = vshrl.u32 %v2061, 7
        %v2063 = vsub.s32 %v2060, %v2062
        %v2064 = vrot.slane %v2050, %v2063
        %v2065 = vcombine.high %v2049, 0.0
        %v2067 = vunpack.c.l.s4 1934713408
        %v2068 = vunpack.c.0.s8 %v2067
        %v2069 = vlaneseq
        %v2070 = vshrl.u32 %v2069, 7
        %v2071 = vsub.s32 %v2068, %v2070
        %v2072 = vrot.slane %v2049, %v2071
        %v2074 = vunpack.c.l.s4 1934713408
        %v2075 = vunpack.c.0.s8 %v2074
        %v2076 = vlaneseq
        %v2077 = vshrl.u32 %v2076, 7
        %v2078 = vsub.s32 %v2075, %v2077
        %v2079 = vrot.slane %v2065, %v2078
        %v2080 = vcombine.high %v2057, 0.0
        %v2081 = vcombine.high %v2064, 0.0
        %v2082 = vcombine.high %v2072, 0.0
        %v2083 = vcombine.high %v2079, 0.0
        %v2084 = vcombine.high %v564, 0.0
        %v2086 = vunpack.c.l.s4 1983009808
        %v2087 = vunpack.c.0.s8 %v2086
        %v2088 = vlaneseq
        %v2089 = vshrl.u32 %v2088, 7
        %v2090 = vsub.s32 %v2087, %v2089
        %v2091 = vrot.slane %v564, %v2090
        %v2093 = vunpack.c.l.s4 1983009808
        %v2094 = vunpack.c.0.s8 %v2093
        %v2095 = vlaneseq
        %v2096 = vshrl.u32 %v2095, 7
        %v2097 = vsub.s32 %v2094, %v2096
        %v2098 = vrot.slane %v2084, %v2097
        %v2099 = vcombine.high %v2091, 0.0
        %v2101 = vunpack.c.l.s4 1934713408
        %v2102 = vunpack.c.0.s8 %v2101
        %v2103 = vlaneseq
        %v2104 = vshrl.u32 %v2103, 7
        %v2105 = vsub.s32 %v2102, %v2104
        %v2106 = vrot.slane %v2091, %v2105
        %v2108 = vunpack.c.l.s4 1934713408
        %v2109 = vunpack.c.0.s8 %v2108
        %v2110 = vlaneseq
        %v2111 = vshrl.u32 %v2110, 7
        %v2112 = vsub.s32 %v2109, %v2111
        %v2113 = vrot.slane %v2099, %v2112
        %v2114 = vcombine.high %v2098, 0.0
        %v2116 = vunpack.c.l.s4 1934713408
        %v2117 = vunpack.c.0.s8 %v2116
        %v2118 = vlaneseq
        %v2119 = vshrl.u32 %v2118, 7
        %v2120 = vsub.s32 %v2117, %v2119
        %v2121 = vrot.slane %v2098, %v2120
        %v2123 = vunpack.c.l.s4 1934713408
        %v2124 = vunpack.c.0.s8 %v2123
        %v2125 = vlaneseq
        %v2126 = vshrl.u32 %v2125, 7
        %v2127 = vsub.s32 %v2124, %v2126
        %v2128 = vrot.slane %v2114, %v2127
        %v2129 = vcombine.high %v2106, 0.0
        %v2130 = vcombine.high %v2113, 0.0
        %v2131 = vcombine.high %v2121, 0.0
        %v2132 = vcombine.high %v2128, 0.0
        %v2133 = vcombine.high %v565, 0.0
        %v2135 = vunpack.c.l.s4 1983009808
        %v2136 = vunpack.c.0.s8 %v2135
        %v2137 = vlaneseq
        %v2138 = vshrl.u32 %v2137, 7
        %v2139 = vsub.s32 %v2136, %v2138
        %v2140 = vrot.slane %v565, %v2139
        %v2142 = vunpack.c.l.s4 1983009808
        %v2143 = vunpack.c.0.s8 %v2142
        %v2144 = vlaneseq
        %v2145 = vshrl.u32 %v2144, 7
        %v2146 = vsub.s32 %v2143, %v2145
        %v2147 = vrot.slane %v2133, %v2146
        %v2148 = vcombine.high %v2140, 0.0
        %v2150 = vunpack.c.l.s4 1934713408
        %v2151 = vunpack.c.0.s8 %v2150
        %v2152 = vlaneseq
        %v2153 = vshrl.u32 %v2152, 7
        %v2154 = vsub.s32 %v2151, %v2153
        %v2155 = vrot.slane %v2140, %v2154
        %v2157 = vunpack.c.l.s4 1934713408
        %v2158 = vunpack.c.0.s8 %v2157
        %v2159 = vlaneseq
        %v2160 = vshrl.u32 %v2159, 7
        %v2161 = vsub.s32 %v2158, %v2160
        %v2162 = vrot.slane %v2148, %v2161
        %v2163 = vcombine.high %v2147, 0.0
        %v2165 = vunpack.c.l.s4 1934713408
        %v2166 = vunpack.c.0.s8 %v2165
        %v2167 = vlaneseq
        %v2168 = vshrl.u32 %v2167, 7
        %v2169 = vsub.s32 %v2166, %v2168
        %v2170 = vrot.slane %v2147, %v2169
        %v2172 = vunpack.c.l.s4 1934713408
        %v2173 = vunpack.c.0.s8 %v2172
        %v2174 = vlaneseq
        %v2175 = vshrl.u32 %v2174, 7
        %v2176 = vsub.s32 %v2173, %v2175
        %v2177 = vrot.slane %v2163, %v2176
        %v2178 = vcombine.high %v2155, 0.0
        %v2179 = vcombine.high %v2162, 0.0
        %v2180 = vcombine.high %v2170, 0.0
        %v2181 = vcombine.high %v2177, 0.0
        %v2182 = vcombine.high %v566, 0.0
        %v2184 = vunpack.c.l.s4 1983009808
        %v2185 = vunpack.c.0.s8 %v2184
        %v2186 = vlaneseq
        %v2187 = vshrl.u32 %v2186, 7
        %v2188 = vsub.s32 %v2185, %v2187
        %v2189 = vrot.slane %v566, %v2188
        %v2191 = vunpack.c.l.s4 1983009808
        %v2192 = vunpack.c.0.s8 %v2191
        %v2193 = vlaneseq
        %v2194 = vshrl.u32 %v2193, 7
        %v2195 = vsub.s32 %v2192, %v2194
        %v2196 = vrot.slane %v2182, %v2195
        %v2197 = vcombine.high %v2189, 0.0
        %v2199 = vunpack.c.l.s4 1934713408
        %v2200 = vunpack.c.0.s8 %v2199
        %v2201 = vlaneseq
        %v2202 = vshrl.u32 %v2201, 7
        %v2203 = vsub.s32 %v2200, %v2202
        %v2204 = vrot.slane %v2189, %v2203
        %v2206 = vunpack.c.l.s4 1934713408
        %v2207 = vunpack.c.0.s8 %v2206
        %v2208 = vlaneseq
        %v2209 = vshrl.u32 %v2208, 7
        %v2210 = vsub.s32 %v2207, %v2209
        %v2211 = vrot.slane %v2197, %v2210
        %v2212 = vcombine.high %v2196, 0.0
        %v2214 = vunpack.c.l.s4 1934713408
        %v2215 = vunpack.c.0.s8 %v2214
        %v2216 = vlaneseq
        %v2217 = vshrl.u32 %v2216, 7
        %v2218 = vsub.s32 %v2215, %v2217
        %v2219 = vrot.slane %v2196, %v2218
        %v2221 = vunpack.c.l.s4 1934713408
        %v2222 = vunpack.c.0.s8 %v2221
        %v2223 = vlaneseq
        %v2224 = vshrl.u32 %v2223, 7
        %v2225 = vsub.s32 %v2222, %v2224
        %v2226 = vrot.slane %v2212, %v2225
        %v2227 = vcombine.high %v2204, 0.0
        %v2228 = vcombine.high %v2211, 0.0
        %v2229 = vcombine.high %v2219, 0.0
        %v2230 = vcombine.high %v2226, 0.0
        %v2231 = vcombine.high %v567, 0.0
        %v2233 = vunpack.c.l.s4 1983009808
        %v2234 = vunpack.c.0.s8 %v2233
        %v2235 = vlaneseq
        %v2236 = vshrl.u32 %v2235, 7
        %v2237 = vsub.s32 %v2234, %v2236
        %v2238 = vrot.slane %v567, %v2237
        %v2240 = vunpack.c.l.s4 1983009808
        %v2241 = vunpack.c.0.s8 %v2240
        %v2242 = vlaneseq
        %v2243 = vshrl.u32 %v2242, 7
        %v2244 = vsub.s32 %v2241, %v2243
        %v2245 = vrot.slane %v2231, %v2244
        %v2246 = vcombine.high %v2238, 0.0
        %v2248 = vunpack.c.l.s4 1934713408
        %v2249 = vunpack.c.0.s8 %v2248
        %v2250 = vlaneseq
        %v2251 = vshrl.u32 %v2250, 7
        %v2252 = vsub.s32 %v2249, %v2251
        %v2253 = vrot.slane %v2238, %v2252
        %v2255 = vunpack.c.l.s4 1934713408
        %v2256 = vunpack.c.0.s8 %v2255
        %v2257 = vlaneseq
        %v2258 = vshrl.u32 %v2257, 7
        %v2259 = vsub.s32 %v2256, %v2258
        %v2260 = vrot.slane %v2246, %v2259
        %v2261 = vcombine.high %v2245, 0.0
        %v2263 = vunpack.c.l.s4 1934713408
        %v2264 = vunpack.c.0.s8 %v2263
        %v2265 = vlaneseq
        %v2266 = vshrl.u32 %v2265, 7
        %v2267 = vsub.s32 %v2264, %v2266
        %v2268 = vrot.slane %v2245, %v2267
        %v2270 = vunpack.c.l.s4 1934713408
        %v2271 = vunpack.c.0.s8 %v2270
        %v2272 = vlaneseq
        %v2273 = vshrl.u32 %v2272, 7
        %v2274 = vsub.s32 %v2271, %v2273
        %v2275 = vrot.slane %v2261, %v2274
        %v2276 = vcombine.high %v2253, 0.0
        %v2277 = vcombine.high %v2260, 0.0
        %v2278 = vcombine.high %v2268, 0.0
        %v2279 = vcombine.high %v2275, 0.0
        %v2280 = vcombine.high %v568, 0.0
        %v2282 = vunpack.c.l.s4 1983009808
        %v2283 = vunpack.c.0.s8 %v2282
        %v2284 = vlaneseq
        %v2285 = vshrl.u32 %v2284, 7
        %v2286 = vsub.s32 %v2283, %v2285
        %v2287 = vrot.slane %v568, %v2286
        %v2289 = vunpack.c.l.s4 1983009808
        %v2290 = vunpack.c.0.s8 %v2289
        %v2291 = vlaneseq
        %v2292 = vshrl.u32 %v2291, 7
        %v2293 = vsub.s32 %v2290, %v2292
        %v2294 = vrot.slane %v2280, %v2293
        %v2295 = vcombine.high %v2287, 0.0
        %v2297 = vunpack.c.l.s4 1934713408
        %v2298 = vunpack.c.0.s8 %v2297
        %v2299 = vlaneseq
        %v2300 = vshrl.u32 %v2299, 7
        %v2301 = vsub.s32 %v2298, %v2300
        %v2302 = vrot.slane %v2287, %v2301
        %v2304 = vunpack.c.l.s4 1934713408
        %v2305 = vunpack.c.0.s8 %v2304
        %v2306 = vlaneseq
        %v2307 = vshrl.u32 %v2306, 7
        %v2308 = vsub.s32 %v2305, %v2307
        %v2309 = vrot.slane %v2295, %v2308
        %v2310 = vcombine.high %v2294, 0.0
        %v2312 = vunpack.c.l.s4 1934713408
        %v2313 = vunpack.c.0.s8 %v2312
        %v2314 = vlaneseq
        %v2315 = vshrl.u32 %v2314, 7
        %v2316 = vsub.s32 %v2313, %v2315
        %v2317 = vrot.slane %v2294, %v2316
        %v2319 = vunpack.c.l.s4 1934713408
        %v2320 = vunpack.c.0.s8 %v2319
        %v2321 = vlaneseq
        %v2322 = vshrl.u32 %v2321, 7
        %v2323 = vsub.s32 %v2320, %v2322
        %v2324 = vrot.slane %v2310, %v2323
        %v2325 = vcombine.high %v2302, 0.0
        %v2326 = vcombine.high %v2309, 0.0
        %v2327 = vcombine.high %v2317, 0.0
        %v2328 = vcombine.high %v2324, 0.0
        %v2329 = vcombine.high %v569, 0.0
        %v2331 = vunpack.c.l.s4 1983009808
        %v2332 = vunpack.c.0.s8 %v2331
        %v2333 = vlaneseq
        %v2334 = vshrl.u32 %v2333, 7
        %v2335 = vsub.s32 %v2332, %v2334
        %v2336 = vrot.slane %v569, %v2335
        %v2338 = vunpack.c.l.s4 1983009808
        %v2339 = vunpack.c.0.s8 %v2338
        %v2340 = vlaneseq
        %v2341 = vshrl.u32 %v2340, 7
        %v2342 = vsub.s32 %v2339, %v2341
        %v2343 = vrot.slane %v2329, %v2342
        %v2344 = vcombine.high %v2336, 0.0
        %v2346 = vunpack.c.l.s4 1934713408
        %v2347 = vunpack.c.0.s8 %v2346
        %v2348 = vlaneseq
        %v2349 = vshrl.u32 %v2348, 7
        %v2350 = vsub.s32 %v2347, %v2349
        %v2351 = vrot.slane %v2336, %v2350
        %v2353 = vunpack.c.l.s4 1934713408
        %v2354 = vunpack.c.0.s8 %v2353
        %v2355 = vlaneseq
        %v2356 = vshrl.u32 %v2355, 7
        %v2357 = vsub.s32 %v2354, %v2356
        %v2358 = vrot.slane %v2344, %v2357
        %v2359 = vcombine.high %v2343, 0.0
        %v2361 = vunpack.c.l.s4 1934713408
        %v2362 = vunpack.c.0.s8 %v2361
        %v2363 = vlaneseq
        %v2364 = vshrl.u32 %v2363, 7
        %v2365 = vsub.s32 %v2362, %v2364
        %v2366 = vrot.slane %v2343, %v2365
        %v2368 = vunpack.c.l.s4 1934713408
        %v2369 = vunpack.c.0.s8 %v2368
        %v2370 = vlaneseq
        %v2371 = vshrl.u32 %v2370, 7
        %v2372 = vsub.s32 %v2369, %v2371
        %v2373 = vrot.slane %v2359, %v2372
        %v2374 = vcombine.high %v2351, 0.0
        %v2375 = vcombine.high %v2358, 0.0
        %v2376 = vcombine.high %v2366, 0.0
        %v2377 = vcombine.high %v2373, 0.0
        %v2378 = vcombine.high %v570, 0.0
        %v2380 = vunpack.c.l.s4 1983009808
        %v2381 = vunpack.c.0.s8 %v2380
        %v2382 = vlaneseq
        %v2383 = vshrl.u32 %v2382, 7
        %v2384 = vsub.s32 %v2381, %v2383
        %v2385 = vrot.slane %v570, %v2384
        %v2387 = vunpack.c.l.s4 1983009808
        %v2388 = vunpack.c.0.s8 %v2387
        %v2389 = vlaneseq
        %v2390 = vshrl.u32 %v2389, 7
        %v2391 = vsub.s32 %v2388, %v2390
        %v2392 = vrot.slane %v2378, %v2391
        %v2393 = vcombine.high %v2385, 0.0
        %v2395 = vunpack.c.l.s4 1934713408
        %v2396 = vunpack.c.0.s8 %v2395
        %v2397 = vlaneseq
        %v2398 = vshrl.u32 %v2397, 7
        %v2399 = vsub.s32 %v2396, %v2398
        %v2400 = vrot.slane %v2385, %v2399
        %v2402 = vunpack.c.l.s4 1934713408
        %v2403 = vunpack.c.0.s8 %v2402
        %v2404 = vlaneseq
        %v2405 = vshrl.u32 %v2404, 7
        %v2406 = vsub.s32 %v2403, %v2405
        %v2407 = vrot.slane %v2393, %v2406
        %v2408 = vcombine.high %v2392, 0.0
        %v2410 = vunpack.c.l.s4 1934713408
        %v2411 = vunpack.c.0.s8 %v2410
        %v2412 = vlaneseq
        %v2413 = vshrl.u32 %v2412, 7
        %v2414 = vsub.s32 %v2411, %v2413
        %v2415 = vrot.slane %v2392, %v2414
        %v2417 = vunpack.c.l.s4 1934713408
        %v2418 = vunpack.c.0.s8 %v2417
        %v2419 = vlaneseq
        %v2420 = vshrl.u32 %v2419, 7
        %v2421 = vsub.s32 %v2418, %v2420
        %v2422 = vrot.slane %v2408, %v2421
        %v2423 = vcombine.high %v2400, 0.0
        %v2424 = vcombine.high %v2407, 0.0
        %v2425 = vcombine.high %v2415, 0.0
        %v2426 = vcombine.high %v2422, 0.0
        %v2427 = vcombine.high %v571, 0.0
        %v2429 = vunpack.c.l.s4 1983009808
        %v2430 = vunpack.c.0.s8 %v2429
        %v2431 = vlaneseq
        %v2432 = vshrl.u32 %v2431, 7
        %v2433 = vsub.s32 %v2430, %v2432
        %v2434 = vrot.slane %v571, %v2433
        %v2436 = vunpack.c.l.s4 1983009808
        %v2437 = vunpack.c.0.s8 %v2436
        %v2438 = vlaneseq
        %v2439 = vshrl.u32 %v2438, 7
        %v2440 = vsub.s32 %v2437, %v2439
        %v2441 = vrot.slane %v2427, %v2440
        %v2442 = vcombine.high %v2434, 0.0
        %v2444 = vunpack.c.l.s4 1934713408
        %v2445 = vunpack.c.0.s8 %v2444
        %v2446 = vlaneseq
        %v2447 = vshrl.u32 %v2446, 7
        %v2448 = vsub.s32 %v2445, %v2447
        %v2449 = vrot.slane %v2434, %v2448
        %v2451 = vunpack.c.l.s4 1934713408
        %v2452 = vunpack.c.0.s8 %v2451
        %v2453 = vlaneseq
        %v2454 = vshrl.u32 %v2453, 7
        %v2455 = vsub.s32 %v2452, %v2454
        %v2456 = vrot.slane %v2442, %v2455
        %v2457 = vcombine.high %v2441, 0.0
        %v2459 = vunpack.c.l.s4 1934713408
        %v2460 = vunpack.c.0.s8 %v2459
        %v2461 = vlaneseq
        %v2462 = vshrl.u32 %v2461, 7
        %v2463 = vsub.s32 %v2460, %v2462
        %v2464 = vrot.slane %v2441, %v2463
        %v2466 = vunpack.c.l.s4 1934713408
        %v2467 = vunpack.c.0.s8 %v2466
        %v2468 = vlaneseq
        %v2469 = vshrl.u32 %v2468, 7
        %v2470 = vsub.s32 %v2467, %v2469
        %v2471 = vrot.slane %v2457, %v2470
        %v2472 = vcombine.high %v2449, 0.0
        %v2473 = vcombine.high %v2456, 0.0
        %v2474 = vcombine.high %v2464, 0.0
        %v2475 = vcombine.high %v2471, 0.0
        %v2476 = vcombine.high %v572, 0.0
        %v2478 = vunpack.c.l.s4 1983009808
        %v2479 = vunpack.c.0.s8 %v2478
        %v2480 = vlaneseq
        %v2481 = vshrl.u32 %v2480, 7
        %v2482 = vsub.s32 %v2479, %v2481
        %v2483 = vrot.slane %v572, %v2482
        %v2485 = vunpack.c.l.s4 1983009808
        %v2486 = vunpack.c.0.s8 %v2485
        %v2487 = vlaneseq
        %v2488 = vshrl.u32 %v2487, 7
        %v2489 = vsub.s32 %v2486, %v2488
        %v2490 = vrot.slane %v2476, %v2489
        %v2491 = vcombine.high %v2483, 0.0
        %v2493 = vunpack.c.l.s4 1934713408
        %v2494 = vunpack.c.0.s8 %v2493
        %v2495 = vlaneseq
        %v2496 = vshrl.u32 %v2495, 7
        %v2497 = vsub.s32 %v2494, %v2496
        %v2498 = vrot.slane %v2483, %v2497
        %v2500 = vunpack.c.l.s4 1934713408
        %v2501 = vunpack.c.0.s8 %v2500
        %v2502 = vlaneseq
        %v2503 = vshrl.u32 %v2502, 7
        %v2504 = vsub.s32 %v2501, %v2503
        %v2505 = vrot.slane %v2491, %v2504
        %v2506 = vcombine.high %v2490, 0.0
        %v2508 = vunpack.c.l.s4 1934713408
        %v2509 = vunpack.c.0.s8 %v2508
        %v2510 = vlaneseq
        %v2511 = vshrl.u32 %v2510, 7
        %v2512 = vsub.s32 %v2509, %v2511
        %v2513 = vrot.slane %v2490, %v2512
        %v2515 = vunpack.c.l.s4 1934713408
        %v2516 = vunpack.c.0.s8 %v2515
        %v2517 = vlaneseq
        %v2518 = vshrl.u32 %v2517, 7
        %v2519 = vsub.s32 %v2516, %v2518
        %v2520 = vrot.slane %v2506, %v2519
        %v2521 = vcombine.high %v2498, 0.0
        %v2522 = vcombine.high %v2505, 0.0
        %v2523 = vcombine.high %v2513, 0.0
        %v2524 = vcombine.high %v2520, 0.0
        %2541 = vrot.lane.b32.xlu0 %v1002, 2
        %v2542 = vpop.permute.xlu0 %2541
        %2543 = vrot.lane.b32.xlu0 %v1100, 2
        %v2544 = vpop.permute.xlu0 %2543
        %2545 = vrot.lane.b32.xlu0 %v1198, 2
        %v2546 = vpop.permute.xlu0 %2545
        %2547 = vrot.lane.b32.xlu0 %v1296, 2
        %v2548 = vpop.permute.xlu0 %2547
        %2549 = vrot.lane.b32.xlu0 %v1394, 2
        %v2550 = vpop.permute.xlu0 %2549
        %2551 = vrot.lane.b32.xlu0 %v1492, 2
        %v2552 = vpop.permute.xlu0 %2551
        %2553 = vrot.lane.b32.xlu0 %v1590, 2
        %v2554 = vpop.permute.xlu0 %2553
        %2555 = vrot.lane.b32.xlu0 %v1688, 2
        %v2556 = vpop.permute.xlu0 %2555
        %2557 = vrot.lane.b32.xlu0 %v1786, 2
        %v2558 = vpop.permute.xlu0 %2557
        %2559 = vrot.lane.b32.xlu0 %v1884, 2
        %v2560 = vpop.permute.xlu0 %2559
        %2561 = vrot.lane.b32.xlu0 %v1982, 2
        %v2562 = vpop.permute.xlu0 %2561
        %2563 = vrot.lane.b32.xlu0 %v2080, 2
        %v2564 = vpop.permute.xlu0 %2563
        %2565 = vrot.lane.b32.xlu0 %v2178, 2
        %v2566 = vpop.permute.xlu0 %2565
        %2567 = vrot.lane.b32.xlu0 %v2276, 2
        %v2568 = vpop.permute.xlu0 %2567
        %2569 = vrot.lane.b32.xlu0 %v2374, 2
        %v2570 = vpop.permute.xlu0 %2569
        %2571 = vrot.lane.b32.xlu0 %v2472, 2
        %v2572 = vpop.permute.xlu0 %2571
        %2605 = vrot.lane.b32.xlu0 %v986, 4
        %v2606 = vpop.permute.xlu0 %2605
        %2607 = vrot.lane.b32.xlu0 %v1084, 4
        %v2608 = vpop.permute.xlu0 %2607
        %2609 = vrot.lane.b32.xlu0 %v1182, 4
        %v2610 = vpop.permute.xlu0 %2609
        %2611 = vrot.lane.b32.xlu0 %v1280, 4
        %v2612 = vpop.permute.xlu0 %2611
        %2613 = vrot.lane.b32.xlu0 %v1378, 4
        %v2614 = vpop.permute.xlu0 %2613
        %2615 = vrot.lane.b32.xlu0 %v1476, 4
        %v2616 = vpop.permute.xlu0 %2615
        %2617 = vrot.lane.b32.xlu0 %v1574, 4
        %v2618 = vpop.permute.xlu0 %2617
        %2619 = vrot.lane.b32.xlu0 %v1672, 4
        %v2620 = vpop.permute.xlu0 %2619
        %2621 = vrot.lane.b32.xlu0 %v1770, 4
        %v2622 = vpop.permute.xlu0 %2621
        %2623 = vrot.lane.b32.xlu0 %v1868, 4
        %v2624 = vpop.permute.xlu0 %2623
        %2625 = vrot.lane.b32.xlu0 %v1966, 4
        %v2626 = vpop.permute.xlu0 %2625
        %2627 = vrot.lane.b32.xlu0 %v2064, 4
        %v2628 = vpop.permute.xlu0 %2627
        %2629 = vrot.lane.b32.xlu0 %v2162, 4
        %v2630 = vpop.permute.xlu0 %2629
        %2631 = vrot.lane.b32.xlu0 %v2260, 4
        %v2632 = vpop.permute.xlu0 %2631
        %2633 = vrot.lane.b32.xlu0 %v2358, 4
        %v2634 = vpop.permute.xlu0 %2633
        %2635 = vrot.lane.b32.xlu0 %v2456, 4
        %v2636 = vpop.permute.xlu0 %2635
        %2669 = vrot.lane.b32.xlu0 %v1003, 6
        %v2670 = vpop.permute.xlu0 %2669
        %2671 = vrot.lane.b32.xlu0 %v1101, 6
        %v2672 = vpop.permute.xlu0 %2671
        %2673 = vrot.lane.b32.xlu0 %v1199, 6
        %v2674 = vpop.permute.xlu0 %2673
        %2675 = vrot.lane.b32.xlu0 %v1297, 6
        %v2676 = vpop.permute.xlu0 %2675
        %2677 = vrot.lane.b32.xlu0 %v1395, 6
        %v2678 = vpop.permute.xlu0 %2677
        %2679 = vrot.lane.b32.xlu0 %v1493, 6
        %v2680 = vpop.permute.xlu0 %2679
        %2681 = vrot.lane.b32.xlu0 %v1591, 6
        %v2682 = vpop.permute.xlu0 %2681
        %2683 = vrot.lane.b32.xlu0 %v1689, 6
        %v2684 = vpop.permute.xlu0 %2683
        %2685 = vrot.lane.b32.xlu0 %v1787, 6
        %v2686 = vpop.permute.xlu0 %2685
        %2687 = vrot.lane.b32.xlu0 %v1885, 6
        %v2688 = vpop.permute.xlu0 %2687
        %2689 = vrot.lane.b32.xlu0 %v1983, 6
        %v2690 = vpop.permute.xlu0 %2689
        %2691 = vrot.lane.b32.xlu0 %v2081, 6
        %v2692 = vpop.permute.xlu0 %2691
        %2693 = vrot.lane.b32.xlu0 %v2179, 6
        %v2694 = vpop.permute.xlu0 %2693
        %2695 = vrot.lane.b32.xlu0 %v2277, 6
        %v2696 = vpop.permute.xlu0 %2695
        %2697 = vrot.lane.b32.xlu0 %v2375, 6
        %v2698 = vpop.permute.xlu0 %2697
        %2699 = vrot.lane.b32.xlu0 %v2473, 6
        %v2700 = vpop.permute.xlu0 %2699
        %2733 = vrot.lane.b32.xlu0 %v994, 8
        %v2734 = vpop.permute.xlu0 %2733
        %2735 = vrot.lane.b32.xlu0 %v1092, 8
        %v2736 = vpop.permute.xlu0 %2735
        %2737 = vrot.lane.b32.xlu0 %v1190, 8
        %v2738 = vpop.permute.xlu0 %2737
        %2739 = vrot.lane.b32.xlu0 %v1288, 8
        %v2740 = vpop.permute.xlu0 %2739
        %2741 = vrot.lane.b32.xlu0 %v1386, 8
        %v2742 = vpop.permute.xlu0 %2741
        %2743 = vrot.lane.b32.xlu0 %v1484, 8
        %v2744 = vpop.permute.xlu0 %2743
        %2745 = vrot.lane.b32.xlu0 %v1582, 8
        %v2746 = vpop.permute.xlu0 %2745
        %2747 = vrot.lane.b32.xlu0 %v1680, 8
        %v2748 = vpop.permute.xlu0 %2747
        %2749 = vrot.lane.b32.xlu0 %v1778, 8
        %v2750 = vpop.permute.xlu0 %2749
        %2751 = vrot.lane.b32.xlu0 %v1876, 8
        %v2752 = vpop.permute.xlu0 %2751
        %2753 = vrot.lane.b32.xlu0 %v1974, 8
        %v2754 = vpop.permute.xlu0 %2753
        %2755 = vrot.lane.b32.xlu0 %v2072, 8
        %v2756 = vpop.permute.xlu0 %2755
        %2757 = vrot.lane.b32.xlu0 %v2170, 8
        %v2758 = vpop.permute.xlu0 %2757
        %2759 = vrot.lane.b32.xlu0 %v2268, 8
        %v2760 = vpop.permute.xlu0 %2759
        %2761 = vrot.lane.b32.xlu0 %v2366, 8
        %v2762 = vpop.permute.xlu0 %2761
        %2763 = vrot.lane.b32.xlu0 %v2464, 8
        %v2764 = vpop.permute.xlu0 %2763
        %2797 = vrot.lane.b32.xlu0 %v1004, 10
        %v2798 = vpop.permute.xlu0 %2797
        %2799 = vrot.lane.b32.xlu0 %v1102, 10
        %v2800 = vpop.permute.xlu0 %2799
        %2801 = vrot.lane.b32.xlu0 %v1200, 10
        %v2802 = vpop.permute.xlu0 %2801
        %2803 = vrot.lane.b32.xlu0 %v1298, 10
        %v2804 = vpop.permute.xlu0 %2803
        %2805 = vrot.lane.b32.xlu0 %v1396, 10
        %v2806 = vpop.permute.xlu0 %2805
        %2807 = vrot.lane.b32.xlu0 %v1494, 10
        %v2808 = vpop.permute.xlu0 %2807
        %2809 = vrot.lane.b32.xlu0 %v1592, 10
        %v2810 = vpop.permute.xlu0 %2809
        %2811 = vrot.lane.b32.xlu0 %v1690, 10
        %v2812 = vpop.permute.xlu0 %2811
        %2813 = vrot.lane.b32.xlu0 %v1788, 10
        %v2814 = vpop.permute.xlu0 %2813
        %2815 = vrot.lane.b32.xlu0 %v1886, 10
        %v2816 = vpop.permute.xlu0 %2815
        %2817 = vrot.lane.b32.xlu0 %v1984, 10
        %v2818 = vpop.permute.xlu0 %2817
        %2819 = vrot.lane.b32.xlu0 %v2082, 10
        %v2820 = vpop.permute.xlu0 %2819
        %2821 = vrot.lane.b32.xlu0 %v2180, 10
        %v2822 = vpop.permute.xlu0 %2821
        %2823 = vrot.lane.b32.xlu0 %v2278, 10
        %v2824 = vpop.permute.xlu0 %2823
        %2825 = vrot.lane.b32.xlu0 %v2376, 10
        %v2826 = vpop.permute.xlu0 %2825
        %2827 = vrot.lane.b32.xlu0 %v2474, 10
        %v2828 = vpop.permute.xlu0 %2827
        %2861 = vrot.lane.b32.xlu0 %v1001, 12
        %v2862 = vpop.permute.xlu0 %2861
        %2863 = vrot.lane.b32.xlu0 %v1099, 12
        %v2864 = vpop.permute.xlu0 %2863
        %2865 = vrot.lane.b32.xlu0 %v1197, 12
        %v2866 = vpop.permute.xlu0 %2865
        %2867 = vrot.lane.b32.xlu0 %v1295, 12
        %v2868 = vpop.permute.xlu0 %2867
        %2869 = vrot.lane.b32.xlu0 %v1393, 12
        %v2870 = vpop.permute.xlu0 %2869
        %2871 = vrot.lane.b32.xlu0 %v1491, 12
        %v2872 = vpop.permute.xlu0 %2871
        %2873 = vrot.lane.b32.xlu0 %v1589, 12
        %v2874 = vpop.permute.xlu0 %2873
        %2875 = vrot.lane.b32.xlu0 %v1687, 12
        %v2876 = vpop.permute.xlu0 %2875
        %2877 = vrot.lane.b32.xlu0 %v1785, 12
        %v2878 = vpop.permute.xlu0 %2877
        %2879 = vrot.lane.b32.xlu0 %v1883, 12
        %v2880 = vpop.permute.xlu0 %2879
        %2881 = vrot.lane.b32.xlu0 %v1981, 12
        %v2882 = vpop.permute.xlu0 %2881
        %2883 = vrot.lane.b32.xlu0 %v2079, 12
        %v2884 = vpop.permute.xlu0 %2883
        %2885 = vrot.lane.b32.xlu0 %v2177, 12
        %v2886 = vpop.permute.xlu0 %2885
        %2887 = vrot.lane.b32.xlu0 %v2275, 12
        %v2888 = vpop.permute.xlu0 %2887
        %2889 = vrot.lane.b32.xlu0 %v2373, 12
        %v2890 = vpop.permute.xlu0 %2889
        %2891 = vrot.lane.b32.xlu0 %v2471, 12
        %v2892 = vpop.permute.xlu0 %2891
        %2925 = vrot.lane.b32.xlu0 %v1005, 14
        %v2926 = vpop.permute.xlu0 %2925
        %2927 = vrot.lane.b32.xlu0 %v1103, 14
        %v2928 = vpop.permute.xlu0 %2927
        %2929 = vrot.lane.b32.xlu0 %v1201, 14
        %v2930 = vpop.permute.xlu0 %2929
        %2931 = vrot.lane.b32.xlu0 %v1299, 14
        %v2932 = vpop.permute.xlu0 %2931
        %2933 = vrot.lane.b32.xlu0 %v1397, 14
        %v2934 = vpop.permute.xlu0 %2933
        %2935 = vrot.lane.b32.xlu0 %v1495, 14
        %v2936 = vpop.permute.xlu0 %2935
        %2937 = vrot.lane.b32.xlu0 %v1593, 14
        %v2938 = vpop.permute.xlu0 %2937
        %2939 = vrot.lane.b32.xlu0 %v1691, 14
        %v2940 = vpop.permute.xlu0 %2939
        %2941 = vrot.lane.b32.xlu0 %v1789, 14
        %v2942 = vpop.permute.xlu0 %2941
        %2943 = vrot.lane.b32.xlu0 %v1887, 14
        %v2944 = vpop.permute.xlu0 %2943
        %2945 = vrot.lane.b32.xlu0 %v1985, 14
        %v2946 = vpop.permute.xlu0 %2945
        %2947 = vrot.lane.b32.xlu0 %v2083, 14
        %v2948 = vpop.permute.xlu0 %2947
        %2949 = vrot.lane.b32.xlu0 %v2181, 14
        %v2950 = vpop.permute.xlu0 %2949
        %2951 = vrot.lane.b32.xlu0 %v2279, 14
        %v2952 = vpop.permute.xlu0 %2951
        %2953 = vrot.lane.b32.xlu0 %v2377, 14
        %v2954 = vpop.permute.xlu0 %2953
        %2955 = vrot.lane.b32.xlu0 %v2475, 14
        %v2956 = vpop.permute.xlu0 %2955
        %2989 = vrot.lane.b32.xlu0 %v1028, 16
        %v2990 = vpop.permute.xlu0 %2989
        %2991 = vrot.lane.b32.xlu0 %v1126, 16
        %v2992 = vpop.permute.xlu0 %2991
        %2993 = vrot.lane.b32.xlu0 %v1224, 16
        %v2994 = vpop.permute.xlu0 %2993
        %2995 = vrot.lane.b32.xlu0 %v1322, 16
        %v2996 = vpop.permute.xlu0 %2995
        %2997 = vrot.lane.b32.xlu0 %v1420, 16
        %v2998 = vpop.permute.xlu0 %2997
        %2999 = vrot.lane.b32.xlu0 %v1518, 16
        %v3000 = vpop.permute.xlu0 %2999
        %3001 = vrot.lane.b32.xlu0 %v1616, 16
        %v3002 = vpop.permute.xlu0 %3001
        %3003 = vrot.lane.b32.xlu0 %v1714, 16
        %v3004 = vpop.permute.xlu0 %3003
        %3005 = vrot.lane.b32.xlu0 %v1812, 16
        %v3006 = vpop.permute.xlu0 %3005
        %3007 = vrot.lane.b32.xlu0 %v1910, 16
        %v3008 = vpop.permute.xlu0 %3007
        %3009 = vrot.lane.b32.xlu0 %v2008, 16
        %v3010 = vpop.permute.xlu0 %3009
        %3011 = vrot.lane.b32.xlu0 %v2106, 16
        %v3012 = vpop.permute.xlu0 %3011
        %3013 = vrot.lane.b32.xlu0 %v2204, 16
        %v3014 = vpop.permute.xlu0 %3013
        %3015 = vrot.lane.b32.xlu0 %v2302, 16
        %v3016 = vpop.permute.xlu0 %3015
        %3017 = vrot.lane.b32.xlu0 %v2400, 16
        %v3018 = vpop.permute.xlu0 %3017
        %3019 = vrot.lane.b32.xlu0 %v2498, 16
        %v3020 = vpop.permute.xlu0 %3019
        %3053 = vrot.lane.b32.xlu0 %v1051, 18
        %v3054 = vpop.permute.xlu0 %3053
        %3055 = vrot.lane.b32.xlu0 %v1149, 18
        %v3056 = vpop.permute.xlu0 %3055
        %3057 = vrot.lane.b32.xlu0 %v1247, 18
        %v3058 = vpop.permute.xlu0 %3057
        %3059 = vrot.lane.b32.xlu0 %v1345, 18
        %v3060 = vpop.permute.xlu0 %3059
        %3061 = vrot.lane.b32.xlu0 %v1443, 18
        %v3062 = vpop.permute.xlu0 %3061
        %3063 = vrot.lane.b32.xlu0 %v1541, 18
        %v3064 = vpop.permute.xlu0 %3063
        %3065 = vrot.lane.b32.xlu0 %v1639, 18
        %v3066 = vpop.permute.xlu0 %3065
        %3067 = vrot.lane.b32.xlu0 %v1737, 18
        %v3068 = vpop.permute.xlu0 %3067
        %3069 = vrot.lane.b32.xlu0 %v1835, 18
        %v3070 = vpop.permute.xlu0 %3069
        %3071 = vrot.lane.b32.xlu0 %v1933, 18
        %v3072 = vpop.permute.xlu0 %3071
        %3073 = vrot.lane.b32.xlu0 %v2031, 18
        %v3074 = vpop.permute.xlu0 %3073
        %3075 = vrot.lane.b32.xlu0 %v2129, 18
        %v3076 = vpop.permute.xlu0 %3075
        %3077 = vrot.lane.b32.xlu0 %v2227, 18
        %v3078 = vpop.permute.xlu0 %3077
        %3079 = vrot.lane.b32.xlu0 %v2325, 18
        %v3080 = vpop.permute.xlu0 %3079
        %3081 = vrot.lane.b32.xlu0 %v2423, 18
        %v3082 = vpop.permute.xlu0 %3081
        %3083 = vrot.lane.b32.xlu0 %v2521, 18
        %v3084 = vpop.permute.xlu0 %3083
        %3117 = vrot.lane.b32.xlu0 %v1035, 20
        %v3118 = vpop.permute.xlu0 %3117
        %3119 = vrot.lane.b32.xlu0 %v1133, 20
        %v3120 = vpop.permute.xlu0 %3119
        %3121 = vrot.lane.b32.xlu0 %v1231, 20
        %v3122 = vpop.permute.xlu0 %3121
        %3123 = vrot.lane.b32.xlu0 %v1329, 20
        %v3124 = vpop.permute.xlu0 %3123
        %3125 = vrot.lane.b32.xlu0 %v1427, 20
        %v3126 = vpop.permute.xlu0 %3125
        %3127 = vrot.lane.b32.xlu0 %v1525, 20
        %v3128 = vpop.permute.xlu0 %3127
        %3129 = vrot.lane.b32.xlu0 %v1623, 20
        %v3130 = vpop.permute.xlu0 %3129
        %3131 = vrot.lane.b32.xlu0 %v1721, 20
        %v3132 = vpop.permute.xlu0 %3131
        %3133 = vrot.lane.b32.xlu0 %v1819, 20
        %v3134 = vpop.permute.xlu0 %3133
        %3135 = vrot.lane.b32.xlu0 %v1917, 20
        %v3136 = vpop.permute.xlu0 %3135
        %3137 = vrot.lane.b32.xlu0 %v2015, 20
        %v3138 = vpop.permute.xlu0 %3137
        %3139 = vrot.lane.b32.xlu0 %v2113, 20
        %v3140 = vpop.permute.xlu0 %3139
        %3141 = vrot.lane.b32.xlu0 %v2211, 20
        %v3142 = vpop.permute.xlu0 %3141
        %3143 = vrot.lane.b32.xlu0 %v2309, 20
        %v3144 = vpop.permute.xlu0 %3143
        %3145 = vrot.lane.b32.xlu0 %v2407, 20
        %v3146 = vpop.permute.xlu0 %3145
        %3147 = vrot.lane.b32.xlu0 %v2505, 20
        %v3148 = vpop.permute.xlu0 %3147
        %3181 = vrot.lane.b32.xlu0 %v1052, 22
        %v3182 = vpop.permute.xlu0 %3181
        %3183 = vrot.lane.b32.xlu0 %v1150, 22
        %v3184 = vpop.permute.xlu0 %3183
        %3185 = vrot.lane.b32.xlu0 %v1248, 22
        %v3186 = vpop.permute.xlu0 %3185
        %3187 = vrot.lane.b32.xlu0 %v1346, 22
        %v3188 = vpop.permute.xlu0 %3187
        %3189 = vrot.lane.b32.xlu0 %v1444, 22
        %v3190 = vpop.permute.xlu0 %3189
        %3191 = vrot.lane.b32.xlu0 %v1542, 22
        %v3192 = vpop.permute.xlu0 %3191
        %3193 = vrot.lane.b32.xlu0 %v1640, 22
        %v3194 = vpop.permute.xlu0 %3193
        %3195 = vrot.lane.b32.xlu0 %v1738, 22
        %v3196 = vpop.permute.xlu0 %3195
        %3197 = vrot.lane.b32.xlu0 %v1836, 22
        %v3198 = vpop.permute.xlu0 %3197
        %3199 = vrot.lane.b32.xlu0 %v1934, 22
        %v3200 = vpop.permute.xlu0 %3199
        %3201 = vrot.lane.b32.xlu0 %v2032, 22
        %v3202 = vpop.permute.xlu0 %3201
        %3203 = vrot.lane.b32.xlu0 %v2130, 22
        %v3204 = vpop.permute.xlu0 %3203
        %3205 = vrot.lane.b32.xlu0 %v2228, 22
        %v3206 = vpop.permute.xlu0 %3205
        %3207 = vrot.lane.b32.xlu0 %v2326, 22
        %v3208 = vpop.permute.xlu0 %3207
        %3209 = vrot.lane.b32.xlu0 %v2424, 22
        %v3210 = vpop.permute.xlu0 %3209
        %3211 = vrot.lane.b32.xlu0 %v2522, 22
        %v3212 = vpop.permute.xlu0 %3211
        %3245 = vrot.lane.b32.xlu0 %v1043, 24
        %v3246 = vpop.permute.xlu0 %3245
        %3247 = vrot.lane.b32.xlu0 %v1141, 24
        %v3248 = vpop.permute.xlu0 %3247
        %3249 = vrot.lane.b32.xlu0 %v1239, 24
        %v3250 = vpop.permute.xlu0 %3249
        %3251 = vrot.lane.b32.xlu0 %v1337, 24
        %v3252 = vpop.permute.xlu0 %3251
        %3253 = vrot.lane.b32.xlu0 %v1435, 24
        %v3254 = vpop.permute.xlu0 %3253
        %3255 = vrot.lane.b32.xlu0 %v1533, 24
        %v3256 = vpop.permute.xlu0 %3255
        %3257 = vrot.lane.b32.xlu0 %v1631, 24
        %v3258 = vpop.permute.xlu0 %3257
        %3259 = vrot.lane.b32.xlu0 %v1729, 24
        %v3260 = vpop.permute.xlu0 %3259
        %3261 = vrot.lane.b32.xlu0 %v1827, 24
        %v3262 = vpop.permute.xlu0 %3261
        %3263 = vrot.lane.b32.xlu0 %v1925, 24
        %v3264 = vpop.permute.xlu0 %3263
        %3265 = vrot.lane.b32.xlu0 %v2023, 24
        %v3266 = vpop.permute.xlu0 %3265
        %3267 = vrot.lane.b32.xlu0 %v2121, 24
        %v3268 = vpop.permute.xlu0 %3267
        %3269 = vrot.lane.b32.xlu0 %v2219, 24
        %v3270 = vpop.permute.xlu0 %3269
        %3271 = vrot.lane.b32.xlu0 %v2317, 24
        %v3272 = vpop.permute.xlu0 %3271
        %3273 = vrot.lane.b32.xlu0 %v2415, 24
        %v3274 = vpop.permute.xlu0 %3273
        %3275 = vrot.lane.b32.xlu0 %v2513, 24
        %v3276 = vpop.permute.xlu0 %3275
        %3309 = vrot.lane.b32.xlu0 %v1053, 26
        %v3310 = vpop.permute.xlu0 %3309
        %3311 = vrot.lane.b32.xlu0 %v1151, 26
        %v3312 = vpop.permute.xlu0 %3311
        %3313 = vrot.lane.b32.xlu0 %v1249, 26
        %v3314 = vpop.permute.xlu0 %3313
        %3315 = vrot.lane.b32.xlu0 %v1347, 26
        %v3316 = vpop.permute.xlu0 %3315
        %3317 = vrot.lane.b32.xlu0 %v1445, 26
        %v3318 = vpop.permute.xlu0 %3317
        %3319 = vrot.lane.b32.xlu0 %v1543, 26
        %v3320 = vpop.permute.xlu0 %3319
        %3321 = vrot.lane.b32.xlu0 %v1641, 26
        %v3322 = vpop.permute.xlu0 %3321
        %3323 = vrot.lane.b32.xlu0 %v1739, 26
        %v3324 = vpop.permute.xlu0 %3323
        %3325 = vrot.lane.b32.xlu0 %v1837, 26
        %v3326 = vpop.permute.xlu0 %3325
        %3327 = vrot.lane.b32.xlu0 %v1935, 26
        %v3328 = vpop.permute.xlu0 %3327
        %3329 = vrot.lane.b32.xlu0 %v2033, 26
        %v3330 = vpop.permute.xlu0 %3329
        %3331 = vrot.lane.b32.xlu0 %v2131, 26
        %v3332 = vpop.permute.xlu0 %3331
        %3333 = vrot.lane.b32.xlu0 %v2229, 26
        %v3334 = vpop.permute.xlu0 %3333
        %3335 = vrot.lane.b32.xlu0 %v2327, 26
        %v3336 = vpop.permute.xlu0 %3335
        %3337 = vrot.lane.b32.xlu0 %v2425, 26
        %v3338 = vpop.permute.xlu0 %3337
        %3339 = vrot.lane.b32.xlu0 %v2523, 26
        %v3340 = vpop.permute.xlu0 %3339
        %3373 = vrot.lane.b32.xlu0 %v1050, 28
        %v3374 = vpop.permute.xlu0 %3373
        %3375 = vrot.lane.b32.xlu0 %v1148, 28
        %v3376 = vpop.permute.xlu0 %3375
        %3377 = vrot.lane.b32.xlu0 %v1246, 28
        %v3378 = vpop.permute.xlu0 %3377
        %3379 = vrot.lane.b32.xlu0 %v1344, 28
        %v3380 = vpop.permute.xlu0 %3379
        %3381 = vrot.lane.b32.xlu0 %v1442, 28
        %v3382 = vpop.permute.xlu0 %3381
        %3383 = vrot.lane.b32.xlu0 %v1540, 28
        %v3384 = vpop.permute.xlu0 %3383
        %3385 = vrot.lane.b32.xlu0 %v1638, 28
        %v3386 = vpop.permute.xlu0 %3385
        %3387 = vrot.lane.b32.xlu0 %v1736, 28
        %v3388 = vpop.permute.xlu0 %3387
        %3389 = vrot.lane.b32.xlu0 %v1834, 28
        %v3390 = vpop.permute.xlu0 %3389
        %3391 = vrot.lane.b32.xlu0 %v1932, 28
        %v3392 = vpop.permute.xlu0 %3391
        %3393 = vrot.lane.b32.xlu0 %v2030, 28
        %v3394 = vpop.permute.xlu0 %3393
        %3395 = vrot.lane.b32.xlu0 %v2128, 28
        %v3396 = vpop.permute.xlu0 %3395
        %3397 = vrot.lane.b32.xlu0 %v2226, 28
        %v3398 = vpop.permute.xlu0 %3397
        %3399 = vrot.lane.b32.xlu0 %v2324, 28
        %v3400 = vpop.permute.xlu0 %3399
        %3401 = vrot.lane.b32.xlu0 %v2422, 28
        %v3402 = vpop.permute.xlu0 %3401
        %3403 = vrot.lane.b32.xlu0 %v2520, 28
        %v3404 = vpop.permute.xlu0 %3403
        %3437 = vrot.lane.b32.xlu0 %v1054, 30
        %v3438 = vpop.permute.xlu0 %3437
        %3439 = vrot.lane.b32.xlu0 %v1152, 30
        %v3440 = vpop.permute.xlu0 %3439
        %3441 = vrot.lane.b32.xlu0 %v1250, 30
        %v3442 = vpop.permute.xlu0 %3441
        %3443 = vrot.lane.b32.xlu0 %v1348, 30
        %v3444 = vpop.permute.xlu0 %3443
        %3445 = vrot.lane.b32.xlu0 %v1446, 30
        %v3446 = vpop.permute.xlu0 %3445
        %3447 = vrot.lane.b32.xlu0 %v1544, 30
        %v3448 = vpop.permute.xlu0 %3447
        %3449 = vrot.lane.b32.xlu0 %v1642, 30
        %v3450 = vpop.permute.xlu0 %3449
        %3451 = vrot.lane.b32.xlu0 %v1740, 30
        %v3452 = vpop.permute.xlu0 %3451
        %3453 = vrot.lane.b32.xlu0 %v1838, 30
        %v3454 = vpop.permute.xlu0 %3453
        %3455 = vrot.lane.b32.xlu0 %v1936, 30
        %v3456 = vpop.permute.xlu0 %3455
        %3457 = vrot.lane.b32.xlu0 %v2034, 30
        %v3458 = vpop.permute.xlu0 %3457
        %3459 = vrot.lane.b32.xlu0 %v2132, 30
        %v3460 = vpop.permute.xlu0 %3459
        %3461 = vrot.lane.b32.xlu0 %v2230, 30
        %v3462 = vpop.permute.xlu0 %3461
        %3463 = vrot.lane.b32.xlu0 %v2328, 30
        %v3464 = vpop.permute.xlu0 %3463
        %3465 = vrot.lane.b32.xlu0 %v2426, 30
        %v3466 = vpop.permute.xlu0 %3465
        %3467 = vrot.lane.b32.xlu0 %v2524, 30
        %v3468 = vpop.permute.xlu0 %3467
        %vm3485 = vcmask 15360
        %v3486 = vsel %vm3485, %v979, %v2542
        %v3487 = vsel %vm3485, %v1077, %v2544
        %v3488 = vsel %vm3485, %v1175, %v2546
        %v3489 = vsel %vm3485, %v1273, %v2548
        %v3490 = vsel %vm3485, %v1371, %v2550
        %v3491 = vsel %vm3485, %v1469, %v2552
        %v3492 = vsel %vm3485, %v1567, %v2554
        %v3493 = vsel %vm3485, %v1665, %v2556
        %v3494 = vsel %vm3485, %v1763, %v2558
        %v3495 = vsel %vm3485, %v1861, %v2560
        %v3496 = vsel %vm3485, %v1959, %v2562
        %v3497 = vsel %vm3485, %v2057, %v2564
        %v3498 = vsel %vm3485, %v2155, %v2566
        %v3499 = vsel %vm3485, %v2253, %v2568
        %v3500 = vsel %vm3485, %v2351, %v2570
        %v3501 = vsel %vm3485, %v2449, %v2572
        %vm3502 = vcmask 31744
        %v3503 = vsel %vm3502, %v3486, %v2606
        %v3504 = vsel %vm3502, %v3487, %v2608
        %v3505 = vsel %vm3502, %v3488, %v2610
        %v3506 = vsel %vm3502, %v3489, %v2612
        %v3507 = vsel %vm3502, %v3490, %v2614
        %v3508 = vsel %vm3502, %v3491, %v2616
        %v3509 = vsel %vm3502, %v3492, %v2618
        %v3510 = vsel %vm3502, %v3493, %v2620
        %v3511 = vsel %vm3502, %v3494, %v2622
        %v3512 = vsel %vm3502, %v3495, %v2624
        %v3513 = vsel %vm3502, %v3496, %v2626
        %v3514 = vsel %vm3502, %v3497, %v2628
        %v3515 = vsel %vm3502, %v3498, %v2630
        %v3516 = vsel %vm3502, %v3499, %v2632
        %v3517 = vsel %vm3502, %v3500, %v2634
        %v3518 = vsel %vm3502, %v3501, %v2636
        %vm3519 = vcmask 48128
        %v3520 = vsel %vm3519, %v3503, %v2670
        %v3521 = vsel %vm3519, %v3504, %v2672
        %v3522 = vsel %vm3519, %v3505, %v2674
        %v3523 = vsel %vm3519, %v3506, %v2676
        %v3524 = vsel %vm3519, %v3507, %v2678
        %v3525 = vsel %vm3519, %v3508, %v2680
        %v3526 = vsel %vm3519, %v3509, %v2682
        %v3527 = vsel %vm3519, %v3510, %v2684
        %v3528 = vsel %vm3519, %v3511, %v2686
        %v3529 = vsel %vm3519, %v3512, %v2688
        %v3530 = vsel %vm3519, %v3513, %v2690
        %v3531 = vsel %vm3519, %v3514, %v2692
        %v3532 = vsel %vm3519, %v3515, %v2694
        %v3533 = vsel %vm3519, %v3516, %v2696
        %v3534 = vsel %vm3519, %v3517, %v2698
        %v3535 = vsel %vm3519, %v3518, %v2700
        %vm3536 = vcmask 64512
        %v3537 = vsel %vm3536, %v3520, %v2734
        %v3538 = vsel %vm3536, %v3521, %v2736
        %v3539 = vsel %vm3536, %v3522, %v2738
        %v3540 = vsel %vm3536, %v3523, %v2740
        %v3541 = vsel %vm3536, %v3524, %v2742
        %v3542 = vsel %vm3536, %v3525, %v2744
        %v3543 = vsel %vm3536, %v3526, %v2746
        %v3544 = vsel %vm3536, %v3527, %v2748
        %v3545 = vsel %vm3536, %v3528, %v2750
        %v3546 = vsel %vm3536, %v3529, %v2752
        %v3547 = vsel %vm3536, %v3530, %v2754
        %v3548 = vsel %vm3536, %v3531, %v2756
        %v3549 = vsel %vm3536, %v3532, %v2758
        %v3550 = vsel %vm3536, %v3533, %v2760
        %v3551 = vsel %vm3536, %v3534, %v2762
        %v3552 = vsel %vm3536, %v3535, %v2764
        %vm3553 = vcmask 80896
        %v3554 = vsel %vm3553, %v3537, %v2798
        %v3555 = vsel %vm3553, %v3538, %v2800
        %v3556 = vsel %vm3553, %v3539, %v2802
        %v3557 = vsel %vm3553, %v3540, %v2804
        %v3558 = vsel %vm3553, %v3541, %v2806
        %v3559 = vsel %vm3553, %v3542, %v2808
        %v3560 = vsel %vm3553, %v3543, %v2810
        %v3561 = vsel %vm3553, %v3544, %v2812
        %v3562 = vsel %vm3553, %v3545, %v2814
        %v3563 = vsel %vm3553, %v3546, %v2816
        %v3564 = vsel %vm3553, %v3547, %v2818
        %v3565 = vsel %vm3553, %v3548, %v2820
        %v3566 = vsel %vm3553, %v3549, %v2822
        %v3567 = vsel %vm3553, %v3550, %v2824
        %v3568 = vsel %vm3553, %v3551, %v2826
        %v3569 = vsel %vm3553, %v3552, %v2828
        %vm3570 = vcmask 97280
        %v3571 = vsel %vm3570, %v3554, %v2862
        %v3572 = vsel %vm3570, %v3555, %v2864
        %v3573 = vsel %vm3570, %v3556, %v2866
        %v3574 = vsel %vm3570, %v3557, %v2868
        %v3575 = vsel %vm3570, %v3558, %v2870
        %v3576 = vsel %vm3570, %v3559, %v2872
        %v3577 = vsel %vm3570, %v3560, %v2874
        %v3578 = vsel %vm3570, %v3561, %v2876
        %v3579 = vsel %vm3570, %v3562, %v2878
        %v3580 = vsel %vm3570, %v3563, %v2880
        %v3581 = vsel %vm3570, %v3564, %v2882
        %v3582 = vsel %vm3570, %v3565, %v2884
        %v3583 = vsel %vm3570, %v3566, %v2886
        %v3584 = vsel %vm3570, %v3567, %v2888
        %v3585 = vsel %vm3570, %v3568, %v2890
        %v3586 = vsel %vm3570, %v3569, %v2892
        %vm3587 = vcmask 113664
        %v3588 = vsel %vm3587, %v3571, %v2926
        %v3589 = vsel %vm3587, %v3572, %v2928
        %v3590 = vsel %vm3587, %v3573, %v2930
        %v3591 = vsel %vm3587, %v3574, %v2932
        %v3592 = vsel %vm3587, %v3575, %v2934
        %v3593 = vsel %vm3587, %v3576, %v2936
        %v3594 = vsel %vm3587, %v3577, %v2938
        %v3595 = vsel %vm3587, %v3578, %v2940
        %v3596 = vsel %vm3587, %v3579, %v2942
        %v3597 = vsel %vm3587, %v3580, %v2944
        %v3598 = vsel %vm3587, %v3581, %v2946
        %v3599 = vsel %vm3587, %v3582, %v2948
        %v3600 = vsel %vm3587, %v3583, %v2950
        %v3601 = vsel %vm3587, %v3584, %v2952
        %v3602 = vsel %vm3587, %v3585, %v2954
        %v3603 = vsel %vm3587, %v3586, %v2956
        %vm3604 = vcmask 130048
        %v3605 = vsel %vm3604, %v3588, %v2990
        %v3606 = vsel %vm3604, %v3589, %v2992
        %v3607 = vsel %vm3604, %v3590, %v2994
        %v3608 = vsel %vm3604, %v3591, %v2996
        %v3609 = vsel %vm3604, %v3592, %v2998
        %v3610 = vsel %vm3604, %v3593, %v3000
        %v3611 = vsel %vm3604, %v3594, %v3002
        %v3612 = vsel %vm3604, %v3595, %v3004
        %v3613 = vsel %vm3604, %v3596, %v3006
        %v3614 = vsel %vm3604, %v3597, %v3008
        %v3615 = vsel %vm3604, %v3598, %v3010
        %v3616 = vsel %vm3604, %v3599, %v3012
        %v3617 = vsel %vm3604, %v3600, %v3014
        %v3618 = vsel %vm3604, %v3601, %v3016
        %v3619 = vsel %vm3604, %v3602, %v3018
        %v3620 = vsel %vm3604, %v3603, %v3020
        %vm3621 = vcmask 146432
        %v3622 = vsel %vm3621, %v3605, %v3054
        %v3623 = vsel %vm3621, %v3606, %v3056
        %v3624 = vsel %vm3621, %v3607, %v3058
        %v3625 = vsel %vm3621, %v3608, %v3060
        %v3626 = vsel %vm3621, %v3609, %v3062
        %v3627 = vsel %vm3621, %v3610, %v3064
        %v3628 = vsel %vm3621, %v3611, %v3066
        %v3629 = vsel %vm3621, %v3612, %v3068
        %v3630 = vsel %vm3621, %v3613, %v3070
        %v3631 = vsel %vm3621, %v3614, %v3072
        %v3632 = vsel %vm3621, %v3615, %v3074
        %v3633 = vsel %vm3621, %v3616, %v3076
        %v3634 = vsel %vm3621, %v3617, %v3078
        %v3635 = vsel %vm3621, %v3618, %v3080
        %v3636 = vsel %vm3621, %v3619, %v3082
        %v3637 = vsel %vm3621, %v3620, %v3084
        %vm3638 = vcmask 162816
        %v3639 = vsel %vm3638, %v3622, %v3118
        %v3640 = vsel %vm3638, %v3623, %v3120
        %v3641 = vsel %vm3638, %v3624, %v3122
        %v3642 = vsel %vm3638, %v3625, %v3124
        %v3643 = vsel %vm3638, %v3626, %v3126
        %v3644 = vsel %vm3638, %v3627, %v3128
        %v3645 = vsel %vm3638, %v3628, %v3130
        %v3646 = vsel %vm3638, %v3629, %v3132
        %v3647 = vsel %vm3638, %v3630, %v3134
        %v3648 = vsel %vm3638, %v3631, %v3136
        %v3649 = vsel %vm3638, %v3632, %v3138
        %v3650 = vsel %vm3638, %v3633, %v3140
        %v3651 = vsel %vm3638, %v3634, %v3142
        %v3652 = vsel %vm3638, %v3635, %v3144
        %v3653 = vsel %vm3638, %v3636, %v3146
        %v3654 = vsel %vm3638, %v3637, %v3148
        %vm3655 = vcmask 179200
        %v3656 = vsel %vm3655, %v3639, %v3182
        %v3657 = vsel %vm3655, %v3640, %v3184
        %v3658 = vsel %vm3655, %v3641, %v3186
        %v3659 = vsel %vm3655, %v3642, %v3188
        %v3660 = vsel %vm3655, %v3643, %v3190
        %v3661 = vsel %vm3655, %v3644, %v3192
        %v3662 = vsel %vm3655, %v3645, %v3194
        %v3663 = vsel %vm3655, %v3646, %v3196
        %v3664 = vsel %vm3655, %v3647, %v3198
        %v3665 = vsel %vm3655, %v3648, %v3200
        %v3666 = vsel %vm3655, %v3649, %v3202
        %v3667 = vsel %vm3655, %v3650, %v3204
        %v3668 = vsel %vm3655, %v3651, %v3206
        %v3669 = vsel %vm3655, %v3652, %v3208
        %v3670 = vsel %vm3655, %v3653, %v3210
        %v3671 = vsel %vm3655, %v3654, %v3212
        %vm3672 = vcmask 195584
        %v3673 = vsel %vm3672, %v3656, %v3246
        %v3674 = vsel %vm3672, %v3657, %v3248
        %v3675 = vsel %vm3672, %v3658, %v3250
        %v3676 = vsel %vm3672, %v3659, %v3252
        %v3677 = vsel %vm3672, %v3660, %v3254
        %v3678 = vsel %vm3672, %v3661, %v3256
        %v3679 = vsel %vm3672, %v3662, %v3258
        %v3680 = vsel %vm3672, %v3663, %v3260
        %v3681 = vsel %vm3672, %v3664, %v3262
        %v3682 = vsel %vm3672, %v3665, %v3264
        %v3683 = vsel %vm3672, %v3666, %v3266
        %v3684 = vsel %vm3672, %v3667, %v3268
        %v3685 = vsel %vm3672, %v3668, %v3270
        %v3686 = vsel %vm3672, %v3669, %v3272
        %v3687 = vsel %vm3672, %v3670, %v3274
        %v3688 = vsel %vm3672, %v3671, %v3276
        %vm3689 = vcmask 211968
        %v3690 = vsel %vm3689, %v3673, %v3310
        %v3691 = vsel %vm3689, %v3674, %v3312
        %v3692 = vsel %vm3689, %v3675, %v3314
        %v3693 = vsel %vm3689, %v3676, %v3316
        %v3694 = vsel %vm3689, %v3677, %v3318
        %v3695 = vsel %vm3689, %v3678, %v3320
        %v3696 = vsel %vm3689, %v3679, %v3322
        %v3697 = vsel %vm3689, %v3680, %v3324
        %v3698 = vsel %vm3689, %v3681, %v3326
        %v3699 = vsel %vm3689, %v3682, %v3328
        %v3700 = vsel %vm3689, %v3683, %v3330
        %v3701 = vsel %vm3689, %v3684, %v3332
        %v3702 = vsel %vm3689, %v3685, %v3334
        %v3703 = vsel %vm3689, %v3686, %v3336
        %v3704 = vsel %vm3689, %v3687, %v3338
        %v3705 = vsel %vm3689, %v3688, %v3340
        %vm3706 = vcmask 228352
        %v3707 = vsel %vm3706, %v3690, %v3374
        %v3708 = vsel %vm3706, %v3691, %v3376
        %v3709 = vsel %vm3706, %v3692, %v3378
        %v3710 = vsel %vm3706, %v3693, %v3380
        %v3711 = vsel %vm3706, %v3694, %v3382
        %v3712 = vsel %vm3706, %v3695, %v3384
        %v3713 = vsel %vm3706, %v3696, %v3386
        %v3714 = vsel %vm3706, %v3697, %v3388
        %v3715 = vsel %vm3706, %v3698, %v3390
        %v3716 = vsel %vm3706, %v3699, %v3392
        %v3717 = vsel %vm3706, %v3700, %v3394
        %v3718 = vsel %vm3706, %v3701, %v3396
        %v3719 = vsel %vm3706, %v3702, %v3398
        %v3720 = vsel %vm3706, %v3703, %v3400
        %v3721 = vsel %vm3706, %v3704, %v3402
        %v3722 = vsel %vm3706, %v3705, %v3404
        %vm3723 = vcmask 244736
        %v3724 = vsel %vm3723, %v3707, %v3438
        %v3725 = vsel %vm3723, %v3708, %v3440
        %v3726 = vsel %vm3723, %v3709, %v3442
        %v3727 = vsel %vm3723, %v3710, %v3444
        %v3728 = vsel %vm3723, %v3711, %v3446
        %v3729 = vsel %vm3723, %v3712, %v3448
        %v3730 = vsel %vm3723, %v3713, %v3450
        %v3731 = vsel %vm3723, %v3714, %v3452
        %v3732 = vsel %vm3723, %v3715, %v3454
        %v3733 = vsel %vm3723, %v3716, %v3456
        %v3734 = vsel %vm3723, %v3717, %v3458
        %v3735 = vsel %vm3723, %v3718, %v3460
        %v3736 = vsel %vm3723, %v3719, %v3462
        %v3737 = vsel %vm3723, %v3720, %v3464
        %v3738 = vsel %vm3723, %v3721, %v3466
        %v3739 = vsel %vm3723, %v3722, %v3468
        %v3740 = vcombine.high %v925, 0.0
        %v3742 = vunpack.c.l.s4 1983009808
        %v3743 = vunpack.c.0.s8 %v3742
        %v3744 = vlaneseq
        %v3745 = vshrl.u32 %v3744, 7
        %v3746 = vsub.s32 %v3743, %v3745
        %v3747 = vrot.slane %v925, %v3746
        %v3749 = vunpack.c.l.s4 1983009808
        %v3750 = vunpack.c.0.s8 %v3749
        %v3751 = vlaneseq
        %v3752 = vshrl.u32 %v3751, 7
        %v3753 = vsub.s32 %v3750, %v3752
        %v3754 = vrot.slane %v3740, %v3753
        %v3755 = vcombine.high %v3747, 0.0
        %v3757 = vunpack.c.l.s4 1934713408
        %v3758 = vunpack.c.0.s8 %v3757
        %v3759 = vlaneseq
        %v3760 = vshrl.u32 %v3759, 7
        %v3761 = vsub.s32 %v3758, %v3760
        %v3762 = vrot.slane %v3747, %v3761
        %v3764 = vunpack.c.l.s4 1934713408
        %v3765 = vunpack.c.0.s8 %v3764
        %v3766 = vlaneseq
        %v3767 = vshrl.u32 %v3766, 7
        %v3768 = vsub.s32 %v3765, %v3767
        %v3769 = vrot.slane %v3755, %v3768
        %v3770 = vcombine.high %v3754, 0.0
        %v3772 = vunpack.c.l.s4 1934713408
        %v3773 = vunpack.c.0.s8 %v3772
        %v3774 = vlaneseq
        %v3775 = vshrl.u32 %v3774, 7
        %v3776 = vsub.s32 %v3773, %v3775
        %v3777 = vrot.slane %v3754, %v3776
        %v3779 = vunpack.c.l.s4 1934713408
        %v3780 = vunpack.c.0.s8 %v3779
        %v3781 = vlaneseq
        %v3782 = vshrl.u32 %v3781, 7
        %v3783 = vsub.s32 %v3780, %v3782
        %v3784 = vrot.slane %v3770, %v3783
        %v3785 = vcombine.high %v3762, 0.0
        %v3786 = vcombine.high %v3769, 0.0
        %v3787 = vcombine.high %v3777, 0.0
        %v3788 = vcombine.high %v3784, 0.0
        %v3789 = vcombine.high %v926, 0.0
        %v3791 = vunpack.c.l.s4 1983009808
        %v3792 = vunpack.c.0.s8 %v3791
        %v3793 = vlaneseq
        %v3794 = vshrl.u32 %v3793, 7
        %v3795 = vsub.s32 %v3792, %v3794
        %v3796 = vrot.slane %v926, %v3795
        %v3798 = vunpack.c.l.s4 1983009808
        %v3799 = vunpack.c.0.s8 %v3798
        %v3800 = vlaneseq
        %v3801 = vshrl.u32 %v3800, 7
        %v3802 = vsub.s32 %v3799, %v3801
        %v3803 = vrot.slane %v3789, %v3802
        %v3804 = vcombine.high %v3796, 0.0
        %v3806 = vunpack.c.l.s4 1934713408
        %v3807 = vunpack.c.0.s8 %v3806
        %v3808 = vlaneseq
        %v3809 = vshrl.u32 %v3808, 7
        %v3810 = vsub.s32 %v3807, %v3809
        %v3811 = vrot.slane %v3796, %v3810
        %v3813 = vunpack.c.l.s4 1934713408
        %v3814 = vunpack.c.0.s8 %v3813
        %v3815 = vlaneseq
        %v3816 = vshrl.u32 %v3815, 7
        %v3817 = vsub.s32 %v3814, %v3816
        %v3818 = vrot.slane %v3804, %v3817
        %v3819 = vcombine.high %v3803, 0.0
        %v3821 = vunpack.c.l.s4 1934713408
        %v3822 = vunpack.c.0.s8 %v3821
        %v3823 = vlaneseq
        %v3824 = vshrl.u32 %v3823, 7
        %v3825 = vsub.s32 %v3822, %v3824
        %v3826 = vrot.slane %v3803, %v3825
        %v3828 = vunpack.c.l.s4 1934713408
        %v3829 = vunpack.c.0.s8 %v3828
        %v3830 = vlaneseq
        %v3831 = vshrl.u32 %v3830, 7
        %v3832 = vsub.s32 %v3829, %v3831
        %v3833 = vrot.slane %v3819, %v3832
        %v3834 = vcombine.high %v3811, 0.0
        %v3835 = vcombine.high %v3818, 0.0
        %v3836 = vcombine.high %v3826, 0.0
        %v3837 = vcombine.high %v3833, 0.0
        %v3838 = vcombine.high %v927, 0.0
        %v3840 = vunpack.c.l.s4 1983009808
        %v3841 = vunpack.c.0.s8 %v3840
        %v3842 = vlaneseq
        %v3843 = vshrl.u32 %v3842, 7
        %v3844 = vsub.s32 %v3841, %v3843
        %v3845 = vrot.slane %v927, %v3844
        %v3847 = vunpack.c.l.s4 1983009808
        %v3848 = vunpack.c.0.s8 %v3847
        %v3849 = vlaneseq
        %v3850 = vshrl.u32 %v3849, 7
        %v3851 = vsub.s32 %v3848, %v3850
        %v3852 = vrot.slane %v3838, %v3851
        %v3853 = vcombine.high %v3845, 0.0
        %v3855 = vunpack.c.l.s4 1934713408
        %v3856 = vunpack.c.0.s8 %v3855
        %v3857 = vlaneseq
        %v3858 = vshrl.u32 %v3857, 7
        %v3859 = vsub.s32 %v3856, %v3858
        %v3860 = vrot.slane %v3845, %v3859
        %v3862 = vunpack.c.l.s4 1934713408
        %v3863 = vunpack.c.0.s8 %v3862
        %v3864 = vlaneseq
        %v3865 = vshrl.u32 %v3864, 7
        %v3866 = vsub.s32 %v3863, %v3865
        %v3867 = vrot.slane %v3853, %v3866
        %v3868 = vcombine.high %v3852, 0.0
        %v3870 = vunpack.c.l.s4 1934713408
        %v3871 = vunpack.c.0.s8 %v3870
        %v3872 = vlaneseq
        %v3873 = vshrl.u32 %v3872, 7
        %v3874 = vsub.s32 %v3871, %v3873
        %v3875 = vrot.slane %v3852, %v3874
        %v3877 = vunpack.c.l.s4 1934713408
        %v3878 = vunpack.c.0.s8 %v3877
        %v3879 = vlaneseq
        %v3880 = vshrl.u32 %v3879, 7
        %v3881 = vsub.s32 %v3878, %v3880
        %v3882 = vrot.slane %v3868, %v3881
        %v3883 = vcombine.high %v3860, 0.0
        %v3884 = vcombine.high %v3867, 0.0
        %v3885 = vcombine.high %v3875, 0.0
        %v3886 = vcombine.high %v3882, 0.0
        %v3887 = vcombine.high %v928, 0.0
        %v3889 = vunpack.c.l.s4 1983009808
        %v3890 = vunpack.c.0.s8 %v3889
        %v3891 = vlaneseq
        %v3892 = vshrl.u32 %v3891, 7
        %v3893 = vsub.s32 %v3890, %v3892
        %v3894 = vrot.slane %v928, %v3893
        %v3896 = vunpack.c.l.s4 1983009808
        %v3897 = vunpack.c.0.s8 %v3896
        %v3898 = vlaneseq
        %v3899 = vshrl.u32 %v3898, 7
        %v3900 = vsub.s32 %v3897, %v3899
        %v3901 = vrot.slane %v3887, %v3900
        %v3902 = vcombine.high %v3894, 0.0
        %v3904 = vunpack.c.l.s4 1934713408
        %v3905 = vunpack.c.0.s8 %v3904
        %v3906 = vlaneseq
        %v3907 = vshrl.u32 %v3906, 7
        %v3908 = vsub.s32 %v3905, %v3907
        %v3909 = vrot.slane %v3894, %v3908
        %v3911 = vunpack.c.l.s4 1934713408
        %v3912 = vunpack.c.0.s8 %v3911
        %v3913 = vlaneseq
        %v3914 = vshrl.u32 %v3913, 7
        %v3915 = vsub.s32 %v3912, %v3914
        %v3916 = vrot.slane %v3902, %v3915
        %v3917 = vcombine.high %v3901, 0.0
        %v3919 = vunpack.c.l.s4 1934713408
        %v3920 = vunpack.c.0.s8 %v3919
        %v3921 = vlaneseq
        %v3922 = vshrl.u32 %v3921, 7
        %v3923 = vsub.s32 %v3920, %v3922
        %v3924 = vrot.slane %v3901, %v3923
        %v3926 = vunpack.c.l.s4 1934713408
        %v3927 = vunpack.c.0.s8 %v3926
        %v3928 = vlaneseq
        %v3929 = vshrl.u32 %v3928, 7
        %v3930 = vsub.s32 %v3927, %v3929
        %v3931 = vrot.slane %v3917, %v3930
        %v3932 = vcombine.high %v3909, 0.0
        %v3933 = vcombine.high %v3916, 0.0
        %v3934 = vcombine.high %v3924, 0.0
        %v3935 = vcombine.high %v3931, 0.0
        %v3936 = vcombine.high %v929, 0.0
        %v3938 = vunpack.c.l.s4 1983009808
        %v3939 = vunpack.c.0.s8 %v3938
        %v3940 = vlaneseq
        %v3941 = vshrl.u32 %v3940, 7
        %v3942 = vsub.s32 %v3939, %v3941
        %v3943 = vrot.slane %v929, %v3942
        %v3945 = vunpack.c.l.s4 1983009808
        %v3946 = vunpack.c.0.s8 %v3945
        %v3947 = vlaneseq
        %v3948 = vshrl.u32 %v3947, 7
        %v3949 = vsub.s32 %v3946, %v3948
        %v3950 = vrot.slane %v3936, %v3949
        %v3951 = vcombine.high %v3943, 0.0
        %v3953 = vunpack.c.l.s4 1934713408
        %v3954 = vunpack.c.0.s8 %v3953
        %v3955 = vlaneseq
        %v3956 = vshrl.u32 %v3955, 7
        %v3957 = vsub.s32 %v3954, %v3956
        %v3958 = vrot.slane %v3943, %v3957
        %v3960 = vunpack.c.l.s4 1934713408
        %v3961 = vunpack.c.0.s8 %v3960
        %v3962 = vlaneseq
        %v3963 = vshrl.u32 %v3962, 7
        %v3964 = vsub.s32 %v3961, %v3963
        %v3965 = vrot.slane %v3951, %v3964
        %v3966 = vcombine.high %v3950, 0.0
        %v3968 = vunpack.c.l.s4 1934713408
        %v3969 = vunpack.c.0.s8 %v3968
        %v3970 = vlaneseq
        %v3971 = vshrl.u32 %v3970, 7
        %v3972 = vsub.s32 %v3969, %v3971
        %v3973 = vrot.slane %v3950, %v3972
        %v3975 = vunpack.c.l.s4 1934713408
        %v3976 = vunpack.c.0.s8 %v3975
        %v3977 = vlaneseq
        %v3978 = vshrl.u32 %v3977, 7
        %v3979 = vsub.s32 %v3976, %v3978
        %v3980 = vrot.slane %v3966, %v3979
        %v3981 = vcombine.high %v3958, 0.0
        %v3982 = vcombine.high %v3965, 0.0
        %v3983 = vcombine.high %v3973, 0.0
        %v3984 = vcombine.high %v3980, 0.0
        %v3985 = vcombine.high %v930, 0.0
        %v3987 = vunpack.c.l.s4 1983009808
        %v3988 = vunpack.c.0.s8 %v3987
        %v3989 = vlaneseq
        %v3990 = vshrl.u32 %v3989, 7
        %v3991 = vsub.s32 %v3988, %v3990
        %v3992 = vrot.slane %v930, %v3991
        %v3994 = vunpack.c.l.s4 1983009808
        %v3995 = vunpack.c.0.s8 %v3994
        %v3996 = vlaneseq
        %v3997 = vshrl.u32 %v3996, 7
        %v3998 = vsub.s32 %v3995, %v3997
        %v3999 = vrot.slane %v3985, %v3998
        %v4000 = vcombine.high %v3992, 0.0
        %v4002 = vunpack.c.l.s4 1934713408
        %v4003 = vunpack.c.0.s8 %v4002
        %v4004 = vlaneseq
        %v4005 = vshrl.u32 %v4004, 7
        %v4006 = vsub.s32 %v4003, %v4005
        %v4007 = vrot.slane %v3992, %v4006
        %v4009 = vunpack.c.l.s4 1934713408
        %v4010 = vunpack.c.0.s8 %v4009
        %v4011 = vlaneseq
        %v4012 = vshrl.u32 %v4011, 7
        %v4013 = vsub.s32 %v4010, %v4012
        %v4014 = vrot.slane %v4000, %v4013
        %v4015 = vcombine.high %v3999, 0.0
        %v4017 = vunpack.c.l.s4 1934713408
        %v4018 = vunpack.c.0.s8 %v4017
        %v4019 = vlaneseq
        %v4020 = vshrl.u32 %v4019, 7
        %v4021 = vsub.s32 %v4018, %v4020
        %v4022 = vrot.slane %v3999, %v4021
        %v4024 = vunpack.c.l.s4 1934713408
        %v4025 = vunpack.c.0.s8 %v4024
        %v4026 = vlaneseq
        %v4027 = vshrl.u32 %v4026, 7
        %v4028 = vsub.s32 %v4025, %v4027
        %v4029 = vrot.slane %v4015, %v4028
        %v4030 = vcombine.high %v4007, 0.0
        %v4031 = vcombine.high %v4014, 0.0
        %v4032 = vcombine.high %v4022, 0.0
        %v4033 = vcombine.high %v4029, 0.0
        %v4034 = vcombine.high %v931, 0.0
        %v4036 = vunpack.c.l.s4 1983009808
        %v4037 = vunpack.c.0.s8 %v4036
        %v4038 = vlaneseq
        %v4039 = vshrl.u32 %v4038, 7
        %v4040 = vsub.s32 %v4037, %v4039
        %v4041 = vrot.slane %v931, %v4040
        %v4043 = vunpack.c.l.s4 1983009808
        %v4044 = vunpack.c.0.s8 %v4043
        %v4045 = vlaneseq
        %v4046 = vshrl.u32 %v4045, 7
        %v4047 = vsub.s32 %v4044, %v4046
        %v4048 = vrot.slane %v4034, %v4047
        %v4049 = vcombine.high %v4041, 0.0
        %v4051 = vunpack.c.l.s4 1934713408
        %v4052 = vunpack.c.0.s8 %v4051
        %v4053 = vlaneseq
        %v4054 = vshrl.u32 %v4053, 7
        %v4055 = vsub.s32 %v4052, %v4054
        %v4056 = vrot.slane %v4041, %v4055
        %v4058 = vunpack.c.l.s4 1934713408
        %v4059 = vunpack.c.0.s8 %v4058
        %v4060 = vlaneseq
        %v4061 = vshrl.u32 %v4060, 7
        %v4062 = vsub.s32 %v4059, %v4061
        %v4063 = vrot.slane %v4049, %v4062
        %v4064 = vcombine.high %v4048, 0.0
        %v4066 = vunpack.c.l.s4 1934713408
        %v4067 = vunpack.c.0.s8 %v4066
        %v4068 = vlaneseq
        %v4069 = vshrl.u32 %v4068, 7
        %v4070 = vsub.s32 %v4067, %v4069
        %v4071 = vrot.slane %v4048, %v4070
        %v4073 = vunpack.c.l.s4 1934713408
        %v4074 = vunpack.c.0.s8 %v4073
        %v4075 = vlaneseq
        %v4076 = vshrl.u32 %v4075, 7
        %v4077 = vsub.s32 %v4074, %v4076
        %v4078 = vrot.slane %v4064, %v4077
        %v4079 = vcombine.high %v4056, 0.0
        %v4080 = vcombine.high %v4063, 0.0
        %v4081 = vcombine.high %v4071, 0.0
        %v4082 = vcombine.high %v4078, 0.0
        %v4083 = vcombine.high %v932, 0.0
        %v4085 = vunpack.c.l.s4 1983009808
        %v4086 = vunpack.c.0.s8 %v4085
        %v4087 = vlaneseq
        %v4088 = vshrl.u32 %v4087, 7
        %v4089 = vsub.s32 %v4086, %v4088
        %v4090 = vrot.slane %v932, %v4089
        %v4092 = vunpack.c.l.s4 1983009808
        %v4093 = vunpack.c.0.s8 %v4092
        %v4094 = vlaneseq
        %v4095 = vshrl.u32 %v4094, 7
        %v4096 = vsub.s32 %v4093, %v4095
        %v4097 = vrot.slane %v4083, %v4096
        %v4098 = vcombine.high %v4090, 0.0
        %v4100 = vunpack.c.l.s4 1934713408
        %v4101 = vunpack.c.0.s8 %v4100
        %v4102 = vlaneseq
        %v4103 = vshrl.u32 %v4102, 7
        %v4104 = vsub.s32 %v4101, %v4103
        %v4105 = vrot.slane %v4090, %v4104
        %v4107 = vunpack.c.l.s4 1934713408
        %v4108 = vunpack.c.0.s8 %v4107
        %v4109 = vlaneseq
        %v4110 = vshrl.u32 %v4109, 7
        %v4111 = vsub.s32 %v4108, %v4110
        %v4112 = vrot.slane %v4098, %v4111
        %v4113 = vcombine.high %v4097, 0.0
        %v4115 = vunpack.c.l.s4 1934713408
        %v4116 = vunpack.c.0.s8 %v4115
        %v4117 = vlaneseq
        %v4118 = vshrl.u32 %v4117, 7
        %v4119 = vsub.s32 %v4116, %v4118
        %v4120 = vrot.slane %v4097, %v4119
        %v4122 = vunpack.c.l.s4 1934713408
        %v4123 = vunpack.c.0.s8 %v4122
        %v4124 = vlaneseq
        %v4125 = vshrl.u32 %v4124, 7
        %v4126 = vsub.s32 %v4123, %v4125
        %v4127 = vrot.slane %v4113, %v4126
        %v4128 = vcombine.high %v4105, 0.0
        %v4129 = vcombine.high %v4112, 0.0
        %v4130 = vcombine.high %v4120, 0.0
        %v4131 = vcombine.high %v4127, 0.0
        %v4132 = vcombine.high %v933, 0.0
        %v4134 = vunpack.c.l.s4 1983009808
        %v4135 = vunpack.c.0.s8 %v4134
        %v4136 = vlaneseq
        %v4137 = vshrl.u32 %v4136, 7
        %v4138 = vsub.s32 %v4135, %v4137
        %v4139 = vrot.slane %v933, %v4138
        %v4141 = vunpack.c.l.s4 1983009808
        %v4142 = vunpack.c.0.s8 %v4141
        %v4143 = vlaneseq
        %v4144 = vshrl.u32 %v4143, 7
        %v4145 = vsub.s32 %v4142, %v4144
        %v4146 = vrot.slane %v4132, %v4145
        %v4147 = vcombine.high %v4139, 0.0
        %v4149 = vunpack.c.l.s4 1934713408
        %v4150 = vunpack.c.0.s8 %v4149
        %v4151 = vlaneseq
        %v4152 = vshrl.u32 %v4151, 7
        %v4153 = vsub.s32 %v4150, %v4152
        %v4154 = vrot.slane %v4139, %v4153
        %v4156 = vunpack.c.l.s4 1934713408
        %v4157 = vunpack.c.0.s8 %v4156
        %v4158 = vlaneseq
        %v4159 = vshrl.u32 %v4158, 7
        %v4160 = vsub.s32 %v4157, %v4159
        %v4161 = vrot.slane %v4147, %v4160
        %v4162 = vcombine.high %v4146, 0.0
        %v4164 = vunpack.c.l.s4 1934713408
        %v4165 = vunpack.c.0.s8 %v4164
        %v4166 = vlaneseq
        %v4167 = vshrl.u32 %v4166, 7
        %v4168 = vsub.s32 %v4165, %v4167
        %v4169 = vrot.slane %v4146, %v4168
        %v4171 = vunpack.c.l.s4 1934713408
        %v4172 = vunpack.c.0.s8 %v4171
        %v4173 = vlaneseq
        %v4174 = vshrl.u32 %v4173, 7
        %v4175 = vsub.s32 %v4172, %v4174
        %v4176 = vrot.slane %v4162, %v4175
        %v4177 = vcombine.high %v4154, 0.0
        %v4178 = vcombine.high %v4161, 0.0
        %v4179 = vcombine.high %v4169, 0.0
        %v4180 = vcombine.high %v4176, 0.0
        %v4181 = vcombine.high %v934, 0.0
        %v4183 = vunpack.c.l.s4 1983009808
        %v4184 = vunpack.c.0.s8 %v4183
        %v4185 = vlaneseq
        %v4186 = vshrl.u32 %v4185, 7
        %v4187 = vsub.s32 %v4184, %v4186
        %v4188 = vrot.slane %v934, %v4187
        %v4190 = vunpack.c.l.s4 1983009808
        %v4191 = vunpack.c.0.s8 %v4190
        %v4192 = vlaneseq
        %v4193 = vshrl.u32 %v4192, 7
        %v4194 = vsub.s32 %v4191, %v4193
        %v4195 = vrot.slane %v4181, %v4194
        %v4196 = vcombine.high %v4188, 0.0
        %v4198 = vunpack.c.l.s4 1934713408
        %v4199 = vunpack.c.0.s8 %v4198
        %v4200 = vlaneseq
        %v4201 = vshrl.u32 %v4200, 7
        %v4202 = vsub.s32 %v4199, %v4201
        %v4203 = vrot.slane %v4188, %v4202
        %v4205 = vunpack.c.l.s4 1934713408
        %v4206 = vunpack.c.0.s8 %v4205
        %v4207 = vlaneseq
        %v4208 = vshrl.u32 %v4207, 7
        %v4209 = vsub.s32 %v4206, %v4208
        %v4210 = vrot.slane %v4196, %v4209
        %v4211 = vcombine.high %v4195, 0.0
        %v4213 = vunpack.c.l.s4 1934713408
        %v4214 = vunpack.c.0.s8 %v4213
        %v4215 = vlaneseq
        %v4216 = vshrl.u32 %v4215, 7
        %v4217 = vsub.s32 %v4214, %v4216
        %v4218 = vrot.slane %v4195, %v4217
        %v4220 = vunpack.c.l.s4 1934713408
        %v4221 = vunpack.c.0.s8 %v4220
        %v4222 = vlaneseq
        %v4223 = vshrl.u32 %v4222, 7
        %v4224 = vsub.s32 %v4221, %v4223
        %v4225 = vrot.slane %v4211, %v4224
        %v4226 = vcombine.high %v4203, 0.0
        %v4227 = vcombine.high %v4210, 0.0
        %v4228 = vcombine.high %v4218, 0.0
        %v4229 = vcombine.high %v4225, 0.0
        %v4230 = vcombine.high %v935, 0.0
        %v4232 = vunpack.c.l.s4 1983009808
        %v4233 = vunpack.c.0.s8 %v4232
        %v4234 = vlaneseq
        %v4235 = vshrl.u32 %v4234, 7
        %v4236 = vsub.s32 %v4233, %v4235
        %v4237 = vrot.slane %v935, %v4236
        %v4239 = vunpack.c.l.s4 1983009808
        %v4240 = vunpack.c.0.s8 %v4239
        %v4241 = vlaneseq
        %v4242 = vshrl.u32 %v4241, 7
        %v4243 = vsub.s32 %v4240, %v4242
        %v4244 = vrot.slane %v4230, %v4243
        %v4245 = vcombine.high %v4237, 0.0
        %v4247 = vunpack.c.l.s4 1934713408
        %v4248 = vunpack.c.0.s8 %v4247
        %v4249 = vlaneseq
        %v4250 = vshrl.u32 %v4249, 7
        %v4251 = vsub.s32 %v4248, %v4250
        %v4252 = vrot.slane %v4237, %v4251
        %v4254 = vunpack.c.l.s4 1934713408
        %v4255 = vunpack.c.0.s8 %v4254
        %v4256 = vlaneseq
        %v4257 = vshrl.u32 %v4256, 7
        %v4258 = vsub.s32 %v4255, %v4257
        %v4259 = vrot.slane %v4245, %v4258
        %v4260 = vcombine.high %v4244, 0.0
        %v4262 = vunpack.c.l.s4 1934713408
        %v4263 = vunpack.c.0.s8 %v4262
        %v4264 = vlaneseq
        %v4265 = vshrl.u32 %v4264, 7
        %v4266 = vsub.s32 %v4263, %v4265
        %v4267 = vrot.slane %v4244, %v4266
        %v4269 = vunpack.c.l.s4 1934713408
        %v4270 = vunpack.c.0.s8 %v4269
        %v4271 = vlaneseq
        %v4272 = vshrl.u32 %v4271, 7
        %v4273 = vsub.s32 %v4270, %v4272
        %v4274 = vrot.slane %v4260, %v4273
        %v4275 = vcombine.high %v4252, 0.0
        %v4276 = vcombine.high %v4259, 0.0
        %v4277 = vcombine.high %v4267, 0.0
        %v4278 = vcombine.high %v4274, 0.0
        %v4279 = vcombine.high %v936, 0.0
        %v4281 = vunpack.c.l.s4 1983009808
        %v4282 = vunpack.c.0.s8 %v4281
        %v4283 = vlaneseq
        %v4284 = vshrl.u32 %v4283, 7
        %v4285 = vsub.s32 %v4282, %v4284
        %v4286 = vrot.slane %v936, %v4285
        %v4288 = vunpack.c.l.s4 1983009808
        %v4289 = vunpack.c.0.s8 %v4288
        %v4290 = vlaneseq
        %v4291 = vshrl.u32 %v4290, 7
        %v4292 = vsub.s32 %v4289, %v4291
        %v4293 = vrot.slane %v4279, %v4292
        %v4294 = vcombine.high %v4286, 0.0
        %v4296 = vunpack.c.l.s4 1934713408
        %v4297 = vunpack.c.0.s8 %v4296
        %v4298 = vlaneseq
        %v4299 = vshrl.u32 %v4298, 7
        %v4300 = vsub.s32 %v4297, %v4299
        %v4301 = vrot.slane %v4286, %v4300
        %v4303 = vunpack.c.l.s4 1934713408
        %v4304 = vunpack.c.0.s8 %v4303
        %v4305 = vlaneseq
        %v4306 = vshrl.u32 %v4305, 7
        %v4307 = vsub.s32 %v4304, %v4306
        %v4308 = vrot.slane %v4294, %v4307
        %v4309 = vcombine.high %v4293, 0.0
        %v4311 = vunpack.c.l.s4 1934713408
        %v4312 = vunpack.c.0.s8 %v4311
        %v4313 = vlaneseq
        %v4314 = vshrl.u32 %v4313, 7
        %v4315 = vsub.s32 %v4312, %v4314
        %v4316 = vrot.slane %v4293, %v4315
        %v4318 = vunpack.c.l.s4 1934713408
        %v4319 = vunpack.c.0.s8 %v4318
        %v4320 = vlaneseq
        %v4321 = vshrl.u32 %v4320, 7
        %v4322 = vsub.s32 %v4319, %v4321
        %v4323 = vrot.slane %v4309, %v4322
        %v4324 = vcombine.high %v4301, 0.0
        %v4325 = vcombine.high %v4308, 0.0
        %v4326 = vcombine.high %v4316, 0.0
        %v4327 = vcombine.high %v4323, 0.0
        %v4328 = vcombine.high %v937, 0.0
        %v4330 = vunpack.c.l.s4 1983009808
        %v4331 = vunpack.c.0.s8 %v4330
        %v4332 = vlaneseq
        %v4333 = vshrl.u32 %v4332, 7
        %v4334 = vsub.s32 %v4331, %v4333
        %v4335 = vrot.slane %v937, %v4334
        %v4337 = vunpack.c.l.s4 1983009808
        %v4338 = vunpack.c.0.s8 %v4337
        %v4339 = vlaneseq
        %v4340 = vshrl.u32 %v4339, 7
        %v4341 = vsub.s32 %v4338, %v4340
        %v4342 = vrot.slane %v4328, %v4341
        %v4343 = vcombine.high %v4335, 0.0
        %v4345 = vunpack.c.l.s4 1934713408
        %v4346 = vunpack.c.0.s8 %v4345
        %v4347 = vlaneseq
        %v4348 = vshrl.u32 %v4347, 7
        %v4349 = vsub.s32 %v4346, %v4348
        %v4350 = vrot.slane %v4335, %v4349
        %v4352 = vunpack.c.l.s4 1934713408
        %v4353 = vunpack.c.0.s8 %v4352
        %v4354 = vlaneseq
        %v4355 = vshrl.u32 %v4354, 7
        %v4356 = vsub.s32 %v4353, %v4355
        %v4357 = vrot.slane %v4343, %v4356
        %v4358 = vcombine.high %v4342, 0.0
        %v4360 = vunpack.c.l.s4 1934713408
        %v4361 = vunpack.c.0.s8 %v4360
        %v4362 = vlaneseq
        %v4363 = vshrl.u32 %v4362, 7
        %v4364 = vsub.s32 %v4361, %v4363
        %v4365 = vrot.slane %v4342, %v4364
        %v4367 = vunpack.c.l.s4 1934713408
        %v4368 = vunpack.c.0.s8 %v4367
        %v4369 = vlaneseq
        %v4370 = vshrl.u32 %v4369, 7
        %v4371 = vsub.s32 %v4368, %v4370
        %v4372 = vrot.slane %v4358, %v4371
        %v4373 = vcombine.high %v4350, 0.0
        %v4374 = vcombine.high %v4357, 0.0
        %v4375 = vcombine.high %v4365, 0.0
        %v4376 = vcombine.high %v4372, 0.0
        %v4377 = vcombine.high %v938, 0.0
        %v4379 = vunpack.c.l.s4 1983009808
        %v4380 = vunpack.c.0.s8 %v4379
        %v4381 = vlaneseq
        %v4382 = vshrl.u32 %v4381, 7
        %v4383 = vsub.s32 %v4380, %v4382
        %v4384 = vrot.slane %v938, %v4383
        %v4386 = vunpack.c.l.s4 1983009808
        %v4387 = vunpack.c.0.s8 %v4386
        %v4388 = vlaneseq
        %v4389 = vshrl.u32 %v4388, 7
        %v4390 = vsub.s32 %v4387, %v4389
        %v4391 = vrot.slane %v4377, %v4390
        %v4392 = vcombine.high %v4384, 0.0
        %v4394 = vunpack.c.l.s4 1934713408
        %v4395 = vunpack.c.0.s8 %v4394
        %v4396 = vlaneseq
        %v4397 = vshrl.u32 %v4396, 7
        %v4398 = vsub.s32 %v4395, %v4397
        %v4399 = vrot.slane %v4384, %v4398
        %v4401 = vunpack.c.l.s4 1934713408
        %v4402 = vunpack.c.0.s8 %v4401
        %v4403 = vlaneseq
        %v4404 = vshrl.u32 %v4403, 7
        %v4405 = vsub.s32 %v4402, %v4404
        %v4406 = vrot.slane %v4392, %v4405
        %v4407 = vcombine.high %v4391, 0.0
        %v4409 = vunpack.c.l.s4 1934713408
        %v4410 = vunpack.c.0.s8 %v4409
        %v4411 = vlaneseq
        %v4412 = vshrl.u32 %v4411, 7
        %v4413 = vsub.s32 %v4410, %v4412
        %v4414 = vrot.slane %v4391, %v4413
        %v4416 = vunpack.c.l.s4 1934713408
        %v4417 = vunpack.c.0.s8 %v4416
        %v4418 = vlaneseq
        %v4419 = vshrl.u32 %v4418, 7
        %v4420 = vsub.s32 %v4417, %v4419
        %v4421 = vrot.slane %v4407, %v4420
        %v4422 = vcombine.high %v4399, 0.0
        %v4423 = vcombine.high %v4406, 0.0
        %v4424 = vcombine.high %v4414, 0.0
        %v4425 = vcombine.high %v4421, 0.0
        %v4426 = vcombine.high %v939, 0.0
        %v4428 = vunpack.c.l.s4 1983009808
        %v4429 = vunpack.c.0.s8 %v4428
        %v4430 = vlaneseq
        %v4431 = vshrl.u32 %v4430, 7
        %v4432 = vsub.s32 %v4429, %v4431
        %v4433 = vrot.slane %v939, %v4432
        %v4435 = vunpack.c.l.s4 1983009808
        %v4436 = vunpack.c.0.s8 %v4435
        %v4437 = vlaneseq
        %v4438 = vshrl.u32 %v4437, 7
        %v4439 = vsub.s32 %v4436, %v4438
        %v4440 = vrot.slane %v4426, %v4439
        %v4441 = vcombine.high %v4433, 0.0
        %v4443 = vunpack.c.l.s4 1934713408
        %v4444 = vunpack.c.0.s8 %v4443
        %v4445 = vlaneseq
        %v4446 = vshrl.u32 %v4445, 7
        %v4447 = vsub.s32 %v4444, %v4446
        %v4448 = vrot.slane %v4433, %v4447
        %v4450 = vunpack.c.l.s4 1934713408
        %v4451 = vunpack.c.0.s8 %v4450
        %v4452 = vlaneseq
        %v4453 = vshrl.u32 %v4452, 7
        %v4454 = vsub.s32 %v4451, %v4453
        %v4455 = vrot.slane %v4441, %v4454
        %v4456 = vcombine.high %v4440, 0.0
        %v4458 = vunpack.c.l.s4 1934713408
        %v4459 = vunpack.c.0.s8 %v4458
        %v4460 = vlaneseq
        %v4461 = vshrl.u32 %v4460, 7
        %v4462 = vsub.s32 %v4459, %v4461
        %v4463 = vrot.slane %v4440, %v4462
        %v4465 = vunpack.c.l.s4 1934713408
        %v4466 = vunpack.c.0.s8 %v4465
        %v4467 = vlaneseq
        %v4468 = vshrl.u32 %v4467, 7
        %v4469 = vsub.s32 %v4466, %v4468
        %v4470 = vrot.slane %v4456, %v4469
        %v4471 = vcombine.high %v4448, 0.0
        %v4472 = vcombine.high %v4455, 0.0
        %v4473 = vcombine.high %v4463, 0.0
        %v4474 = vcombine.high %v4470, 0.0
        %v4475 = vcombine.high %v940, 0.0
        %v4477 = vunpack.c.l.s4 1983009808
        %v4478 = vunpack.c.0.s8 %v4477
        %v4479 = vlaneseq
        %v4480 = vshrl.u32 %v4479, 7
        %v4481 = vsub.s32 %v4478, %v4480
        %v4482 = vrot.slane %v940, %v4481
        %v4484 = vunpack.c.l.s4 1983009808
        %v4485 = vunpack.c.0.s8 %v4484
        %v4486 = vlaneseq
        %v4487 = vshrl.u32 %v4486, 7
        %v4488 = vsub.s32 %v4485, %v4487
        %v4489 = vrot.slane %v4475, %v4488
        %v4490 = vcombine.high %v4482, 0.0
        %v4492 = vunpack.c.l.s4 1934713408
        %v4493 = vunpack.c.0.s8 %v4492
        %v4494 = vlaneseq
        %v4495 = vshrl.u32 %v4494, 7
        %v4496 = vsub.s32 %v4493, %v4495
        %v4497 = vrot.slane %v4482, %v4496
        %v4499 = vunpack.c.l.s4 1934713408
        %v4500 = vunpack.c.0.s8 %v4499
        %v4501 = vlaneseq
        %v4502 = vshrl.u32 %v4501, 7
        %v4503 = vsub.s32 %v4500, %v4502
        %v4504 = vrot.slane %v4490, %v4503
        %v4505 = vcombine.high %v4489, 0.0
        %v4507 = vunpack.c.l.s4 1934713408
        %v4508 = vunpack.c.0.s8 %v4507
        %v4509 = vlaneseq
        %v4510 = vshrl.u32 %v4509, 7
        %v4511 = vsub.s32 %v4508, %v4510
        %v4512 = vrot.slane %v4489, %v4511
        %v4514 = vunpack.c.l.s4 1934713408
        %v4515 = vunpack.c.0.s8 %v4514
        %v4516 = vlaneseq
        %v4517 = vshrl.u32 %v4516, 7
        %v4518 = vsub.s32 %v4515, %v4517
        %v4519 = vrot.slane %v4505, %v4518
        %v4520 = vcombine.high %v4497, 0.0
        %v4521 = vcombine.high %v4504, 0.0
        %v4522 = vcombine.high %v4512, 0.0
        %v4523 = vcombine.high %v4519, 0.0
        %v4524 = vcombine.high %v941, 0.0
        %v4526 = vunpack.c.l.s4 1983009808
        %v4527 = vunpack.c.0.s8 %v4526
        %v4528 = vlaneseq
        %v4529 = vshrl.u32 %v4528, 7
        %v4530 = vsub.s32 %v4527, %v4529
        %v4531 = vrot.slane %v941, %v4530
        %v4533 = vunpack.c.l.s4 1983009808
        %v4534 = vunpack.c.0.s8 %v4533
        %v4535 = vlaneseq
        %v4536 = vshrl.u32 %v4535, 7
        %v4537 = vsub.s32 %v4534, %v4536
        %v4538 = vrot.slane %v4524, %v4537
        %v4539 = vcombine.high %v4531, 0.0
        %v4541 = vunpack.c.l.s4 1934713408
        %v4542 = vunpack.c.0.s8 %v4541
        %v4543 = vlaneseq
        %v4544 = vshrl.u32 %v4543, 7
        %v4545 = vsub.s32 %v4542, %v4544
        %v4546 = vrot.slane %v4531, %v4545
        %v4548 = vunpack.c.l.s4 1934713408
        %v4549 = vunpack.c.0.s8 %v4548
        %v4550 = vlaneseq
        %v4551 = vshrl.u32 %v4550, 7
        %v4552 = vsub.s32 %v4549, %v4551
        %v4553 = vrot.slane %v4539, %v4552
        %v4554 = vcombine.high %v4538, 0.0
        %v4556 = vunpack.c.l.s4 1934713408
        %v4557 = vunpack.c.0.s8 %v4556
        %v4558 = vlaneseq
        %v4559 = vshrl.u32 %v4558, 7
        %v4560 = vsub.s32 %v4557, %v4559
        %v4561 = vrot.slane %v4538, %v4560
        %v4563 = vunpack.c.l.s4 1934713408
        %v4564 = vunpack.c.0.s8 %v4563
        %v4565 = vlaneseq
        %v4566 = vshrl.u32 %v4565, 7
        %v4567 = vsub.s32 %v4564, %v4566
        %v4568 = vrot.slane %v4554, %v4567
        %v4569 = vcombine.high %v4546, 0.0
        %v4570 = vcombine.high %v4553, 0.0
        %v4571 = vcombine.high %v4561, 0.0
        %v4572 = vcombine.high %v4568, 0.0
        %v4573 = vcombine.high %v942, 0.0
        %v4575 = vunpack.c.l.s4 1983009808
        %v4576 = vunpack.c.0.s8 %v4575
        %v4577 = vlaneseq
        %v4578 = vshrl.u32 %v4577, 7
        %v4579 = vsub.s32 %v4576, %v4578
        %v4580 = vrot.slane %v942, %v4579
        %v4582 = vunpack.c.l.s4 1983009808
        %v4583 = vunpack.c.0.s8 %v4582
        %v4584 = vlaneseq
        %v4585 = vshrl.u32 %v4584, 7
        %v4586 = vsub.s32 %v4583, %v4585
        %v4587 = vrot.slane %v4573, %v4586
        %v4588 = vcombine.high %v4580, 0.0
        %v4590 = vunpack.c.l.s4 1934713408
        %v4591 = vunpack.c.0.s8 %v4590
        %v4592 = vlaneseq
        %v4593 = vshrl.u32 %v4592, 7
        %v4594 = vsub.s32 %v4591, %v4593
        %v4595 = vrot.slane %v4580, %v4594
        %v4597 = vunpack.c.l.s4 1934713408
        %v4598 = vunpack.c.0.s8 %v4597
        %v4599 = vlaneseq
        %v4600 = vshrl.u32 %v4599, 7
        %v4601 = vsub.s32 %v4598, %v4600
        %v4602 = vrot.slane %v4588, %v4601
        %v4603 = vcombine.high %v4587, 0.0
        %v4605 = vunpack.c.l.s4 1934713408
        %v4606 = vunpack.c.0.s8 %v4605
        %v4607 = vlaneseq
        %v4608 = vshrl.u32 %v4607, 7
        %v4609 = vsub.s32 %v4606, %v4608
        %v4610 = vrot.slane %v4587, %v4609
        %v4612 = vunpack.c.l.s4 1934713408
        %v4613 = vunpack.c.0.s8 %v4612
        %v4614 = vlaneseq
        %v4615 = vshrl.u32 %v4614, 7
        %v4616 = vsub.s32 %v4613, %v4615
        %v4617 = vrot.slane %v4603, %v4616
        %v4618 = vcombine.high %v4595, 0.0
        %v4619 = vcombine.high %v4602, 0.0
        %v4620 = vcombine.high %v4610, 0.0
        %v4621 = vcombine.high %v4617, 0.0
        %v4622 = vcombine.high %v943, 0.0
        %v4624 = vunpack.c.l.s4 1983009808
        %v4625 = vunpack.c.0.s8 %v4624
        %v4626 = vlaneseq
        %v4627 = vshrl.u32 %v4626, 7
        %v4628 = vsub.s32 %v4625, %v4627
        %v4629 = vrot.slane %v943, %v4628
        %v4631 = vunpack.c.l.s4 1983009808
        %v4632 = vunpack.c.0.s8 %v4631
        %v4633 = vlaneseq
        %v4634 = vshrl.u32 %v4633, 7
        %v4635 = vsub.s32 %v4632, %v4634
        %v4636 = vrot.slane %v4622, %v4635
        %v4637 = vcombine.high %v4629, 0.0
        %v4639 = vunpack.c.l.s4 1934713408
        %v4640 = vunpack.c.0.s8 %v4639
        %v4641 = vlaneseq
        %v4642 = vshrl.u32 %v4641, 7
        %v4643 = vsub.s32 %v4640, %v4642
        %v4644 = vrot.slane %v4629, %v4643
        %v4646 = vunpack.c.l.s4 1934713408
        %v4647 = vunpack.c.0.s8 %v4646
        %v4648 = vlaneseq
        %v4649 = vshrl.u32 %v4648, 7
        %v4650 = vsub.s32 %v4647, %v4649
        %v4651 = vrot.slane %v4637, %v4650
        %v4652 = vcombine.high %v4636, 0.0
        %v4654 = vunpack.c.l.s4 1934713408
        %v4655 = vunpack.c.0.s8 %v4654
        %v4656 = vlaneseq
        %v4657 = vshrl.u32 %v4656, 7
        %v4658 = vsub.s32 %v4655, %v4657
        %v4659 = vrot.slane %v4636, %v4658
        %v4661 = vunpack.c.l.s4 1934713408
        %v4662 = vunpack.c.0.s8 %v4661
        %v4663 = vlaneseq
        %v4664 = vshrl.u32 %v4663, 7
        %v4665 = vsub.s32 %v4662, %v4664
        %v4666 = vrot.slane %v4652, %v4665
        %v4667 = vcombine.high %v4644, 0.0
        %v4668 = vcombine.high %v4651, 0.0
        %v4669 = vcombine.high %v4659, 0.0
        %v4670 = vcombine.high %v4666, 0.0
        %v4671 = vcombine.high %v944, 0.0
        %v4673 = vunpack.c.l.s4 1983009808
        %v4674 = vunpack.c.0.s8 %v4673
        %v4675 = vlaneseq
        %v4676 = vshrl.u32 %v4675, 7
        %v4677 = vsub.s32 %v4674, %v4676
        %v4678 = vrot.slane %v944, %v4677
        %v4680 = vunpack.c.l.s4 1983009808
        %v4681 = vunpack.c.0.s8 %v4680
        %v4682 = vlaneseq
        %v4683 = vshrl.u32 %v4682, 7
        %v4684 = vsub.s32 %v4681, %v4683
        %v4685 = vrot.slane %v4671, %v4684
        %v4686 = vcombine.high %v4678, 0.0
        %v4688 = vunpack.c.l.s4 1934713408
        %v4689 = vunpack.c.0.s8 %v4688
        %v4690 = vlaneseq
        %v4691 = vshrl.u32 %v4690, 7
        %v4692 = vsub.s32 %v4689, %v4691
        %v4693 = vrot.slane %v4678, %v4692
        %v4695 = vunpack.c.l.s4 1934713408
        %v4696 = vunpack.c.0.s8 %v4695
        %v4697 = vlaneseq
        %v4698 = vshrl.u32 %v4697, 7
        %v4699 = vsub.s32 %v4696, %v4698
        %v4700 = vrot.slane %v4686, %v4699
        %v4701 = vcombine.high %v4685, 0.0
        %v4703 = vunpack.c.l.s4 1934713408
        %v4704 = vunpack.c.0.s8 %v4703
        %v4705 = vlaneseq
        %v4706 = vshrl.u32 %v4705, 7
        %v4707 = vsub.s32 %v4704, %v4706
        %v4708 = vrot.slane %v4685, %v4707
        %v4710 = vunpack.c.l.s4 1934713408
        %v4711 = vunpack.c.0.s8 %v4710
        %v4712 = vlaneseq
        %v4713 = vshrl.u32 %v4712, 7
        %v4714 = vsub.s32 %v4711, %v4713
        %v4715 = vrot.slane %v4701, %v4714
        %v4716 = vcombine.high %v4693, 0.0
        %v4717 = vcombine.high %v4700, 0.0
        %v4718 = vcombine.high %v4708, 0.0
        %v4719 = vcombine.high %v4715, 0.0
        %v4720 = vcombine.high %v945, 0.0
        %v4722 = vunpack.c.l.s4 1983009808
        %v4723 = vunpack.c.0.s8 %v4722
        %v4724 = vlaneseq
        %v4725 = vshrl.u32 %v4724, 7
        %v4726 = vsub.s32 %v4723, %v4725
        %v4727 = vrot.slane %v945, %v4726
        %v4729 = vunpack.c.l.s4 1983009808
        %v4730 = vunpack.c.0.s8 %v4729
        %v4731 = vlaneseq
        %v4732 = vshrl.u32 %v4731, 7
        %v4733 = vsub.s32 %v4730, %v4732
        %v4734 = vrot.slane %v4720, %v4733
        %v4735 = vcombine.high %v4727, 0.0
        %v4737 = vunpack.c.l.s4 1934713408
        %v4738 = vunpack.c.0.s8 %v4737
        %v4739 = vlaneseq
        %v4740 = vshrl.u32 %v4739, 7
        %v4741 = vsub.s32 %v4738, %v4740
        %v4742 = vrot.slane %v4727, %v4741
        %v4744 = vunpack.c.l.s4 1934713408
        %v4745 = vunpack.c.0.s8 %v4744
        %v4746 = vlaneseq
        %v4747 = vshrl.u32 %v4746, 7
        %v4748 = vsub.s32 %v4745, %v4747
        %v4749 = vrot.slane %v4735, %v4748
        %v4750 = vcombine.high %v4734, 0.0
        %v4752 = vunpack.c.l.s4 1934713408
        %v4753 = vunpack.c.0.s8 %v4752
        %v4754 = vlaneseq
        %v4755 = vshrl.u32 %v4754, 7
        %v4756 = vsub.s32 %v4753, %v4755
        %v4757 = vrot.slane %v4734, %v4756
        %v4759 = vunpack.c.l.s4 1934713408
        %v4760 = vunpack.c.0.s8 %v4759
        %v4761 = vlaneseq
        %v4762 = vshrl.u32 %v4761, 7
        %v4763 = vsub.s32 %v4760, %v4762
        %v4764 = vrot.slane %v4750, %v4763
        %v4765 = vcombine.high %v4742, 0.0
        %v4766 = vcombine.high %v4749, 0.0
        %v4767 = vcombine.high %v4757, 0.0
        %v4768 = vcombine.high %v4764, 0.0
        %v4769 = vcombine.high %v946, 0.0
        %v4771 = vunpack.c.l.s4 1983009808
        %v4772 = vunpack.c.0.s8 %v4771
        %v4773 = vlaneseq
        %v4774 = vshrl.u32 %v4773, 7
        %v4775 = vsub.s32 %v4772, %v4774
        %v4776 = vrot.slane %v946, %v4775
        %v4778 = vunpack.c.l.s4 1983009808
        %v4779 = vunpack.c.0.s8 %v4778
        %v4780 = vlaneseq
        %v4781 = vshrl.u32 %v4780, 7
        %v4782 = vsub.s32 %v4779, %v4781
        %v4783 = vrot.slane %v4769, %v4782
        %v4784 = vcombine.high %v4776, 0.0
        %v4786 = vunpack.c.l.s4 1934713408
        %v4787 = vunpack.c.0.s8 %v4786
        %v4788 = vlaneseq
        %v4789 = vshrl.u32 %v4788, 7
        %v4790 = vsub.s32 %v4787, %v4789
        %v4791 = vrot.slane %v4776, %v4790
        %v4793 = vunpack.c.l.s4 1934713408
        %v4794 = vunpack.c.0.s8 %v4793
        %v4795 = vlaneseq
        %v4796 = vshrl.u32 %v4795, 7
        %v4797 = vsub.s32 %v4794, %v4796
        %v4798 = vrot.slane %v4784, %v4797
        %v4799 = vcombine.high %v4783, 0.0
        %v4801 = vunpack.c.l.s4 1934713408
        %v4802 = vunpack.c.0.s8 %v4801
        %v4803 = vlaneseq
        %v4804 = vshrl.u32 %v4803, 7
        %v4805 = vsub.s32 %v4802, %v4804
        %v4806 = vrot.slane %v4783, %v4805
        %v4808 = vunpack.c.l.s4 1934713408
        %v4809 = vunpack.c.0.s8 %v4808
        %v4810 = vlaneseq
        %v4811 = vshrl.u32 %v4810, 7
        %v4812 = vsub.s32 %v4809, %v4811
        %v4813 = vrot.slane %v4799, %v4812
        %v4814 = vcombine.high %v4791, 0.0
        %v4815 = vcombine.high %v4798, 0.0
        %v4816 = vcombine.high %v4806, 0.0
        %v4817 = vcombine.high %v4813, 0.0
        %v4818 = vcombine.high %v947, 0.0
        %v4820 = vunpack.c.l.s4 1983009808
        %v4821 = vunpack.c.0.s8 %v4820
        %v4822 = vlaneseq
        %v4823 = vshrl.u32 %v4822, 7
        %v4824 = vsub.s32 %v4821, %v4823
        %v4825 = vrot.slane %v947, %v4824
        %v4827 = vunpack.c.l.s4 1983009808
        %v4828 = vunpack.c.0.s8 %v4827
        %v4829 = vlaneseq
        %v4830 = vshrl.u32 %v4829, 7
        %v4831 = vsub.s32 %v4828, %v4830
        %v4832 = vrot.slane %v4818, %v4831
        %v4833 = vcombine.high %v4825, 0.0
        %v4835 = vunpack.c.l.s4 1934713408
        %v4836 = vunpack.c.0.s8 %v4835
        %v4837 = vlaneseq
        %v4838 = vshrl.u32 %v4837, 7
        %v4839 = vsub.s32 %v4836, %v4838
        %v4840 = vrot.slane %v4825, %v4839
        %v4842 = vunpack.c.l.s4 1934713408
        %v4843 = vunpack.c.0.s8 %v4842
        %v4844 = vlaneseq
        %v4845 = vshrl.u32 %v4844, 7
        %v4846 = vsub.s32 %v4843, %v4845
        %v4847 = vrot.slane %v4833, %v4846
        %v4848 = vcombine.high %v4832, 0.0
        %v4850 = vunpack.c.l.s4 1934713408
        %v4851 = vunpack.c.0.s8 %v4850
        %v4852 = vlaneseq
        %v4853 = vshrl.u32 %v4852, 7
        %v4854 = vsub.s32 %v4851, %v4853
        %v4855 = vrot.slane %v4832, %v4854
        %v4857 = vunpack.c.l.s4 1934713408
        %v4858 = vunpack.c.0.s8 %v4857
        %v4859 = vlaneseq
        %v4860 = vshrl.u32 %v4859, 7
        %v4861 = vsub.s32 %v4858, %v4860
        %v4862 = vrot.slane %v4848, %v4861
        %v4863 = vcombine.high %v4840, 0.0
        %v4864 = vcombine.high %v4847, 0.0
        %v4865 = vcombine.high %v4855, 0.0
        %v4866 = vcombine.high %v4862, 0.0
        %v4867 = vcombine.high %v948, 0.0
        %v4869 = vunpack.c.l.s4 1983009808
        %v4870 = vunpack.c.0.s8 %v4869
        %v4871 = vlaneseq
        %v4872 = vshrl.u32 %v4871, 7
        %v4873 = vsub.s32 %v4870, %v4872
        %v4874 = vrot.slane %v948, %v4873
        %v4876 = vunpack.c.l.s4 1983009808
        %v4877 = vunpack.c.0.s8 %v4876
        %v4878 = vlaneseq
        %v4879 = vshrl.u32 %v4878, 7
        %v4880 = vsub.s32 %v4877, %v4879
        %v4881 = vrot.slane %v4867, %v4880
        %v4882 = vcombine.high %v4874, 0.0
        %v4884 = vunpack.c.l.s4 1934713408
        %v4885 = vunpack.c.0.s8 %v4884
        %v4886 = vlaneseq
        %v4887 = vshrl.u32 %v4886, 7
        %v4888 = vsub.s32 %v4885, %v4887
        %v4889 = vrot.slane %v4874, %v4888
        %v4891 = vunpack.c.l.s4 1934713408
        %v4892 = vunpack.c.0.s8 %v4891
        %v4893 = vlaneseq
        %v4894 = vshrl.u32 %v4893, 7
        %v4895 = vsub.s32 %v4892, %v4894
        %v4896 = vrot.slane %v4882, %v4895
        %v4897 = vcombine.high %v4881, 0.0
        %v4899 = vunpack.c.l.s4 1934713408
        %v4900 = vunpack.c.0.s8 %v4899
        %v4901 = vlaneseq
        %v4902 = vshrl.u32 %v4901, 7
        %v4903 = vsub.s32 %v4900, %v4902
        %v4904 = vrot.slane %v4881, %v4903
        %v4906 = vunpack.c.l.s4 1934713408
        %v4907 = vunpack.c.0.s8 %v4906
        %v4908 = vlaneseq
        %v4909 = vshrl.u32 %v4908, 7
        %v4910 = vsub.s32 %v4907, %v4909
        %v4911 = vrot.slane %v4897, %v4910
        %v4912 = vcombine.high %v4889, 0.0
        %v4913 = vcombine.high %v4896, 0.0
        %v4914 = vcombine.high %v4904, 0.0
        %v4915 = vcombine.high %v4911, 0.0
        %v4916 = vcombine.high %v949, 0.0
        %v4918 = vunpack.c.l.s4 1983009808
        %v4919 = vunpack.c.0.s8 %v4918
        %v4920 = vlaneseq
        %v4921 = vshrl.u32 %v4920, 7
        %v4922 = vsub.s32 %v4919, %v4921
        %v4923 = vrot.slane %v949, %v4922
        %v4925 = vunpack.c.l.s4 1983009808
        %v4926 = vunpack.c.0.s8 %v4925
        %v4927 = vlaneseq
        %v4928 = vshrl.u32 %v4927, 7
        %v4929 = vsub.s32 %v4926, %v4928
        %v4930 = vrot.slane %v4916, %v4929
        %v4931 = vcombine.high %v4923, 0.0
        %v4933 = vunpack.c.l.s4 1934713408
        %v4934 = vunpack.c.0.s8 %v4933
        %v4935 = vlaneseq
        %v4936 = vshrl.u32 %v4935, 7
        %v4937 = vsub.s32 %v4934, %v4936
        %v4938 = vrot.slane %v4923, %v4937
        %v4940 = vunpack.c.l.s4 1934713408
        %v4941 = vunpack.c.0.s8 %v4940
        %v4942 = vlaneseq
        %v4943 = vshrl.u32 %v4942, 7
        %v4944 = vsub.s32 %v4941, %v4943
        %v4945 = vrot.slane %v4931, %v4944
        %v4946 = vcombine.high %v4930, 0.0
        %v4948 = vunpack.c.l.s4 1934713408
        %v4949 = vunpack.c.0.s8 %v4948
        %v4950 = vlaneseq
        %v4951 = vshrl.u32 %v4950, 7
        %v4952 = vsub.s32 %v4949, %v4951
        %v4953 = vrot.slane %v4930, %v4952
        %v4955 = vunpack.c.l.s4 1934713408
        %v4956 = vunpack.c.0.s8 %v4955
        %v4957 = vlaneseq
        %v4958 = vshrl.u32 %v4957, 7
        %v4959 = vsub.s32 %v4956, %v4958
        %v4960 = vrot.slane %v4946, %v4959
        %v4961 = vcombine.high %v4938, 0.0
        %v4962 = vcombine.high %v4945, 0.0
        %v4963 = vcombine.high %v4953, 0.0
        %v4964 = vcombine.high %v4960, 0.0
        %v4965 = vcombine.high %v950, 0.0
        %v4967 = vunpack.c.l.s4 1983009808
        %v4968 = vunpack.c.0.s8 %v4967
        %v4969 = vlaneseq
        %v4970 = vshrl.u32 %v4969, 7
        %v4971 = vsub.s32 %v4968, %v4970
        %v4972 = vrot.slane %v950, %v4971
        %v4974 = vunpack.c.l.s4 1983009808
        %v4975 = vunpack.c.0.s8 %v4974
        %v4976 = vlaneseq
        %v4977 = vshrl.u32 %v4976, 7
        %v4978 = vsub.s32 %v4975, %v4977
        %v4979 = vrot.slane %v4965, %v4978
        %v4980 = vcombine.high %v4972, 0.0
        %v4982 = vunpack.c.l.s4 1934713408
        %v4983 = vunpack.c.0.s8 %v4982
        %v4984 = vlaneseq
        %v4985 = vshrl.u32 %v4984, 7
        %v4986 = vsub.s32 %v4983, %v4985
        %v4987 = vrot.slane %v4972, %v4986
        %v4989 = vunpack.c.l.s4 1934713408
        %v4990 = vunpack.c.0.s8 %v4989
        %v4991 = vlaneseq
        %v4992 = vshrl.u32 %v4991, 7
        %v4993 = vsub.s32 %v4990, %v4992
        %v4994 = vrot.slane %v4980, %v4993
        %v4995 = vcombine.high %v4979, 0.0
        %v4997 = vunpack.c.l.s4 1934713408
        %v4998 = vunpack.c.0.s8 %v4997
        %v4999 = vlaneseq
        %v5000 = vshrl.u32 %v4999, 7
        %v5001 = vsub.s32 %v4998, %v5000
        %v5002 = vrot.slane %v4979, %v5001
        %v5004 = vunpack.c.l.s4 1934713408
        %v5005 = vunpack.c.0.s8 %v5004
        %v5006 = vlaneseq
        %v5007 = vshrl.u32 %v5006, 7
        %v5008 = vsub.s32 %v5005, %v5007
        %v5009 = vrot.slane %v4995, %v5008
        %v5010 = vcombine.high %v4987, 0.0
        %v5011 = vcombine.high %v4994, 0.0
        %v5012 = vcombine.high %v5002, 0.0
        %v5013 = vcombine.high %v5009, 0.0
        %v5014 = vcombine.high %v951, 0.0
        %v5016 = vunpack.c.l.s4 1983009808
        %v5017 = vunpack.c.0.s8 %v5016
        %v5018 = vlaneseq
        %v5019 = vshrl.u32 %v5018, 7
        %v5020 = vsub.s32 %v5017, %v5019
        %v5021 = vrot.slane %v951, %v5020
        %v5023 = vunpack.c.l.s4 1983009808
        %v5024 = vunpack.c.0.s8 %v5023
        %v5025 = vlaneseq
        %v5026 = vshrl.u32 %v5025, 7
        %v5027 = vsub.s32 %v5024, %v5026
        %v5028 = vrot.slane %v5014, %v5027
        %v5029 = vcombine.high %v5021, 0.0
        %v5031 = vunpack.c.l.s4 1934713408
        %v5032 = vunpack.c.0.s8 %v5031
        %v5033 = vlaneseq
        %v5034 = vshrl.u32 %v5033, 7
        %v5035 = vsub.s32 %v5032, %v5034
        %v5036 = vrot.slane %v5021, %v5035
        %v5038 = vunpack.c.l.s4 1934713408
        %v5039 = vunpack.c.0.s8 %v5038
        %v5040 = vlaneseq
        %v5041 = vshrl.u32 %v5040, 7
        %v5042 = vsub.s32 %v5039, %v5041
        %v5043 = vrot.slane %v5029, %v5042
        %v5044 = vcombine.high %v5028, 0.0
        %v5046 = vunpack.c.l.s4 1934713408
        %v5047 = vunpack.c.0.s8 %v5046
        %v5048 = vlaneseq
        %v5049 = vshrl.u32 %v5048, 7
        %v5050 = vsub.s32 %v5047, %v5049
        %v5051 = vrot.slane %v5028, %v5050
        %v5053 = vunpack.c.l.s4 1934713408
        %v5054 = vunpack.c.0.s8 %v5053
        %v5055 = vlaneseq
        %v5056 = vshrl.u32 %v5055, 7
        %v5057 = vsub.s32 %v5054, %v5056
        %v5058 = vrot.slane %v5044, %v5057
        %v5059 = vcombine.high %v5036, 0.0
        %v5060 = vcombine.high %v5043, 0.0
        %v5061 = vcombine.high %v5051, 0.0
        %v5062 = vcombine.high %v5058, 0.0
        %v5063 = vcombine.high %v952, 0.0
        %v5065 = vunpack.c.l.s4 1983009808
        %v5066 = vunpack.c.0.s8 %v5065
        %v5067 = vlaneseq
        %v5068 = vshrl.u32 %v5067, 7
        %v5069 = vsub.s32 %v5066, %v5068
        %v5070 = vrot.slane %v952, %v5069
        %v5072 = vunpack.c.l.s4 1983009808
        %v5073 = vunpack.c.0.s8 %v5072
        %v5074 = vlaneseq
        %v5075 = vshrl.u32 %v5074, 7
        %v5076 = vsub.s32 %v5073, %v5075
        %v5077 = vrot.slane %v5063, %v5076
        %v5078 = vcombine.high %v5070, 0.0
        %v5080 = vunpack.c.l.s4 1934713408
        %v5081 = vunpack.c.0.s8 %v5080
        %v5082 = vlaneseq
        %v5083 = vshrl.u32 %v5082, 7
        %v5084 = vsub.s32 %v5081, %v5083
        %v5085 = vrot.slane %v5070, %v5084
        %v5087 = vunpack.c.l.s4 1934713408
        %v5088 = vunpack.c.0.s8 %v5087
        %v5089 = vlaneseq
        %v5090 = vshrl.u32 %v5089, 7
        %v5091 = vsub.s32 %v5088, %v5090
        %v5092 = vrot.slane %v5078, %v5091
        %v5093 = vcombine.high %v5077, 0.0
        %v5095 = vunpack.c.l.s4 1934713408
        %v5096 = vunpack.c.0.s8 %v5095
        %v5097 = vlaneseq
        %v5098 = vshrl.u32 %v5097, 7
        %v5099 = vsub.s32 %v5096, %v5098
        %v5100 = vrot.slane %v5077, %v5099
        %v5102 = vunpack.c.l.s4 1934713408
        %v5103 = vunpack.c.0.s8 %v5102
        %v5104 = vlaneseq
        %v5105 = vshrl.u32 %v5104, 7
        %v5106 = vsub.s32 %v5103, %v5105
        %v5107 = vrot.slane %v5093, %v5106
        %v5108 = vcombine.high %v5085, 0.0
        %v5109 = vcombine.high %v5092, 0.0
        %v5110 = vcombine.high %v5100, 0.0
        %v5111 = vcombine.high %v5107, 0.0
        %v5112 = vcombine.high %v953, 0.0
        %v5114 = vunpack.c.l.s4 1983009808
        %v5115 = vunpack.c.0.s8 %v5114
        %v5116 = vlaneseq
        %v5117 = vshrl.u32 %v5116, 7
        %v5118 = vsub.s32 %v5115, %v5117
        %v5119 = vrot.slane %v953, %v5118
        %v5121 = vunpack.c.l.s4 1983009808
        %v5122 = vunpack.c.0.s8 %v5121
        %v5123 = vlaneseq
        %v5124 = vshrl.u32 %v5123, 7
        %v5125 = vsub.s32 %v5122, %v5124
        %v5126 = vrot.slane %v5112, %v5125
        %v5127 = vcombine.high %v5119, 0.0
        %v5129 = vunpack.c.l.s4 1934713408
        %v5130 = vunpack.c.0.s8 %v5129
        %v5131 = vlaneseq
        %v5132 = vshrl.u32 %v5131, 7
        %v5133 = vsub.s32 %v5130, %v5132
        %v5134 = vrot.slane %v5119, %v5133
        %v5136 = vunpack.c.l.s4 1934713408
        %v5137 = vunpack.c.0.s8 %v5136
        %v5138 = vlaneseq
        %v5139 = vshrl.u32 %v5138, 7
        %v5140 = vsub.s32 %v5137, %v5139
        %v5141 = vrot.slane %v5127, %v5140
        %v5142 = vcombine.high %v5126, 0.0
        %v5144 = vunpack.c.l.s4 1934713408
        %v5145 = vunpack.c.0.s8 %v5144
        %v5146 = vlaneseq
        %v5147 = vshrl.u32 %v5146, 7
        %v5148 = vsub.s32 %v5145, %v5147
        %v5149 = vrot.slane %v5126, %v5148
        %v5151 = vunpack.c.l.s4 1934713408
        %v5152 = vunpack.c.0.s8 %v5151
        %v5153 = vlaneseq
        %v5154 = vshrl.u32 %v5153, 7
        %v5155 = vsub.s32 %v5152, %v5154
        %v5156 = vrot.slane %v5142, %v5155
        %v5157 = vcombine.high %v5134, 0.0
        %v5158 = vcombine.high %v5141, 0.0
        %v5159 = vcombine.high %v5149, 0.0
        %v5160 = vcombine.high %v5156, 0.0
        %v5161 = vcombine.high %v954, 0.0
        %v5163 = vunpack.c.l.s4 1983009808
        %v5164 = vunpack.c.0.s8 %v5163
        %v5165 = vlaneseq
        %v5166 = vshrl.u32 %v5165, 7
        %v5167 = vsub.s32 %v5164, %v5166
        %v5168 = vrot.slane %v954, %v5167
        %v5170 = vunpack.c.l.s4 1983009808
        %v5171 = vunpack.c.0.s8 %v5170
        %v5172 = vlaneseq
        %v5173 = vshrl.u32 %v5172, 7
        %v5174 = vsub.s32 %v5171, %v5173
        %v5175 = vrot.slane %v5161, %v5174
        %v5176 = vcombine.high %v5168, 0.0
        %v5178 = vunpack.c.l.s4 1934713408
        %v5179 = vunpack.c.0.s8 %v5178
        %v5180 = vlaneseq
        %v5181 = vshrl.u32 %v5180, 7
        %v5182 = vsub.s32 %v5179, %v5181
        %v5183 = vrot.slane %v5168, %v5182
        %v5185 = vunpack.c.l.s4 1934713408
        %v5186 = vunpack.c.0.s8 %v5185
        %v5187 = vlaneseq
        %v5188 = vshrl.u32 %v5187, 7
        %v5189 = vsub.s32 %v5186, %v5188
        %v5190 = vrot.slane %v5176, %v5189
        %v5191 = vcombine.high %v5175, 0.0
        %v5193 = vunpack.c.l.s4 1934713408
        %v5194 = vunpack.c.0.s8 %v5193
        %v5195 = vlaneseq
        %v5196 = vshrl.u32 %v5195, 7
        %v5197 = vsub.s32 %v5194, %v5196
        %v5198 = vrot.slane %v5175, %v5197
        %v5200 = vunpack.c.l.s4 1934713408
        %v5201 = vunpack.c.0.s8 %v5200
        %v5202 = vlaneseq
        %v5203 = vshrl.u32 %v5202, 7
        %v5204 = vsub.s32 %v5201, %v5203
        %v5205 = vrot.slane %v5191, %v5204
        %v5206 = vcombine.high %v5183, 0.0
        %v5207 = vcombine.high %v5190, 0.0
        %v5208 = vcombine.high %v5198, 0.0
        %v5209 = vcombine.high %v5205, 0.0
        %v5210 = vcombine.high %v955, 0.0
        %v5212 = vunpack.c.l.s4 1983009808
        %v5213 = vunpack.c.0.s8 %v5212
        %v5214 = vlaneseq
        %v5215 = vshrl.u32 %v5214, 7
        %v5216 = vsub.s32 %v5213, %v5215
        %v5217 = vrot.slane %v955, %v5216
        %v5219 = vunpack.c.l.s4 1983009808
        %v5220 = vunpack.c.0.s8 %v5219
        %v5221 = vlaneseq
        %v5222 = vshrl.u32 %v5221, 7
        %v5223 = vsub.s32 %v5220, %v5222
        %v5224 = vrot.slane %v5210, %v5223
        %v5225 = vcombine.high %v5217, 0.0
        %v5227 = vunpack.c.l.s4 1934713408
        %v5228 = vunpack.c.0.s8 %v5227
        %v5229 = vlaneseq
        %v5230 = vshrl.u32 %v5229, 7
        %v5231 = vsub.s32 %v5228, %v5230
        %v5232 = vrot.slane %v5217, %v5231
        %v5234 = vunpack.c.l.s4 1934713408
        %v5235 = vunpack.c.0.s8 %v5234
        %v5236 = vlaneseq
        %v5237 = vshrl.u32 %v5236, 7
        %v5238 = vsub.s32 %v5235, %v5237
        %v5239 = vrot.slane %v5225, %v5238
        %v5240 = vcombine.high %v5224, 0.0
        %v5242 = vunpack.c.l.s4 1934713408
        %v5243 = vunpack.c.0.s8 %v5242
        %v5244 = vlaneseq
        %v5245 = vshrl.u32 %v5244, 7
        %v5246 = vsub.s32 %v5243, %v5245
        %v5247 = vrot.slane %v5224, %v5246
        %v5249 = vunpack.c.l.s4 1934713408
        %v5250 = vunpack.c.0.s8 %v5249
        %v5251 = vlaneseq
        %v5252 = vshrl.u32 %v5251, 7
        %v5253 = vsub.s32 %v5250, %v5252
        %v5254 = vrot.slane %v5240, %v5253
        %v5255 = vcombine.high %v5232, 0.0
        %v5256 = vcombine.high %v5239, 0.0
        %v5257 = vcombine.high %v5247, 0.0
        %v5258 = vcombine.high %v5254, 0.0
        %v5259 = vcombine.high %v956, 0.0
        %v5261 = vunpack.c.l.s4 1983009808
        %v5262 = vunpack.c.0.s8 %v5261
        %v5263 = vlaneseq
        %v5264 = vshrl.u32 %v5263, 7
        %v5265 = vsub.s32 %v5262, %v5264
        %v5266 = vrot.slane %v956, %v5265
        %v5268 = vunpack.c.l.s4 1983009808
        %v5269 = vunpack.c.0.s8 %v5268
        %v5270 = vlaneseq
        %v5271 = vshrl.u32 %v5270, 7
        %v5272 = vsub.s32 %v5269, %v5271
        %v5273 = vrot.slane %v5259, %v5272
        %v5274 = vcombine.high %v5266, 0.0
        %v5276 = vunpack.c.l.s4 1934713408
        %v5277 = vunpack.c.0.s8 %v5276
        %v5278 = vlaneseq
        %v5279 = vshrl.u32 %v5278, 7
        %v5280 = vsub.s32 %v5277, %v5279
        %v5281 = vrot.slane %v5266, %v5280
        %v5283 = vunpack.c.l.s4 1934713408
        %v5284 = vunpack.c.0.s8 %v5283
        %v5285 = vlaneseq
        %v5286 = vshrl.u32 %v5285, 7
        %v5287 = vsub.s32 %v5284, %v5286
        %v5288 = vrot.slane %v5274, %v5287
        %v5289 = vcombine.high %v5273, 0.0
        %v5291 = vunpack.c.l.s4 1934713408
        %v5292 = vunpack.c.0.s8 %v5291
        %v5293 = vlaneseq
        %v5294 = vshrl.u32 %v5293, 7
        %v5295 = vsub.s32 %v5292, %v5294
        %v5296 = vrot.slane %v5273, %v5295
        %v5298 = vunpack.c.l.s4 1934713408
        %v5299 = vunpack.c.0.s8 %v5298
        %v5300 = vlaneseq
        %v5301 = vshrl.u32 %v5300, 7
        %v5302 = vsub.s32 %v5299, %v5301
        %v5303 = vrot.slane %v5289, %v5302
        %v5304 = vcombine.high %v5281, 0.0
        %v5305 = vcombine.high %v5288, 0.0
        %v5306 = vcombine.high %v5296, 0.0
        %v5307 = vcombine.high %v5303, 0.0
        %5324 = vrot.lane.b32.xlu0 %v3785, 2
        %v5325 = vpop.permute.xlu0 %5324
        %5326 = vrot.lane.b32.xlu0 %v3883, 2
        %v5327 = vpop.permute.xlu0 %5326
        %5328 = vrot.lane.b32.xlu0 %v3981, 2
        %v5329 = vpop.permute.xlu0 %5328
        %5330 = vrot.lane.b32.xlu0 %v4079, 2
        %v5331 = vpop.permute.xlu0 %5330
        %5332 = vrot.lane.b32.xlu0 %v4177, 2
        %v5333 = vpop.permute.xlu0 %5332
        %5334 = vrot.lane.b32.xlu0 %v4275, 2
        %v5335 = vpop.permute.xlu0 %5334
        %5336 = vrot.lane.b32.xlu0 %v4373, 2
        %v5337 = vpop.permute.xlu0 %5336
        %5338 = vrot.lane.b32.xlu0 %v4471, 2
        %v5339 = vpop.permute.xlu0 %5338
        %5340 = vrot.lane.b32.xlu0 %v4569, 2
        %v5341 = vpop.permute.xlu0 %5340
        %5342 = vrot.lane.b32.xlu0 %v4667, 2
        %v5343 = vpop.permute.xlu0 %5342
        %5344 = vrot.lane.b32.xlu0 %v4765, 2
        %v5345 = vpop.permute.xlu0 %5344
        %5346 = vrot.lane.b32.xlu0 %v4863, 2
        %v5347 = vpop.permute.xlu0 %5346
        %5348 = vrot.lane.b32.xlu0 %v4961, 2
        %v5349 = vpop.permute.xlu0 %5348
        %5350 = vrot.lane.b32.xlu0 %v5059, 2
        %v5351 = vpop.permute.xlu0 %5350
        %5352 = vrot.lane.b32.xlu0 %v5157, 2
        %v5353 = vpop.permute.xlu0 %5352
        %5354 = vrot.lane.b32.xlu0 %v5255, 2
        %v5355 = vpop.permute.xlu0 %5354
        %5388 = vrot.lane.b32.xlu0 %v3769, 4
        %v5389 = vpop.permute.xlu0 %5388
        %5390 = vrot.lane.b32.xlu0 %v3867, 4
        %v5391 = vpop.permute.xlu0 %5390
        %5392 = vrot.lane.b32.xlu0 %v3965, 4
        %v5393 = vpop.permute.xlu0 %5392
        %5394 = vrot.lane.b32.xlu0 %v4063, 4
        %v5395 = vpop.permute.xlu0 %5394
        %5396 = vrot.lane.b32.xlu0 %v4161, 4
        %v5397 = vpop.permute.xlu0 %5396
        %5398 = vrot.lane.b32.xlu0 %v4259, 4
        %v5399 = vpop.permute.xlu0 %5398
        %5400 = vrot.lane.b32.xlu0 %v4357, 4
        %v5401 = vpop.permute.xlu0 %5400
        %5402 = vrot.lane.b32.xlu0 %v4455, 4
        %v5403 = vpop.permute.xlu0 %5402
        %5404 = vrot.lane.b32.xlu0 %v4553, 4
        %v5405 = vpop.permute.xlu0 %5404
        %5406 = vrot.lane.b32.xlu0 %v4651, 4
        %v5407 = vpop.permute.xlu0 %5406
        %5408 = vrot.lane.b32.xlu0 %v4749, 4
        %v5409 = vpop.permute.xlu0 %5408
        %5410 = vrot.lane.b32.xlu0 %v4847, 4
        %v5411 = vpop.permute.xlu0 %5410
        %5412 = vrot.lane.b32.xlu0 %v4945, 4
        %v5413 = vpop.permute.xlu0 %5412
        %5414 = vrot.lane.b32.xlu0 %v5043, 4
        %v5415 = vpop.permute.xlu0 %5414
        %5416 = vrot.lane.b32.xlu0 %v5141, 4
        %v5417 = vpop.permute.xlu0 %5416
        %5418 = vrot.lane.b32.xlu0 %v5239, 4
        %v5419 = vpop.permute.xlu0 %5418
        %5452 = vrot.lane.b32.xlu0 %v3786, 6
        %v5453 = vpop.permute.xlu0 %5452
        %5454 = vrot.lane.b32.xlu0 %v3884, 6
        %v5455 = vpop.permute.xlu0 %5454
        %5456 = vrot.lane.b32.xlu0 %v3982, 6
        %v5457 = vpop.permute.xlu0 %5456
        %5458 = vrot.lane.b32.xlu0 %v4080, 6
        %v5459 = vpop.permute.xlu0 %5458
        %5460 = vrot.lane.b32.xlu0 %v4178, 6
        %v5461 = vpop.permute.xlu0 %5460
        %5462 = vrot.lane.b32.xlu0 %v4276, 6
        %v5463 = vpop.permute.xlu0 %5462
        %5464 = vrot.lane.b32.xlu0 %v4374, 6
        %v5465 = vpop.permute.xlu0 %5464
        %5466 = vrot.lane.b32.xlu0 %v4472, 6
        %v5467 = vpop.permute.xlu0 %5466
        %5468 = vrot.lane.b32.xlu0 %v4570, 6
        %v5469 = vpop.permute.xlu0 %5468
        %5470 = vrot.lane.b32.xlu0 %v4668, 6
        %v5471 = vpop.permute.xlu0 %5470
        %5472 = vrot.lane.b32.xlu0 %v4766, 6
        %v5473 = vpop.permute.xlu0 %5472
        %5474 = vrot.lane.b32.xlu0 %v4864, 6
        %v5475 = vpop.permute.xlu0 %5474
        %5476 = vrot.lane.b32.xlu0 %v4962, 6
        %v5477 = vpop.permute.xlu0 %5476
        %5478 = vrot.lane.b32.xlu0 %v5060, 6
        %v5479 = vpop.permute.xlu0 %5478
        %5480 = vrot.lane.b32.xlu0 %v5158, 6
        %v5481 = vpop.permute.xlu0 %5480
        %5482 = vrot.lane.b32.xlu0 %v5256, 6
        %v5483 = vpop.permute.xlu0 %5482
        %5516 = vrot.lane.b32.xlu0 %v3777, 8
        %v5517 = vpop.permute.xlu0 %5516
        %5518 = vrot.lane.b32.xlu0 %v3875, 8
        %v5519 = vpop.permute.xlu0 %5518
        %5520 = vrot.lane.b32.xlu0 %v3973, 8
        %v5521 = vpop.permute.xlu0 %5520
        %5522 = vrot.lane.b32.xlu0 %v4071, 8
        %v5523 = vpop.permute.xlu0 %5522
        %5524 = vrot.lane.b32.xlu0 %v4169, 8
        %v5525 = vpop.permute.xlu0 %5524
        %5526 = vrot.lane.b32.xlu0 %v4267, 8
        %v5527 = vpop.permute.xlu0 %5526
        %5528 = vrot.lane.b32.xlu0 %v4365, 8
        %v5529 = vpop.permute.xlu0 %5528
        %5530 = vrot.lane.b32.xlu0 %v4463, 8
        %v5531 = vpop.permute.xlu0 %5530
        %5532 = vrot.lane.b32.xlu0 %v4561, 8
        %v5533 = vpop.permute.xlu0 %5532
        %5534 = vrot.lane.b32.xlu0 %v4659, 8
        %v5535 = vpop.permute.xlu0 %5534
        %5536 = vrot.lane.b32.xlu0 %v4757, 8
        %v5537 = vpop.permute.xlu0 %5536
        %5538 = vrot.lane.b32.xlu0 %v4855, 8
        %v5539 = vpop.permute.xlu0 %5538
        %5540 = vrot.lane.b32.xlu0 %v4953, 8
        %v5541 = vpop.permute.xlu0 %5540
        %5542 = vrot.lane.b32.xlu0 %v5051, 8
        %v5543 = vpop.permute.xlu0 %5542
        %5544 = vrot.lane.b32.xlu0 %v5149, 8
        %v5545 = vpop.permute.xlu0 %5544
        %5546 = vrot.lane.b32.xlu0 %v5247, 8
        %v5547 = vpop.permute.xlu0 %5546
        %5580 = vrot.lane.b32.xlu0 %v3787, 10
        %v5581 = vpop.permute.xlu0 %5580
        %5582 = vrot.lane.b32.xlu0 %v3885, 10
        %v5583 = vpop.permute.xlu0 %5582
        %5584 = vrot.lane.b32.xlu0 %v3983, 10
        %v5585 = vpop.permute.xlu0 %5584
        %5586 = vrot.lane.b32.xlu0 %v4081, 10
        %v5587 = vpop.permute.xlu0 %5586
        %5588 = vrot.lane.b32.xlu0 %v4179, 10
        %v5589 = vpop.permute.xlu0 %5588
        %5590 = vrot.lane.b32.xlu0 %v4277, 10
        %v5591 = vpop.permute.xlu0 %5590
        %5592 = vrot.lane.b32.xlu0 %v4375, 10
        %v5593 = vpop.permute.xlu0 %5592
        %5594 = vrot.lane.b32.xlu0 %v4473, 10
        %v5595 = vpop.permute.xlu0 %5594
        %5596 = vrot.lane.b32.xlu0 %v4571, 10
        %v5597 = vpop.permute.xlu0 %5596
        %5598 = vrot.lane.b32.xlu0 %v4669, 10
        %v5599 = vpop.permute.xlu0 %5598
        %5600 = vrot.lane.b32.xlu0 %v4767, 10
        %v5601 = vpop.permute.xlu0 %5600
        %5602 = vrot.lane.b32.xlu0 %v4865, 10
        %v5603 = vpop.permute.xlu0 %5602
        %5604 = vrot.lane.b32.xlu0 %v4963, 10
        %v5605 = vpop.permute.xlu0 %5604
        %5606 = vrot.lane.b32.xlu0 %v5061, 10
        %v5607 = vpop.permute.xlu0 %5606
        %5608 = vrot.lane.b32.xlu0 %v5159, 10
        %v5609 = vpop.permute.xlu0 %5608
        %5610 = vrot.lane.b32.xlu0 %v5257, 10
        %v5611 = vpop.permute.xlu0 %5610
        %5644 = vrot.lane.b32.xlu0 %v3784, 12
        %v5645 = vpop.permute.xlu0 %5644
        %5646 = vrot.lane.b32.xlu0 %v3882, 12
        %v5647 = vpop.permute.xlu0 %5646
        %5648 = vrot.lane.b32.xlu0 %v3980, 12
        %v5649 = vpop.permute.xlu0 %5648
        %5650 = vrot.lane.b32.xlu0 %v4078, 12
        %v5651 = vpop.permute.xlu0 %5650
        %5652 = vrot.lane.b32.xlu0 %v4176, 12
        %v5653 = vpop.permute.xlu0 %5652
        %5654 = vrot.lane.b32.xlu0 %v4274, 12
        %v5655 = vpop.permute.xlu0 %5654
        %5656 = vrot.lane.b32.xlu0 %v4372, 12
        %v5657 = vpop.permute.xlu0 %5656
        %5658 = vrot.lane.b32.xlu0 %v4470, 12
        %v5659 = vpop.permute.xlu0 %5658
        %5660 = vrot.lane.b32.xlu0 %v4568, 12
        %v5661 = vpop.permute.xlu0 %5660
        %5662 = vrot.lane.b32.xlu0 %v4666, 12
        %v5663 = vpop.permute.xlu0 %5662
        %5664 = vrot.lane.b32.xlu0 %v4764, 12
        %v5665 = vpop.permute.xlu0 %5664
        %5666 = vrot.lane.b32.xlu0 %v4862, 12
        %v5667 = vpop.permute.xlu0 %5666
        %5668 = vrot.lane.b32.xlu0 %v4960, 12
        %v5669 = vpop.permute.xlu0 %5668
        %5670 = vrot.lane.b32.xlu0 %v5058, 12
        %v5671 = vpop.permute.xlu0 %5670
        %5672 = vrot.lane.b32.xlu0 %v5156, 12
        %v5673 = vpop.permute.xlu0 %5672
        %5674 = vrot.lane.b32.xlu0 %v5254, 12
        %v5675 = vpop.permute.xlu0 %5674
        %5708 = vrot.lane.b32.xlu0 %v3788, 14
        %v5709 = vpop.permute.xlu0 %5708
        %5710 = vrot.lane.b32.xlu0 %v3886, 14
        %v5711 = vpop.permute.xlu0 %5710
        %5712 = vrot.lane.b32.xlu0 %v3984, 14
        %v5713 = vpop.permute.xlu0 %5712
        %5714 = vrot.lane.b32.xlu0 %v4082, 14
        %v5715 = vpop.permute.xlu0 %5714
        %5716 = vrot.lane.b32.xlu0 %v4180, 14
        %v5717 = vpop.permute.xlu0 %5716
        %5718 = vrot.lane.b32.xlu0 %v4278, 14
        %v5719 = vpop.permute.xlu0 %5718
        %5720 = vrot.lane.b32.xlu0 %v4376, 14
        %v5721 = vpop.permute.xlu0 %5720
        %5722 = vrot.lane.b32.xlu0 %v4474, 14
        %v5723 = vpop.permute.xlu0 %5722
        %5724 = vrot.lane.b32.xlu0 %v4572, 14
        %v5725 = vpop.permute.xlu0 %5724
        %5726 = vrot.lane.b32.xlu0 %v4670, 14
        %v5727 = vpop.permute.xlu0 %5726
        %5728 = vrot.lane.b32.xlu0 %v4768, 14
        %v5729 = vpop.permute.xlu0 %5728
        %5730 = vrot.lane.b32.xlu0 %v4866, 14
        %v5731 = vpop.permute.xlu0 %5730
        %5732 = vrot.lane.b32.xlu0 %v4964, 14
        %v5733 = vpop.permute.xlu0 %5732
        %5734 = vrot.lane.b32.xlu0 %v5062, 14
        %v5735 = vpop.permute.xlu0 %5734
        %5736 = vrot.lane.b32.xlu0 %v5160, 14
        %v5737 = vpop.permute.xlu0 %5736
        %5738 = vrot.lane.b32.xlu0 %v5258, 14
        %v5739 = vpop.permute.xlu0 %5738
        %5772 = vrot.lane.b32.xlu0 %v3811, 16
        %v5773 = vpop.permute.xlu0 %5772
        %5774 = vrot.lane.b32.xlu0 %v3909, 16
        %v5775 = vpop.permute.xlu0 %5774
        %5776 = vrot.lane.b32.xlu0 %v4007, 16
        %v5777 = vpop.permute.xlu0 %5776
        %5778 = vrot.lane.b32.xlu0 %v4105, 16
        %v5779 = vpop.permute.xlu0 %5778
        %5780 = vrot.lane.b32.xlu0 %v4203, 16
        %v5781 = vpop.permute.xlu0 %5780
        %5782 = vrot.lane.b32.xlu0 %v4301, 16
        %v5783 = vpop.permute.xlu0 %5782
        %5784 = vrot.lane.b32.xlu0 %v4399, 16
        %v5785 = vpop.permute.xlu0 %5784
        %5786 = vrot.lane.b32.xlu0 %v4497, 16
        %v5787 = vpop.permute.xlu0 %5786
        %5788 = vrot.lane.b32.xlu0 %v4595, 16
        %v5789 = vpop.permute.xlu0 %5788
        %5790 = vrot.lane.b32.xlu0 %v4693, 16
        %v5791 = vpop.permute.xlu0 %5790
        %5792 = vrot.lane.b32.xlu0 %v4791, 16
        %v5793 = vpop.permute.xlu0 %5792
        %5794 = vrot.lane.b32.xlu0 %v4889, 16
        %v5795 = vpop.permute.xlu0 %5794
        %5796 = vrot.lane.b32.xlu0 %v4987, 16
        %v5797 = vpop.permute.xlu0 %5796
        %5798 = vrot.lane.b32.xlu0 %v5085, 16
        %v5799 = vpop.permute.xlu0 %5798
        %5800 = vrot.lane.b32.xlu0 %v5183, 16
        %v5801 = vpop.permute.xlu0 %5800
        %5802 = vrot.lane.b32.xlu0 %v5281, 16
        %v5803 = vpop.permute.xlu0 %5802
        %5836 = vrot.lane.b32.xlu0 %v3834, 18
        %v5837 = vpop.permute.xlu0 %5836
        %5838 = vrot.lane.b32.xlu0 %v3932, 18
        %v5839 = vpop.permute.xlu0 %5838
        %5840 = vrot.lane.b32.xlu0 %v4030, 18
        %v5841 = vpop.permute.xlu0 %5840
        %5842 = vrot.lane.b32.xlu0 %v4128, 18
        %v5843 = vpop.permute.xlu0 %5842
        %5844 = vrot.lane.b32.xlu0 %v4226, 18
        %v5845 = vpop.permute.xlu0 %5844
        %5846 = vrot.lane.b32.xlu0 %v4324, 18
        %v5847 = vpop.permute.xlu0 %5846
        %5848 = vrot.lane.b32.xlu0 %v4422, 18
        %v5849 = vpop.permute.xlu0 %5848
        %5850 = vrot.lane.b32.xlu0 %v4520, 18
        %v5851 = vpop.permute.xlu0 %5850
        %5852 = vrot.lane.b32.xlu0 %v4618, 18
        %v5853 = vpop.permute.xlu0 %5852
        %5854 = vrot.lane.b32.xlu0 %v4716, 18
        %v5855 = vpop.permute.xlu0 %5854
        %5856 = vrot.lane.b32.xlu0 %v4814, 18
        %v5857 = vpop.permute.xlu0 %5856
        %5858 = vrot.lane.b32.xlu0 %v4912, 18
        %v5859 = vpop.permute.xlu0 %5858
        %5860 = vrot.lane.b32.xlu0 %v5010, 18
        %v5861 = vpop.permute.xlu0 %5860
        %5862 = vrot.lane.b32.xlu0 %v5108, 18
        %v5863 = vpop.permute.xlu0 %5862
        %5864 = vrot.lane.b32.xlu0 %v5206, 18
        %v5865 = vpop.permute.xlu0 %5864
        %5866 = vrot.lane.b32.xlu0 %v5304, 18
        %v5867 = vpop.permute.xlu0 %5866
        %5900 = vrot.lane.b32.xlu0 %v3818, 20
        %v5901 = vpop.permute.xlu0 %5900
        %5902 = vrot.lane.b32.xlu0 %v3916, 20
        %v5903 = vpop.permute.xlu0 %5902
        %5904 = vrot.lane.b32.xlu0 %v4014, 20
        %v5905 = vpop.permute.xlu0 %5904
        %5906 = vrot.lane.b32.xlu0 %v4112, 20
        %v5907 = vpop.permute.xlu0 %5906
        %5908 = vrot.lane.b32.xlu0 %v4210, 20
        %v5909 = vpop.permute.xlu0 %5908
        %5910 = vrot.lane.b32.xlu0 %v4308, 20
        %v5911 = vpop.permute.xlu0 %5910
        %5912 = vrot.lane.b32.xlu0 %v4406, 20
        %v5913 = vpop.permute.xlu0 %5912
        %5914 = vrot.lane.b32.xlu0 %v4504, 20
        %v5915 = vpop.permute.xlu0 %5914
        %5916 = vrot.lane.b32.xlu0 %v4602, 20
        %v5917 = vpop.permute.xlu0 %5916
        %5918 = vrot.lane.b32.xlu0 %v4700, 20
        %v5919 = vpop.permute.xlu0 %5918
        %5920 = vrot.lane.b32.xlu0 %v4798, 20
        %v5921 = vpop.permute.xlu0 %5920
        %5922 = vrot.lane.b32.xlu0 %v4896, 20
        %v5923 = vpop.permute.xlu0 %5922
        %5924 = vrot.lane.b32.xlu0 %v4994, 20
        %v5925 = vpop.permute.xlu0 %5924
        %5926 = vrot.lane.b32.xlu0 %v5092, 20
        %v5927 = vpop.permute.xlu0 %5926
        %5928 = vrot.lane.b32.xlu0 %v5190, 20
        %v5929 = vpop.permute.xlu0 %5928
        %5930 = vrot.lane.b32.xlu0 %v5288, 20
        %v5931 = vpop.permute.xlu0 %5930
        %5964 = vrot.lane.b32.xlu0 %v3835, 22
        %v5965 = vpop.permute.xlu0 %5964
        %5966 = vrot.lane.b32.xlu0 %v3933, 22
        %v5967 = vpop.permute.xlu0 %5966
        %5968 = vrot.lane.b32.xlu0 %v4031, 22
        %v5969 = vpop.permute.xlu0 %5968
        %5970 = vrot.lane.b32.xlu0 %v4129, 22
        %v5971 = vpop.permute.xlu0 %5970
        %5972 = vrot.lane.b32.xlu0 %v4227, 22
        %v5973 = vpop.permute.xlu0 %5972
        %5974 = vrot.lane.b32.xlu0 %v4325, 22
        %v5975 = vpop.permute.xlu0 %5974
        %5976 = vrot.lane.b32.xlu0 %v4423, 22
        %v5977 = vpop.permute.xlu0 %5976
        %5978 = vrot.lane.b32.xlu0 %v4521, 22
        %v5979 = vpop.permute.xlu0 %5978
        %5980 = vrot.lane.b32.xlu0 %v4619, 22
        %v5981 = vpop.permute.xlu0 %5980
        %5982 = vrot.lane.b32.xlu0 %v4717, 22
        %v5983 = vpop.permute.xlu0 %5982
        %5984 = vrot.lane.b32.xlu0 %v4815, 22
        %v5985 = vpop.permute.xlu0 %5984
        %5986 = vrot.lane.b32.xlu0 %v4913, 22
        %v5987 = vpop.permute.xlu0 %5986
        %5988 = vrot.lane.b32.xlu0 %v5011, 22
        %v5989 = vpop.permute.xlu0 %5988
        %5990 = vrot.lane.b32.xlu0 %v5109, 22
        %v5991 = vpop.permute.xlu0 %5990
        %5992 = vrot.lane.b32.xlu0 %v5207, 22
        %v5993 = vpop.permute.xlu0 %5992
        %5994 = vrot.lane.b32.xlu0 %v5305, 22
        %v5995 = vpop.permute.xlu0 %5994
        %6028 = vrot.lane.b32.xlu0 %v3826, 24
        %v6029 = vpop.permute.xlu0 %6028
        %6030 = vrot.lane.b32.xlu0 %v3924, 24
        %v6031 = vpop.permute.xlu0 %6030
        %6032 = vrot.lane.b32.xlu0 %v4022, 24
        %v6033 = vpop.permute.xlu0 %6032
        %6034 = vrot.lane.b32.xlu0 %v4120, 24
        %v6035 = vpop.permute.xlu0 %6034
        %6036 = vrot.lane.b32.xlu0 %v4218, 24
        %v6037 = vpop.permute.xlu0 %6036
        %6038 = vrot.lane.b32.xlu0 %v4316, 24
        %v6039 = vpop.permute.xlu0 %6038
        %6040 = vrot.lane.b32.xlu0 %v4414, 24
        %v6041 = vpop.permute.xlu0 %6040
        %6042 = vrot.lane.b32.xlu0 %v4512, 24
        %v6043 = vpop.permute.xlu0 %6042
        %6044 = vrot.lane.b32.xlu0 %v4610, 24
        %v6045 = vpop.permute.xlu0 %6044
        %6046 = vrot.lane.b32.xlu0 %v4708, 24
        %v6047 = vpop.permute.xlu0 %6046
        %6048 = vrot.lane.b32.xlu0 %v4806, 24
        %v6049 = vpop.permute.xlu0 %6048
        %6050 = vrot.lane.b32.xlu0 %v4904, 24
        %v6051 = vpop.permute.xlu0 %6050
        %6052 = vrot.lane.b32.xlu0 %v5002, 24
        %v6053 = vpop.permute.xlu0 %6052
        %6054 = vrot.lane.b32.xlu0 %v5100, 24
        %v6055 = vpop.permute.xlu0 %6054
        %6056 = vrot.lane.b32.xlu0 %v5198, 24
        %v6057 = vpop.permute.xlu0 %6056
        %6058 = vrot.lane.b32.xlu0 %v5296, 24
        %v6059 = vpop.permute.xlu0 %6058
        %6092 = vrot.lane.b32.xlu0 %v3836, 26
        %v6093 = vpop.permute.xlu0 %6092
        %6094 = vrot.lane.b32.xlu0 %v3934, 26
        %v6095 = vpop.permute.xlu0 %6094
        %6096 = vrot.lane.b32.xlu0 %v4032, 26
        %v6097 = vpop.permute.xlu0 %6096
        %6098 = vrot.lane.b32.xlu0 %v4130, 26
        %v6099 = vpop.permute.xlu0 %6098
        %6100 = vrot.lane.b32.xlu0 %v4228, 26
        %v6101 = vpop.permute.xlu0 %6100
        %6102 = vrot.lane.b32.xlu0 %v4326, 26
        %v6103 = vpop.permute.xlu0 %6102
        %6104 = vrot.lane.b32.xlu0 %v4424, 26
        %v6105 = vpop.permute.xlu0 %6104
        %6106 = vrot.lane.b32.xlu0 %v4522, 26
        %v6107 = vpop.permute.xlu0 %6106
        %6108 = vrot.lane.b32.xlu0 %v4620, 26
        %v6109 = vpop.permute.xlu0 %6108
        %6110 = vrot.lane.b32.xlu0 %v4718, 26
        %v6111 = vpop.permute.xlu0 %6110
        %6112 = vrot.lane.b32.xlu0 %v4816, 26
        %v6113 = vpop.permute.xlu0 %6112
        %6114 = vrot.lane.b32.xlu0 %v4914, 26
        %v6115 = vpop.permute.xlu0 %6114
        %6116 = vrot.lane.b32.xlu0 %v5012, 26
        %v6117 = vpop.permute.xlu0 %6116
        %6118 = vrot.lane.b32.xlu0 %v5110, 26
        %v6119 = vpop.permute.xlu0 %6118
        %6120 = vrot.lane.b32.xlu0 %v5208, 26
        %v6121 = vpop.permute.xlu0 %6120
        %6122 = vrot.lane.b32.xlu0 %v5306, 26
        %v6123 = vpop.permute.xlu0 %6122
        %6156 = vrot.lane.b32.xlu0 %v3833, 28
        %v6157 = vpop.permute.xlu0 %6156
        %6158 = vrot.lane.b32.xlu0 %v3931, 28
        %v6159 = vpop.permute.xlu0 %6158
        %6160 = vrot.lane.b32.xlu0 %v4029, 28
        %v6161 = vpop.permute.xlu0 %6160
        %6162 = vrot.lane.b32.xlu0 %v4127, 28
        %v6163 = vpop.permute.xlu0 %6162
        %6164 = vrot.lane.b32.xlu0 %v4225, 28
        %v6165 = vpop.permute.xlu0 %6164
        %6166 = vrot.lane.b32.xlu0 %v4323, 28
        %v6167 = vpop.permute.xlu0 %6166
        %6168 = vrot.lane.b32.xlu0 %v4421, 28
        %v6169 = vpop.permute.xlu0 %6168
        %6170 = vrot.lane.b32.xlu0 %v4519, 28
        %v6171 = vpop.permute.xlu0 %6170
        %6172 = vrot.lane.b32.xlu0 %v4617, 28
        %v6173 = vpop.permute.xlu0 %6172
        %6174 = vrot.lane.b32.xlu0 %v4715, 28
        %v6175 = vpop.permute.xlu0 %6174
        %6176 = vrot.lane.b32.xlu0 %v4813, 28
        %v6177 = vpop.permute.xlu0 %6176
        %6178 = vrot.lane.b32.xlu0 %v4911, 28
        %v6179 = vpop.permute.xlu0 %6178
        %6180 = vrot.lane.b32.xlu0 %v5009, 28
        %v6181 = vpop.permute.xlu0 %6180
        %6182 = vrot.lane.b32.xlu0 %v5107, 28
        %v6183 = vpop.permute.xlu0 %6182
        %6184 = vrot.lane.b32.xlu0 %v5205, 28
        %v6185 = vpop.permute.xlu0 %6184
        %6186 = vrot.lane.b32.xlu0 %v5303, 28
        %v6187 = vpop.permute.xlu0 %6186
        %6220 = vrot.lane.b32.xlu0 %v3837, 30
        %v6221 = vpop.permute.xlu0 %6220
        %6222 = vrot.lane.b32.xlu0 %v3935, 30
        %v6223 = vpop.permute.xlu0 %6222
        %6224 = vrot.lane.b32.xlu0 %v4033, 30
        %v6225 = vpop.permute.xlu0 %6224
        %6226 = vrot.lane.b32.xlu0 %v4131, 30
        %v6227 = vpop.permute.xlu0 %6226
        %6228 = vrot.lane.b32.xlu0 %v4229, 30
        %v6229 = vpop.permute.xlu0 %6228
        %6230 = vrot.lane.b32.xlu0 %v4327, 30
        %v6231 = vpop.permute.xlu0 %6230
        %6232 = vrot.lane.b32.xlu0 %v4425, 30
        %v6233 = vpop.permute.xlu0 %6232
        %6234 = vrot.lane.b32.xlu0 %v4523, 30
        %v6235 = vpop.permute.xlu0 %6234
        %6236 = vrot.lane.b32.xlu0 %v4621, 30
        %v6237 = vpop.permute.xlu0 %6236
        %6238 = vrot.lane.b32.xlu0 %v4719, 30
        %v6239 = vpop.permute.xlu0 %6238
        %6240 = vrot.lane.b32.xlu0 %v4817, 30
        %v6241 = vpop.permute.xlu0 %6240
        %6242 = vrot.lane.b32.xlu0 %v4915, 30
        %v6243 = vpop.permute.xlu0 %6242
        %6244 = vrot.lane.b32.xlu0 %v5013, 30
        %v6245 = vpop.permute.xlu0 %6244
        %6246 = vrot.lane.b32.xlu0 %v5111, 30
        %v6247 = vpop.permute.xlu0 %6246
        %6248 = vrot.lane.b32.xlu0 %v5209, 30
        %v6249 = vpop.permute.xlu0 %6248
        %6250 = vrot.lane.b32.xlu0 %v5307, 30
        %v6251 = vpop.permute.xlu0 %6250
        %v6268 = vsel %vm3485, %v3762, %v5325
        %v6269 = vsel %vm3485, %v3860, %v5327
        %v6270 = vsel %vm3485, %v3958, %v5329
        %v6271 = vsel %vm3485, %v4056, %v5331
        %v6272 = vsel %vm3485, %v4154, %v5333
        %v6273 = vsel %vm3485, %v4252, %v5335
        %v6274 = vsel %vm3485, %v4350, %v5337
        %v6275 = vsel %vm3485, %v4448, %v5339
        %v6276 = vsel %vm3485, %v4546, %v5341
        %v6277 = vsel %vm3485, %v4644, %v5343
        %v6278 = vsel %vm3485, %v4742, %v5345
        %v6279 = vsel %vm3485, %v4840, %v5347
        %v6280 = vsel %vm3485, %v4938, %v5349
        %v6281 = vsel %vm3485, %v5036, %v5351
        %v6282 = vsel %vm3485, %v5134, %v5353
        %v6283 = vsel %vm3485, %v5232, %v5355
        %v6284 = vsel %vm3502, %v6268, %v5389
        %v6285 = vsel %vm3502, %v6269, %v5391
        %v6286 = vsel %vm3502, %v6270, %v5393
        %v6287 = vsel %vm3502, %v6271, %v5395
        %v6288 = vsel %vm3502, %v6272, %v5397
        %v6289 = vsel %vm3502, %v6273, %v5399
        %v6290 = vsel %vm3502, %v6274, %v5401
        %v6291 = vsel %vm3502, %v6275, %v5403
        %v6292 = vsel %vm3502, %v6276, %v5405
        %v6293 = vsel %vm3502, %v6277, %v5407
        %v6294 = vsel %vm3502, %v6278, %v5409
        %v6295 = vsel %vm3502, %v6279, %v5411
        %v6296 = vsel %vm3502, %v6280, %v5413
        %v6297 = vsel %vm3502, %v6281, %v5415
        %v6298 = vsel %vm3502, %v6282, %v5417
        %v6299 = vsel %vm3502, %v6283, %v5419
        %v6300 = vsel %vm3519, %v6284, %v5453
        %v6301 = vsel %vm3519, %v6285, %v5455
        %v6302 = vsel %vm3519, %v6286, %v5457
        %v6303 = vsel %vm3519, %v6287, %v5459
        %v6304 = vsel %vm3519, %v6288, %v5461
        %v6305 = vsel %vm3519, %v6289, %v5463
        %v6306 = vsel %vm3519, %v6290, %v5465
        %v6307 = vsel %vm3519, %v6291, %v5467
        %v6308 = vsel %vm3519, %v6292, %v5469
        %v6309 = vsel %vm3519, %v6293, %v5471
        %v6310 = vsel %vm3519, %v6294, %v5473
        %v6311 = vsel %vm3519, %v6295, %v5475
        %v6312 = vsel %vm3519, %v6296, %v5477
        %v6313 = vsel %vm3519, %v6297, %v5479
        %v6314 = vsel %vm3519, %v6298, %v5481
        %v6315 = vsel %vm3519, %v6299, %v5483
        %v6316 = vsel %vm3536, %v6300, %v5517
        %v6317 = vsel %vm3536, %v6301, %v5519
        %v6318 = vsel %vm3536, %v6302, %v5521
        %v6319 = vsel %vm3536, %v6303, %v5523
        %v6320 = vsel %vm3536, %v6304, %v5525
        %v6321 = vsel %vm3536, %v6305, %v5527
        %v6322 = vsel %vm3536, %v6306, %v5529
        %v6323 = vsel %vm3536, %v6307, %v5531
        %v6324 = vsel %vm3536, %v6308, %v5533
        %v6325 = vsel %vm3536, %v6309, %v5535
        %v6326 = vsel %vm3536, %v6310, %v5537
        %v6327 = vsel %vm3536, %v6311, %v5539
        %v6328 = vsel %vm3536, %v6312, %v5541
        %v6329 = vsel %vm3536, %v6313, %v5543
        %v6330 = vsel %vm3536, %v6314, %v5545
        %v6331 = vsel %vm3536, %v6315, %v5547
        %v6332 = vsel %vm3553, %v6316, %v5581
        %v6333 = vsel %vm3553, %v6317, %v5583
        %v6334 = vsel %vm3553, %v6318, %v5585
        %v6335 = vsel %vm3553, %v6319, %v5587
        %v6336 = vsel %vm3553, %v6320, %v5589
        %v6337 = vsel %vm3553, %v6321, %v5591
        %v6338 = vsel %vm3553, %v6322, %v5593
        %v6339 = vsel %vm3553, %v6323, %v5595
        %v6340 = vsel %vm3553, %v6324, %v5597
        %v6341 = vsel %vm3553, %v6325, %v5599
        %v6342 = vsel %vm3553, %v6326, %v5601
        %v6343 = vsel %vm3553, %v6327, %v5603
        %v6344 = vsel %vm3553, %v6328, %v5605
        %v6345 = vsel %vm3553, %v6329, %v5607
        %v6346 = vsel %vm3553, %v6330, %v5609
        %v6347 = vsel %vm3553, %v6331, %v5611
        %v6348 = vsel %vm3570, %v6332, %v5645
        %v6349 = vsel %vm3570, %v6333, %v5647
        %v6350 = vsel %vm3570, %v6334, %v5649
        %v6351 = vsel %vm3570, %v6335, %v5651
        %v6352 = vsel %vm3570, %v6336, %v5653
        %v6353 = vsel %vm3570, %v6337, %v5655
        %v6354 = vsel %vm3570, %v6338, %v5657
        %v6355 = vsel %vm3570, %v6339, %v5659
        %v6356 = vsel %vm3570, %v6340, %v5661
        %v6357 = vsel %vm3570, %v6341, %v5663
        %v6358 = vsel %vm3570, %v6342, %v5665
        %v6359 = vsel %vm3570, %v6343, %v5667
        %v6360 = vsel %vm3570, %v6344, %v5669
        %v6361 = vsel %vm3570, %v6345, %v5671
        %v6362 = vsel %vm3570, %v6346, %v5673
        %v6363 = vsel %vm3570, %v6347, %v5675
        %v6364 = vsel %vm3587, %v6348, %v5709
        %v6365 = vsel %vm3587, %v6349, %v5711
        %v6366 = vsel %vm3587, %v6350, %v5713
        %v6367 = vsel %vm3587, %v6351, %v5715
        %v6368 = vsel %vm3587, %v6352, %v5717
        %v6369 = vsel %vm3587, %v6353, %v5719
        %v6370 = vsel %vm3587, %v6354, %v5721
        %v6371 = vsel %vm3587, %v6355, %v5723
        %v6372 = vsel %vm3587, %v6356, %v5725
        %v6373 = vsel %vm3587, %v6357, %v5727
        %v6374 = vsel %vm3587, %v6358, %v5729
        %v6375 = vsel %vm3587, %v6359, %v5731
        %v6376 = vsel %vm3587, %v6360, %v5733
        %v6377 = vsel %vm3587, %v6361, %v5735
        %v6378 = vsel %vm3587, %v6362, %v5737
        %v6379 = vsel %vm3587, %v6363, %v5739
        %v6380 = vsel %vm3604, %v6364, %v5773
        %v6381 = vsel %vm3604, %v6365, %v5775
        %v6382 = vsel %vm3604, %v6366, %v5777
        %v6383 = vsel %vm3604, %v6367, %v5779
        %v6384 = vsel %vm3604, %v6368, %v5781
        %v6385 = vsel %vm3604, %v6369, %v5783
        %v6386 = vsel %vm3604, %v6370, %v5785
        %v6387 = vsel %vm3604, %v6371, %v5787
        %v6388 = vsel %vm3604, %v6372, %v5789
        %v6389 = vsel %vm3604, %v6373, %v5791
        %v6390 = vsel %vm3604, %v6374, %v5793
        %v6391 = vsel %vm3604, %v6375, %v5795
        %v6392 = vsel %vm3604, %v6376, %v5797
        %v6393 = vsel %vm3604, %v6377, %v5799
        %v6394 = vsel %vm3604, %v6378, %v5801
        %v6395 = vsel %vm3604, %v6379, %v5803
        %v6396 = vsel %vm3621, %v6380, %v5837
        %v6397 = vsel %vm3621, %v6381, %v5839
        %v6398 = vsel %vm3621, %v6382, %v5841
        %v6399 = vsel %vm3621, %v6383, %v5843
        %v6400 = vsel %vm3621, %v6384, %v5845
        %v6401 = vsel %vm3621, %v6385, %v5847
        %v6402 = vsel %vm3621, %v6386, %v5849
        %v6403 = vsel %vm3621, %v6387, %v5851
        %v6404 = vsel %vm3621, %v6388, %v5853
        %v6405 = vsel %vm3621, %v6389, %v5855
        %v6406 = vsel %vm3621, %v6390, %v5857
        %v6407 = vsel %vm3621, %v6391, %v5859
        %v6408 = vsel %vm3621, %v6392, %v5861
        %v6409 = vsel %vm3621, %v6393, %v5863
        %v6410 = vsel %vm3621, %v6394, %v5865
        %v6411 = vsel %vm3621, %v6395, %v5867
        %v6412 = vsel %vm3638, %v6396, %v5901
        %v6413 = vsel %vm3638, %v6397, %v5903
        %v6414 = vsel %vm3638, %v6398, %v5905
        %v6415 = vsel %vm3638, %v6399, %v5907
        %v6416 = vsel %vm3638, %v6400, %v5909
        %v6417 = vsel %vm3638, %v6401, %v5911
        %v6418 = vsel %vm3638, %v6402, %v5913
        %v6419 = vsel %vm3638, %v6403, %v5915
        %v6420 = vsel %vm3638, %v6404, %v5917
        %v6421 = vsel %vm3638, %v6405, %v5919
        %v6422 = vsel %vm3638, %v6406, %v5921
        %v6423 = vsel %vm3638, %v6407, %v5923
        %v6424 = vsel %vm3638, %v6408, %v5925
        %v6425 = vsel %vm3638, %v6409, %v5927
        %v6426 = vsel %vm3638, %v6410, %v5929
        %v6427 = vsel %vm3638, %v6411, %v5931
        %v6428 = vsel %vm3655, %v6412, %v5965
        %v6429 = vsel %vm3655, %v6413, %v5967
        %v6430 = vsel %vm3655, %v6414, %v5969
        %v6431 = vsel %vm3655, %v6415, %v5971
        %v6432 = vsel %vm3655, %v6416, %v5973
        %v6433 = vsel %vm3655, %v6417, %v5975
        %v6434 = vsel %vm3655, %v6418, %v5977
        %v6435 = vsel %vm3655, %v6419, %v5979
        %v6436 = vsel %vm3655, %v6420, %v5981
        %v6437 = vsel %vm3655, %v6421, %v5983
        %v6438 = vsel %vm3655, %v6422, %v5985
        %v6439 = vsel %vm3655, %v6423, %v5987
        %v6440 = vsel %vm3655, %v6424, %v5989
        %v6441 = vsel %vm3655, %v6425, %v5991
        %v6442 = vsel %vm3655, %v6426, %v5993
        %v6443 = vsel %vm3655, %v6427, %v5995
        %v6444 = vsel %vm3672, %v6428, %v6029
        %v6445 = vsel %vm3672, %v6429, %v6031
        %v6446 = vsel %vm3672, %v6430, %v6033
        %v6447 = vsel %vm3672, %v6431, %v6035
        %v6448 = vsel %vm3672, %v6432, %v6037
        %v6449 = vsel %vm3672, %v6433, %v6039
        %v6450 = vsel %vm3672, %v6434, %v6041
        %v6451 = vsel %vm3672, %v6435, %v6043
        %v6452 = vsel %vm3672, %v6436, %v6045
        %v6453 = vsel %vm3672, %v6437, %v6047
        %v6454 = vsel %vm3672, %v6438, %v6049
        %v6455 = vsel %vm3672, %v6439, %v6051
        %v6456 = vsel %vm3672, %v6440, %v6053
        %v6457 = vsel %vm3672, %v6441, %v6055
        %v6458 = vsel %vm3672, %v6442, %v6057
        %v6459 = vsel %vm3672, %v6443, %v6059
        %v6460 = vsel %vm3689, %v6444, %v6093
        %v6461 = vsel %vm3689, %v6445, %v6095
        %v6462 = vsel %vm3689, %v6446, %v6097
        %v6463 = vsel %vm3689, %v6447, %v6099
        %v6464 = vsel %vm3689, %v6448, %v6101
        %v6465 = vsel %vm3689, %v6449, %v6103
        %v6466 = vsel %vm3689, %v6450, %v6105
        %v6467 = vsel %vm3689, %v6451, %v6107
        %v6468 = vsel %vm3689, %v6452, %v6109
        %v6469 = vsel %vm3689, %v6453, %v6111
        %v6470 = vsel %vm3689, %v6454, %v6113
        %v6471 = vsel %vm3689, %v6455, %v6115
        %v6472 = vsel %vm3689, %v6456, %v6117
        %v6473 = vsel %vm3689, %v6457, %v6119
        %v6474 = vsel %vm3689, %v6458, %v6121
        %v6475 = vsel %vm3689, %v6459, %v6123
        %v6476 = vsel %vm3706, %v6460, %v6157
        %v6477 = vsel %vm3706, %v6461, %v6159
        %v6478 = vsel %vm3706, %v6462, %v6161
        %v6479 = vsel %vm3706, %v6463, %v6163
        %v6480 = vsel %vm3706, %v6464, %v6165
        %v6481 = vsel %vm3706, %v6465, %v6167
        %v6482 = vsel %vm3706, %v6466, %v6169
        %v6483 = vsel %vm3706, %v6467, %v6171
        %v6484 = vsel %vm3706, %v6468, %v6173
        %v6485 = vsel %vm3706, %v6469, %v6175
        %v6486 = vsel %vm3706, %v6470, %v6177
        %v6487 = vsel %vm3706, %v6471, %v6179
        %v6488 = vsel %vm3706, %v6472, %v6181
        %v6489 = vsel %vm3706, %v6473, %v6183
        %v6490 = vsel %vm3706, %v6474, %v6185
        %v6491 = vsel %vm3706, %v6475, %v6187
        %v6492 = vsel %vm3723, %v6476, %v6221
        %v6493 = vsel %vm3723, %v6477, %v6223
        %v6494 = vsel %vm3723, %v6478, %v6225
        %v6495 = vsel %vm3723, %v6479, %v6227
        %v6496 = vsel %vm3723, %v6480, %v6229
        %v6497 = vsel %vm3723, %v6481, %v6231
        %v6498 = vsel %vm3723, %v6482, %v6233
        %v6499 = vsel %vm3723, %v6483, %v6235
        %v6500 = vsel %vm3723, %v6484, %v6237
        %v6501 = vsel %vm3723, %v6485, %v6239
        %v6502 = vsel %vm3723, %v6486, %v6241
        %v6503 = vsel %vm3723, %v6487, %v6243
        %v6504 = vsel %vm3723, %v6488, %v6245
        %v6505 = vsel %vm3723, %v6489, %v6247
        %v6506 = vsel %vm3723, %v6490, %v6249
        %v6507 = vsel %vm3723, %v6491, %v6251
        %v6524 = vrot.slane %v6492, 7
        %v6525 = vrot.slane %v6493, 7
        %v6526 = vrot.slane %v6494, 7
        %v6527 = vrot.slane %v6495, 7
        %v6528 = vrot.slane %v6496, 7
        %v6529 = vrot.slane %v6497, 7
        %v6530 = vrot.slane %v6498, 7
        %v6531 = vrot.slane %v6499, 7
        %v6532 = vrot.slane %v6500, 7
        %v6533 = vrot.slane %v6501, 7
        %v6534 = vrot.slane %v6502, 7
        %v6535 = vrot.slane %v6503, 7
        %v6536 = vrot.slane %v6504, 7
        %v6537 = vrot.slane %v6505, 7
        %v6538 = vrot.slane %v6506, 7
        %v6539 = vrot.slane %v6507, 7
        %vm6556 = vcmask 1040384
        %v6557 = vsel %vm6556, %v3724, %v6524
        %v6558 = vsel %vm6556, %v3725, %v6525
        %v6559 = vsel %vm6556, %v3726, %v6526
        %v6560 = vsel %vm6556, %v3727, %v6527
        %v6561 = vsel %vm6556, %v3728, %v6528
        %v6562 = vsel %vm6556, %v3729, %v6529
        %v6563 = vsel %vm6556, %v3730, %v6530
        %v6564 = vsel %vm6556, %v3731, %v6531
        %v6565 = vsel %vm6556, %v3732, %v6532
        %v6566 = vsel %vm6556, %v3733, %v6533
        %v6567 = vsel %vm6556, %v3734, %v6534
        %v6568 = vsel %vm6556, %v3735, %v6535
        %v6569 = vsel %vm6556, %v3736, %v6536
        %v6570 = vsel %vm6556, %v3737, %v6537
        %v6571 = vsel %vm6556, %v3738, %v6538
        %v6572 = vsel %vm6556, %v3739, %v6539
        %v6589 = vcombine.low %v6557, %v6558
        %v6590 = vcombine.low %v6559, %v6560
        %v6592 = vunpack.c.l.s4 1983009808
        %v6593 = vunpack.c.0.s8 %v6592
        %v6594 = vlaneseq
        %v6595 = vshrl.u32 %v6594, 7
        %v6596 = vsub.s32 %v6593, %v6595
        %v6597 = vrot.slane %v6589, %v6596
        %v6599 = vunpack.c.l.s4 1983009808
        %v6600 = vunpack.c.0.s8 %v6599
        %v6601 = vlaneseq
        %v6602 = vshrl.u32 %v6601, 7
        %v6603 = vsub.s32 %v6600, %v6602
        %v6604 = vrot.slane %v6590, %v6603
        %v6605 = vcombine.low %v6597, %v6604
        %v6606 = vcombine.low %v6561, %v6562
        %v6607 = vcombine.low %v6563, %v6564
        %v6609 = vunpack.c.l.s4 1983009808
        %v6610 = vunpack.c.0.s8 %v6609
        %v6611 = vlaneseq
        %v6612 = vshrl.u32 %v6611, 7
        %v6613 = vsub.s32 %v6610, %v6612
        %v6614 = vrot.slane %v6606, %v6613
        %v6616 = vunpack.c.l.s4 1983009808
        %v6617 = vunpack.c.0.s8 %v6616
        %v6618 = vlaneseq
        %v6619 = vshrl.u32 %v6618, 7
        %v6620 = vsub.s32 %v6617, %v6619
        %v6621 = vrot.slane %v6607, %v6620
        %v6622 = vcombine.low %v6614, %v6621
        %v6623 = vcombine.low %v6565, %v6566
        %v6624 = vcombine.low %v6567, %v6568
        %v6626 = vunpack.c.l.s4 1983009808
        %v6627 = vunpack.c.0.s8 %v6626
        %v6628 = vlaneseq
        %v6629 = vshrl.u32 %v6628, 7
        %v6630 = vsub.s32 %v6627, %v6629
        %v6631 = vrot.slane %v6623, %v6630
        %v6633 = vunpack.c.l.s4 1983009808
        %v6634 = vunpack.c.0.s8 %v6633
        %v6635 = vlaneseq
        %v6636 = vshrl.u32 %v6635, 7
        %v6637 = vsub.s32 %v6634, %v6636
        %v6638 = vrot.slane %v6624, %v6637
        %v6639 = vcombine.low %v6631, %v6638
        %v6640 = vcombine.low %v6569, %v6570
        %v6641 = vcombine.low %v6571, %v6572
        %v6643 = vunpack.c.l.s4 1983009808
        %v6644 = vunpack.c.0.s8 %v6643
        %v6645 = vlaneseq
        %v6646 = vshrl.u32 %v6645, 7
        %v6647 = vsub.s32 %v6644, %v6646
        %v6648 = vrot.slane %v6640, %v6647
        %v6650 = vunpack.c.l.s4 1983009808
        %v6651 = vunpack.c.0.s8 %v6650
        %v6652 = vlaneseq
        %v6653 = vshrl.u32 %v6652, 7
        %v6654 = vsub.s32 %v6651, %v6653
        %v6655 = vrot.slane %v6641, %v6654
        %v6656 = vcombine.low %v6648, %v6655
        %vm6661 = vcmask 261120
        %6662 = vst.msk [vmem:[%s152] sm:$0xff] %vm6661, %v6605
        %6663 = vst.msk [vmem:[%s152 + $0x8] sm:$0xff] %vm6661, %v6622
        %6664 = vst.msk [vmem:[%s152 + $0x10] sm:$0xff] %vm6661, %v6639
        %6665 = vst.msk [vmem:[%s152 + $0x18] sm:$0xff] %vm6661, %v6656
        %s6666 = sand.u32 %s68, 1
        %s6667 = scalar_lea.sflag [#allocation4], %s6666
        %s6668 = sand.u32 %s68, 1
        %s6669 = smul.addr %s6668, 32
        %s6670 = scalar_lea.vmem [#allocation5], %s6669
        // Predicated region
        $region29: #{tpu_custom_call.1} parent=23 // pred_check
          %p6671 = pneg %p78
        $region30: #{tpu_custom_call.1} parent=23 // pred_check_branch
          %6673 = sbr.rel (%p6671) target = $region32
        $region31: #{tpu_custom_call.1} parent=23 // pred_region
          %s6675 = ssub.s32 512, 512
          %6676 = vsyncadd %s6667, %s6675
          %s6677 = smul.addr %s23, 4
          %s6678 = smul.addr %s22, 4
          %s6679 = sadd.s32 %s6677, %s6678
          %s6680 = smul.addr %s6679, 128
          %s6681 = scalar_lea.hbm %s1, %s6680
          %s6682 = sshll.u32 %s6670, 4
          %s6683 = int_to_ptr.vmem [resolvable:$true] %s6682
          %6688 = dma.vmem_to_hbm [thread:$0]  %s6683, 512, %s6681, %s6667, 128, 128, 8
        $region32: #{tpu_custom_call.1} parent=23 // pred_fallthru
          _
      $region24: #{tpu_custom_call.1} parent=5 // pred_fallthru
        _
      %p6689 = scmp.le.s32.totalorder 2, %s13
      // Predicated region
      $region33: #{tpu_custom_call.1} parent=5 // pred_check
        %p6690 = pneg %p6689
      $region34: #{tpu_custom_call.1} parent=5 // pred_check_branch
        %6692 = sbr.rel (%p6690) target = $region36
      $region35: #{tpu_custom_call.1} parent=5 // pred_region
        %s6693 = ssub.s32 %s13, 2
        // Predicated region
        $region37: #{tpu_custom_call.1} parent=35 // pred_check
          %p6694 = pneg %p84
        $region38: #{tpu_custom_call.1} parent=35 // pred_check_branch
          %6696 = sbr.rel (%p6694) target = $region40
        $region39: #{tpu_custom_call.1} parent=35 // pred_region
          %s6697 = sand.u32 %s69, 1
          %s6698 = scalar_lea.sflag [#allocation4], %s6697
          %s6699 = sand.u32 %s69, 1
          %s6700 = smul.addr %s6699, 32
          %s6701 = scalar_lea.vmem [#allocation5], %s6700
          %6702 = dma.done %s6698, 512
        $region40: #{tpu_custom_call.1} parent=35 // pred_fallthru
          _
      $region36: #{tpu_custom_call.1} parent=5 // pred_fallthru
        _
    $region6: #{tpu_custom_call.1} parent=1 // loop_footer
      %s17 = sadd.s32 1, %s13
    $region7: #{tpu_custom_call.1} parent=1 // loop_footer_branch
      %12 = sbr.rel target = $region3
    $region8: #{tpu_custom_call.1} parent=1 // loop_exit
      _
    %6703 = vsyncpa [#allocation3], 1
    %s6704 = scalar_lea.sflag [#allocation3], 1
    %6705 = vsyncpa %s6704, 1
    %6706 = vsyncpa [#allocation4], 1
    %s6707 = scalar_lea.sflag [#allocation4], 1
    %6708 = vsyncpa %s6707, 1

</llo_original>
